<compile_context>
chip_gen: v7x
topology: tpu7x:2x2x1
jax: 0.10.0
libtpu: 0.0.40
codegen_flags: <defaults>
</compile_context>

<pallas_src>
import functools

import jax
import jax.numpy as jnp
from jax import lax
from jax.experimental import pallas as pl
from jax.experimental.pallas import tpu as pltpu


def _attn_mixer_kernel(x_ref, ln_ref, wqkv_ref, wproj_ref, o_ref,
                       *, num_heads, head_dim, scale, eps, bblk, n_tok):
    C = num_heads * head_dim
    N = n_tok

    # --- load + fused NCHW -> tokens transpose -----------------------------
    # x_ref block: (bblk, C, N) in the tensor's native channels-first layout.
    x_rows = [x_ref[b].astype(jnp.float32).T for b in range(bblk)]     # (N, C)
    x = jnp.concatenate(x_rows, axis=0) if bblk > 1 else x_rows[0]     # (M, C)

    ln = ln_ref[...].astype(jnp.float32)       # (3, C): gamma / beta / proj bias
    gamma, beta, b_proj = ln[0:1, :], ln[1:2, :], ln[2:3, :]

    # --- LayerNorm over the channel dim ------------------------------------
    mean = jnp.mean(x, axis=-1, keepdims=True)
    var = jnp.mean((x - mean) ** 2, axis=-1, keepdims=True)
    xn = (x - mean) * lax.rsqrt(var + eps)
    xn = xn * gamma + beta                                             # (M, C)

    # --- qkv projection (Linear, no bias), one GEMM for the whole block ----
    wqkv = wqkv_ref[...].astype(jnp.float32)                           # (C, 3C)
    qkv = jnp.dot(xn, wqkv, preferred_element_type=jnp.float32)        # (M, 3C)

    # --- per (batch, head) attention (batches must not mix) ----------------
    out_rows = []
    for b in range(bblk):
        r0 = b * N
        head_outs = []
        for h in range(num_heads):
            c0 = h * head_dim
            q = qkv[r0:r0 + N, c0:c0 + head_dim] * scale               # (N, Dh)
            k = qkv[r0:r0 + N, C + c0:C + c0 + head_dim]               # (N, Dh)
            v = qkv[r0:r0 + N, 2 * C + c0:2 * C + c0 + head_dim]       # (N, Dh)

            # q @ k^T without materializing k.T.
            s = lax.dot_general(q, k, (((1,), (1,)), ((), ())),
                                preferred_element_type=jnp.float32)    # (N, N)
            s = s - jnp.max(s, axis=-1, keepdims=True)
            p = jnp.exp(s)
            p = p * pl.reciprocal(jnp.sum(p, axis=-1, keepdims=True),
                                  approx=True)
            head_outs.append(
                jnp.dot(p, v, preferred_element_type=jnp.float32))     # (N, Dh)
        out_rows.append(jnp.concatenate(head_outs, axis=-1))           # (N, C)
    attn_out = (jnp.concatenate(out_rows, axis=0)
                if bblk > 1 else out_rows[0])                          # (M, C)

    # --- output projection (Linear with bias), one GEMM for the block ------
    wproj = wproj_ref[...].astype(jnp.float32)                         # (C, C)
    proj = jnp.dot(attn_out, wproj,
                   preferred_element_type=jnp.float32) + b_proj        # (M, C)

    # --- fused tokens -> NCHW transpose + store -----------------------------
    proj_t = proj.T                                                    # (C, M)
    for b in range(bblk):
        o_ref[b] = proj_t[:, b * N:(b + 1) * N].astype(o_ref.dtype)    # (C, N)


def attn_token_mixer(x_nchw, params, *, num_heads, batch_block=None):
    """AttnTokenMixer forward (use_CPE=False). x_nchw: (B, C, Hp, Wp)."""
    B, C, Hp, Wp = x_nchw.shape
    N = Hp * Wp
    if C % num_heads != 0:
        raise ValueError(f"in_chans={C} must be divisible by num_heads={num_heads}")
    head_dim = C // num_heads
    scale = head_dim ** (-0.5)

    # Fold the whole batch into one block by default (bigger GEMMs, single
    # grid step).  On v7x (2 TensorCores) pass batch_block=max(1, B // 2) so
    # the parallel grid axis keeps extent >= 2.
    if batch_block is None:
        batch_block = B
    if B % batch_block != 0:
        raise ValueError(f"batch={B} must be divisible by batch_block={batch_block}")
    n_blocks = B // batch_block

    # Native-layout view: (B, C, Hp, Wp) -> (B, C, N) is metadata-only; the
    # tokens-major transpose is done inside the kernel (no extra HBM pass).
    x_cn = x_nchw.reshape(B, C, N)

    # Pack the three tiny per-channel vectors into one (3, C) operand.
    ln_packed = jnp.concatenate(
        [params["ln_gamma"], params["ln_beta"], params["b_proj"]], axis=0)

    kernel = functools.partial(
        _attn_mixer_kernel,
        num_heads=num_heads, head_dim=head_dim, scale=scale, eps=1e-5,
        bblk=batch_block, n_tok=N)

    out_cn = pl.pallas_call(
        kernel,
        out_shape=jax.ShapeDtypeStruct((B, C, N), x_nchw.dtype),
        grid_spec=pltpu.PrefetchScalarGridSpec(
            num_scalar_prefetch=0,
            grid=(n_blocks,),
            in_specs=[
                pl.BlockSpec((batch_block, C, N), lambda i: (i, 0, 0)),  # x (NCHW view)
                pl.BlockSpec((3, C), lambda i: (0, 0)),                  # gamma/beta/b_proj
                pl.BlockSpec((C, 3 * C), lambda i: (0, 0)),              # w_qkv
                pl.BlockSpec((C, C), lambda i: (0, 0)),                  # w_proj
            ],
            out_specs=pl.BlockSpec((batch_block, C, N), lambda i: (i, 0, 0)),
        ),
        compiler_params=pltpu.CompilerParams(
            dimension_semantics=("parallel",)),
    )(x_cn, ln_packed, params["w_qkv"], params["w_proj"])

    # (B, C, N) -> (B, C, Hp, Wp): metadata-only reshape.
    return out_cn.reshape(B, C, Hp, Wp)


def _reference(x_nchw, params, *, num_heads):
    """Pure-JAX reference matching the PyTorch forward semantics."""
    B, C, Hp, Wp = x_nchw.shape
    N = Hp * Wp
    head_dim = C // num_heads
    scale = head_dim ** (-0.5)
    x = jnp.transpose(x_nchw.reshape(B, C, N), (0, 2, 1)).astype(jnp.float32)

    mean = jnp.mean(x, axis=-1, keepdims=True)
    var = jnp.mean((x - mean) ** 2, axis=-1, keepdims=True)
    xn = (x - mean) / jnp.sqrt(var + 1e-5)
    xn = xn * params["ln_gamma"][0] + params["ln_beta"][0]

    qkv = xn @ params["w_qkv"]                               # (B, N, 3C)
    qkv = qkv.reshape(B, N, 3, num_heads, head_dim).transpose(2, 0, 3, 1, 4)
    q, k, v = qkv[0] * scale, qkv[1], qkv[2]                 # (B, H, N, Dh)
    attn = jax.nn.softmax(jnp.einsum("bhqd,bhkd->bhqk", q, k), axis=-1)
    o = jnp.einsum("bhqk,bhkd->bhqd", attn, v)               # (B, H, N, Dh)
    o = o.transpose(0, 2, 1, 3).reshape(B, N, C)
    o = o @ params["w_proj"] + params["b_proj"][0]
    return jnp.transpose(o, (0, 2, 1)).reshape(B, C, Hp, Wp)


def _init_params(key, in_chans):
    C = in_chans
    k1, k2, k3, k4, k5 = jax.random.split(key, 5)
    return {
        # LayerNorm affine (stored as (1, C) so they pack into a (3, C) operand)
        "ln_gamma": 1.0 + 0.05 * jax.random.normal(k1, (1, C), jnp.float32),
        "ln_beta": 0.05 * jax.random.normal(k2, (1, C), jnp.float32),
        # qkv Linear (no bias), stored as (in, out) so kernel does x @ W
        "w_qkv": 0.1 * jax.random.normal(k3, (C, 3 * C), jnp.float32),
        # proj Linear (with bias)
        "w_proj": 0.1 * jax.random.normal(k4, (C, C), jnp.float32),
        "b_proj": 0.05 * jax.random.normal(k5, (1, C), jnp.float32),
    }


if __name__ == "__main__":
    B, C, Hp, Wp = 2, 32, 8, 8          # N = 64 tokens
    num_heads = 4

    key = jax.random.PRNGKey(0)
    kx, kp = jax.random.split(key)
    x = jax.random.normal(kx, (B, C, Hp, Wp), jnp.float32)
    params = _init_params(kp, C)

    out = attn_token_mixer(x, params, num_heads=num_heads)
    out = jax.block_until_ready(out)

    ref = _reference(x, params, num_heads=num_heads)
    assert out.shape == (B, C, Hp, Wp)
    # Tolerance accounts for pl.reciprocal(approx=True) in the softmax denom.
    assert jnp.allclose(out, ref, rtol=2e-3, atol=2e-3), (
        float(jnp.max(jnp.abs(out - ref))))

    print("KERNEL_OK")
</pallas_src>

<mosaic_0001>
module attributes {stable_mosaic.version = 11 : i64} {
  func.func @_attn_mixer_kernel(%arg0: i32, %arg1: memref<2x32x64xf32, #tpu.memory_space<vmem>>, %arg2: memref<3x32xf32, #tpu.memory_space<vmem>>, %arg3: memref<32x96xf32, #tpu.memory_space<vmem>>, %arg4: memref<32x32xf32, #tpu.memory_space<vmem>>, %arg5: memref<2x32x64xf32, #tpu.memory_space<vmem>>) attributes {dimension_semantics = [#tpu.dimension_semantics<parallel>], iteration_bounds = array<i64: 1>, scalar_prefetch = 0 : i64, scratch_operands = 0 : i64, tpu.core_type = #tpu.core_type<tc>, window_params = [{transform_indices = @transform_0, window_bounds = array<i64: 2, 32, 64>}, {pipeline_mode = #tpu.pipeline_mode<synchronous>, transform_indices = @transform_1, window_bounds = array<i64: 3, 32>}, {pipeline_mode = #tpu.pipeline_mode<synchronous>, transform_indices = @transform_2, window_bounds = array<i64: 32, 96>}, {pipeline_mode = #tpu.pipeline_mode<synchronous>, transform_indices = @transform_3, window_bounds = array<i64: 32, 32>}, {transform_indices = @transform_4, window_bounds = array<i64: 2, 32, 64>}]} {
    %c0 = arith.constant 0 : index
    %c0_0 = arith.constant 0 : index
    %c0_1 = arith.constant 0 : index
    %0 = vector.load %arg1[%c0, %c0_0, %c0_1] : memref<2x32x64xf32, #tpu.memory_space<vmem>>, vector<1x32x64xf32>
    %1 = vector.shape_cast %0 : vector<1x32x64xf32> to vector<32x64xf32>
    %2 = tpu.transpose %1, [1, 0] : vector<32x64xf32> -> vector<64x32xf32>
    %c1 = arith.constant 1 : index
    %c0_2 = arith.constant 0 : index
    %c0_3 = arith.constant 0 : index
    %3 = vector.load %arg1[%c1, %c0_2, %c0_3] : memref<2x32x64xf32, #tpu.memory_space<vmem>>, vector<1x32x64xf32>
    %4 = vector.shape_cast %3 : vector<1x32x64xf32> to vector<32x64xf32>
    %5 = tpu.transpose %4, [1, 0] : vector<32x64xf32> -> vector<64x32xf32>
    %6 = tpu.concatenate %2, %5 in 0 : vector<64x32xf32>, vector<64x32xf32> -> vector<128x32xf32>
    %c0_4 = arith.constant 0 : index
    %c0_5 = arith.constant 0 : index
    %7 = vector.load %arg2[%c0_4, %c0_5] : memref<3x32xf32, #tpu.memory_space<vmem>>, vector<3x32xf32>
    %8 = vector.extract_strided_slice %7 {offsets = [0, 0], sizes = [1, 32], strides = [1, 1]} : vector<3x32xf32> to vector<1x32xf32>
    %9 = vector.extract_strided_slice %7 {offsets = [1, 0], sizes = [1, 32], strides = [1, 1]} : vector<3x32xf32> to vector<1x32xf32>
    %10 = vector.extract_strided_slice %7 {offsets = [2, 0], sizes = [1, 32], strides = [1, 1]} : vector<3x32xf32> to vector<1x32xf32>
    %cst = arith.constant dense<0.000000e+00> : vector<128xf32>
    %11 = vector.multi_reduction <add>, %6, %cst [1] : vector<128x32xf32> to vector<128xf32>
    %12 = vector.shape_cast %11 : vector<128xf32> to vector<128x1xf32>
    %cst_6 = arith.constant 3.200000e+01 : f32
    %13 = vector.broadcast %cst_6 : f32 to vector<128x1xf32>
    %14 = arith.divf %12, %13 : vector<128x1xf32>
    %15 = vector.broadcast %14 : vector<128x1xf32> to vector<128x32xf32>
    %16 = arith.subf %6, %15 : vector<128x32xf32>
    %17 = arith.mulf %16, %16 : vector<128x32xf32>
    %cst_7 = arith.constant dense<0.000000e+00> : vector<128xf32>
    %18 = vector.multi_reduction <add>, %17, %cst_7 [1] : vector<128x32xf32> to vector<128xf32>
    %19 = vector.shape_cast %18 : vector<128xf32> to vector<128x1xf32>
    %cst_8 = arith.constant 3.200000e+01 : f32
    %20 = vector.broadcast %cst_8 : f32 to vector<128x1xf32>
    %21 = arith.divf %19, %20 : vector<128x1xf32>
    %22 = vector.broadcast %14 : vector<128x1xf32> to vector<128x32xf32>
    %23 = arith.subf %6, %22 : vector<128x32xf32>
    %cst_9 = arith.constant 9.99999974E-6 : f32
    %24 = vector.broadcast %cst_9 : f32 to vector<128x1xf32>
    %25 = arith.addf %21, %24 : vector<128x1xf32>
    %26 = math.rsqrt %25 : vector<128x1xf32>
    %27 = vector.broadcast %26 : vector<128x1xf32> to vector<128x32xf32>
    %28 = arith.mulf %23, %27 : vector<128x32xf32>
    %29 = vector.broadcast %8 : vector<1x32xf32> to vector<128x32xf32>
    %30 = arith.mulf %28, %29 : vector<128x32xf32>
    %31 = vector.broadcast %9 : vector<1x32xf32> to vector<128x32xf32>
    %32 = arith.addf %30, %31 : vector<128x32xf32>
    %c0_10 = arith.constant 0 : index
    %c0_11 = arith.constant 0 : index
    %33 = vector.load %arg3[%c0_10, %c0_11] : memref<32x96xf32, #tpu.memory_space<vmem>>, vector<32x96xf32>
    %cst_12 = arith.constant dense<0.000000e+00> : vector<128x96xf32>
    %34 = tpu.matmul %32, %33, %cst_12 {dimension_numbers = #tpu.dot_dimension_numbers<[1], [0], [0], [1], [0, 0, 1, 1], [], []>} : vector<128x32xf32>, vector<32x96xf32>, vector<128x96xf32> -> vector<128x96xf32>
    %35 = vector.extract_strided_slice %34 {offsets = [0, 0], sizes = [64, 8], strides = [1, 1]} : vector<128x96xf32> to vector<64x8xf32>
    %cst_13 = arith.constant 0.353553385 : f32
    %36 = vector.broadcast %cst_13 : f32 to vector<64x8xf32>
    %37 = arith.mulf %35, %36 : vector<64x8xf32>
    %38 = vector.extract_strided_slice %34 {offsets = [0, 32], sizes = [64, 8], strides = [1, 1]} : vector<128x96xf32> to vector<64x8xf32>
    %39 = vector.extract_strided_slice %34 {offsets = [0, 64], sizes = [64, 8], strides = [1, 1]} : vector<128x96xf32> to vector<64x8xf32>
    %cst_14 = arith.constant dense<0.000000e+00> : vector<64x64xf32>
    %40 = tpu.matmul %37, %38, %cst_14 {dimension_numbers = #tpu.dot_dimension_numbers<[1], [1], [0], [0], [0, 0, 1, 0], [], []>} : vector<64x8xf32>, vector<64x8xf32>, vector<64x64xf32> -> vector<64x64xf32>
    %cst_15 = arith.constant dense<0xFF800000> : vector<64xf32>
    %41 = vector.multi_reduction <maximumf>, %40, %cst_15 [1] : vector<64x64xf32> to vector<64xf32>
    %42 = vector.shape_cast %41 : vector<64xf32> to vector<64x1xf32>
    %43 = vector.broadcast %42 : vector<64x1xf32> to vector<64x64xf32>
    %44 = arith.subf %40, %43 : vector<64x64xf32>
    %45 = math.exp %44 : vector<64x64xf32>
    %cst_16 = arith.constant dense<0.000000e+00> : vector<64xf32>
    %46 = vector.multi_reduction <add>, %45, %cst_16 [1] : vector<64x64xf32> to vector<64xf32>
    %47 = vector.shape_cast %46 : vector<64xf32> to vector<64x1xf32>
    %48 = tpu.reciprocal %47 {approx = true} : vector<64x1xf32> -> vector<64x1xf32>
    %49 = vector.broadcast %48 : vector<64x1xf32> to vector<64x64xf32>
    %50 = arith.mulf %45, %49 : vector<64x64xf32>
    %cst_17 = arith.constant dense<0.000000e+00> : vector<64x8xf32>
    %51 = tpu.matmul %50, %39, %cst_17 {dimension_numbers = #tpu.dot_dimension_numbers<[1], [0], [0], [1], [0, 0, 1, 1], [], []>} : vector<64x64xf32>, vector<64x8xf32>, vector<64x8xf32> -> vector<64x8xf32>
    %52 = vector.extract_strided_slice %34 {offsets = [0, 8], sizes = [64, 8], strides = [1, 1]} : vector<128x96xf32> to vector<64x8xf32>
    %cst_18 = arith.constant 0.353553385 : f32
    %53 = vector.broadcast %cst_18 : f32 to vector<64x8xf32>
    %54 = arith.mulf %52, %53 : vector<64x8xf32>
    %55 = vector.extract_strided_slice %34 {offsets = [0, 40], sizes = [64, 8], strides = [1, 1]} : vector<128x96xf32> to vector<64x8xf32>
    %56 = vector.extract_strided_slice %34 {offsets = [0, 72], sizes = [64, 8], strides = [1, 1]} : vector<128x96xf32> to vector<64x8xf32>
    %cst_19 = arith.constant dense<0.000000e+00> : vector<64x64xf32>
    %57 = tpu.matmul %54, %55, %cst_19 {dimension_numbers = #tpu.dot_dimension_numbers<[1], [1], [0], [0], [0, 0, 1, 0], [], []>} : vector<64x8xf32>, vector<64x8xf32>, vector<64x64xf32> -> vector<64x64xf32>
    %cst_20 = arith.constant dense<0xFF800000> : vector<64xf32>
    %58 = vector.multi_reduction <maximumf>, %57, %cst_20 [1] : vector<64x64xf32> to vector<64xf32>
    %59 = vector.shape_cast %58 : vector<64xf32> to vector<64x1xf32>
    %60 = vector.broadcast %59 : vector<64x1xf32> to vector<64x64xf32>
    %61 = arith.subf %57, %60 : vector<64x64xf32>
    %62 = math.exp %61 : vector<64x64xf32>
    %cst_21 = arith.constant dense<0.000000e+00> : vector<64xf32>
    %63 = vector.multi_reduction <add>, %62, %cst_21 [1] : vector<64x64xf32> to vector<64xf32>
    %64 = vector.shape_cast %63 : vector<64xf32> to vector<64x1xf32>
    %65 = tpu.reciprocal %64 {approx = true} : vector<64x1xf32> -> vector<64x1xf32>
    %66 = vector.broadcast %65 : vector<64x1xf32> to vector<64x64xf32>
    %67 = arith.mulf %62, %66 : vector<64x64xf32>
    %cst_22 = arith.constant dense<0.000000e+00> : vector<64x8xf32>
    %68 = tpu.matmul %67, %56, %cst_22 {dimension_numbers = #tpu.dot_dimension_numbers<[1], [0], [0], [1], [0, 0, 1, 1], [], []>} : vector<64x64xf32>, vector<64x8xf32>, vector<64x8xf32> -> vector<64x8xf32>
    %69 = vector.extract_strided_slice %34 {offsets = [0, 16], sizes = [64, 8], strides = [1, 1]} : vector<128x96xf32> to vector<64x8xf32>
    %cst_23 = arith.constant 0.353553385 : f32
    %70 = vector.broadcast %cst_23 : f32 to vector<64x8xf32>
    %71 = arith.mulf %69, %70 : vector<64x8xf32>
    %72 = vector.extract_strided_slice %34 {offsets = [0, 48], sizes = [64, 8], strides = [1, 1]} : vector<128x96xf32> to vector<64x8xf32>
    %73 = vector.extract_strided_slice %34 {offsets = [0, 80], sizes = [64, 8], strides = [1, 1]} : vector<128x96xf32> to vector<64x8xf32>
    %cst_24 = arith.constant dense<0.000000e+00> : vector<64x64xf32>
    %74 = tpu.matmul %71, %72, %cst_24 {dimension_numbers = #tpu.dot_dimension_numbers<[1], [1], [0], [0], [0, 0, 1, 0], [], []>} : vector<64x8xf32>, vector<64x8xf32>, vector<64x64xf32> -> vector<64x64xf32>
    %cst_25 = arith.constant dense<0xFF800000> : vector<64xf32>
    %75 = vector.multi_reduction <maximumf>, %74, %cst_25 [1] : vector<64x64xf32> to vector<64xf32>
    %76 = vector.shape_cast %75 : vector<64xf32> to vector<64x1xf32>
    %77 = vector.broadcast %76 : vector<64x1xf32> to vector<64x64xf32>
    %78 = arith.subf %74, %77 : vector<64x64xf32>
    %79 = math.exp %78 : vector<64x64xf32>
    %cst_26 = arith.constant dense<0.000000e+00> : vector<64xf32>
    %80 = vector.multi_reduction <add>, %79, %cst_26 [1] : vector<64x64xf32> to vector<64xf32>
    %81 = vector.shape_cast %80 : vector<64xf32> to vector<64x1xf32>
    %82 = tpu.reciprocal %81 {approx = true} : vector<64x1xf32> -> vector<64x1xf32>
    %83 = vector.broadcast %82 : vector<64x1xf32> to vector<64x64xf32>
    %84 = arith.mulf %79, %83 : vector<64x64xf32>
    %cst_27 = arith.constant dense<0.000000e+00> : vector<64x8xf32>
    %85 = tpu.matmul %84, %73, %cst_27 {dimension_numbers = #tpu.dot_dimension_numbers<[1], [0], [0], [1], [0, 0, 1, 1], [], []>} : vector<64x64xf32>, vector<64x8xf32>, vector<64x8xf32> -> vector<64x8xf32>
    %86 = vector.extract_strided_slice %34 {offsets = [0, 24], sizes = [64, 8], strides = [1, 1]} : vector<128x96xf32> to vector<64x8xf32>
    %cst_28 = arith.constant 0.353553385 : f32
    %87 = vector.broadcast %cst_28 : f32 to vector<64x8xf32>
    %88 = arith.mulf %86, %87 : vector<64x8xf32>
    %89 = vector.extract_strided_slice %34 {offsets = [0, 56], sizes = [64, 8], strides = [1, 1]} : vector<128x96xf32> to vector<64x8xf32>
    %90 = vector.extract_strided_slice %34 {offsets = [0, 88], sizes = [64, 8], strides = [1, 1]} : vector<128x96xf32> to vector<64x8xf32>
    %cst_29 = arith.constant dense<0.000000e+00> : vector<64x64xf32>
    %91 = tpu.matmul %88, %89, %cst_29 {dimension_numbers = #tpu.dot_dimension_numbers<[1], [1], [0], [0], [0, 0, 1, 0], [], []>} : vector<64x8xf32>, vector<64x8xf32>, vector<64x64xf32> -> vector<64x64xf32>
    %cst_30 = arith.constant dense<0xFF800000> : vector<64xf32>
    %92 = vector.multi_reduction <maximumf>, %91, %cst_30 [1] : vector<64x64xf32> to vector<64xf32>
    %93 = vector.shape_cast %92 : vector<64xf32> to vector<64x1xf32>
    %94 = vector.broadcast %93 : vector<64x1xf32> to vector<64x64xf32>
    %95 = arith.subf %91, %94 : vector<64x64xf32>
    %96 = math.exp %95 : vector<64x64xf32>
    %cst_31 = arith.constant dense<0.000000e+00> : vector<64xf32>
    %97 = vector.multi_reduction <add>, %96, %cst_31 [1] : vector<64x64xf32> to vector<64xf32>
    %98 = vector.shape_cast %97 : vector<64xf32> to vector<64x1xf32>
    %99 = tpu.reciprocal %98 {approx = true} : vector<64x1xf32> -> vector<64x1xf32>
    %100 = vector.broadcast %99 : vector<64x1xf32> to vector<64x64xf32>
    %101 = arith.mulf %96, %100 : vector<64x64xf32>
    %cst_32 = arith.constant dense<0.000000e+00> : vector<64x8xf32>
    %102 = tpu.matmul %101, %90, %cst_32 {dimension_numbers = #tpu.dot_dimension_numbers<[1], [0], [0], [1], [0, 0, 1, 1], [], []>} : vector<64x64xf32>, vector<64x8xf32>, vector<64x8xf32> -> vector<64x8xf32>
    %103 = tpu.concatenate %51, %68, %85, %102 in 1 : vector<64x8xf32>, vector<64x8xf32>, vector<64x8xf32>, vector<64x8xf32> -> vector<64x32xf32>
    %104 = vector.extract_strided_slice %34 {offsets = [64, 0], sizes = [64, 8], strides = [1, 1]} : vector<128x96xf32> to vector<64x8xf32>
    %cst_33 = arith.constant 0.353553385 : f32
    %105 = vector.broadcast %cst_33 : f32 to vector<64x8xf32>
    %106 = arith.mulf %104, %105 : vector<64x8xf32>
    %107 = vector.extract_strided_slice %34 {offsets = [64, 32], sizes = [64, 8], strides = [1, 1]} : vector<128x96xf32> to vector<64x8xf32>
    %108 = vector.extract_strided_slice %34 {offsets = [64, 64], sizes = [64, 8], strides = [1, 1]} : vector<128x96xf32> to vector<64x8xf32>
    %cst_34 = arith.constant dense<0.000000e+00> : vector<64x64xf32>
    %109 = tpu.matmul %106, %107, %cst_34 {dimension_numbers = #tpu.dot_dimension_numbers<[1], [1], [0], [0], [0, 0, 1, 0], [], []>} : vector<64x8xf32>, vector<64x8xf32>, vector<64x64xf32> -> vector<64x64xf32>
    %cst_35 = arith.constant dense<0xFF800000> : vector<64xf32>
    %110 = vector.multi_reduction <maximumf>, %109, %cst_35 [1] : vector<64x64xf32> to vector<64xf32>
    %111 = vector.shape_cast %110 : vector<64xf32> to vector<64x1xf32>
    %112 = vector.broadcast %111 : vector<64x1xf32> to vector<64x64xf32>
    %113 = arith.subf %109, %112 : vector<64x64xf32>
    %114 = math.exp %113 : vector<64x64xf32>
    %cst_36 = arith.constant dense<0.000000e+00> : vector<64xf32>
    %115 = vector.multi_reduction <add>, %114, %cst_36 [1] : vector<64x64xf32> to vector<64xf32>
    %116 = vector.shape_cast %115 : vector<64xf32> to vector<64x1xf32>
    %117 = tpu.reciprocal %116 {approx = true} : vector<64x1xf32> -> vector<64x1xf32>
    %118 = vector.broadcast %117 : vector<64x1xf32> to vector<64x64xf32>
    %119 = arith.mulf %114, %118 : vector<64x64xf32>
    %cst_37 = arith.constant dense<0.000000e+00> : vector<64x8xf32>
    %120 = tpu.matmul %119, %108, %cst_37 {dimension_numbers = #tpu.dot_dimension_numbers<[1], [0], [0], [1], [0, 0, 1, 1], [], []>} : vector<64x64xf32>, vector<64x8xf32>, vector<64x8xf32> -> vector<64x8xf32>
    %121 = vector.extract_strided_slice %34 {offsets = [64, 8], sizes = [64, 8], strides = [1, 1]} : vector<128x96xf32> to vector<64x8xf32>
    %cst_38 = arith.constant 0.353553385 : f32
    %122 = vector.broadcast %cst_38 : f32 to vector<64x8xf32>
    %123 = arith.mulf %121, %122 : vector<64x8xf32>
    %124 = vector.extract_strided_slice %34 {offsets = [64, 40], sizes = [64, 8], strides = [1, 1]} : vector<128x96xf32> to vector<64x8xf32>
    %125 = vector.extract_strided_slice %34 {offsets = [64, 72], sizes = [64, 8], strides = [1, 1]} : vector<128x96xf32> to vector<64x8xf32>
    %cst_39 = arith.constant dense<0.000000e+00> : vector<64x64xf32>
    %126 = tpu.matmul %123, %124, %cst_39 {dimension_numbers = #tpu.dot_dimension_numbers<[1], [1], [0], [0], [0, 0, 1, 0], [], []>} : vector<64x8xf32>, vector<64x8xf32>, vector<64x64xf32> -> vector<64x64xf32>
    %cst_40 = arith.constant dense<0xFF800000> : vector<64xf32>
    %127 = vector.multi_reduction <maximumf>, %126, %cst_40 [1] : vector<64x64xf32> to vector<64xf32>
    %128 = vector.shape_cast %127 : vector<64xf32> to vector<64x1xf32>
    %129 = vector.broadcast %128 : vector<64x1xf32> to vector<64x64xf32>
    %130 = arith.subf %126, %129 : vector<64x64xf32>
    %131 = math.exp %130 : vector<64x64xf32>
    %cst_41 = arith.constant dense<0.000000e+00> : vector<64xf32>
    %132 = vector.multi_reduction <add>, %131, %cst_41 [1] : vector<64x64xf32> to vector<64xf32>
    %133 = vector.shape_cast %132 : vector<64xf32> to vector<64x1xf32>
    %134 = tpu.reciprocal %133 {approx = true} : vector<64x1xf32> -> vector<64x1xf32>
    %135 = vector.broadcast %134 : vector<64x1xf32> to vector<64x64xf32>
    %136 = arith.mulf %131, %135 : vector<64x64xf32>
    %cst_42 = arith.constant dense<0.000000e+00> : vector<64x8xf32>
    %137 = tpu.matmul %136, %125, %cst_42 {dimension_numbers = #tpu.dot_dimension_numbers<[1], [0], [0], [1], [0, 0, 1, 1], [], []>} : vector<64x64xf32>, vector<64x8xf32>, vector<64x8xf32> -> vector<64x8xf32>
    %138 = vector.extract_strided_slice %34 {offsets = [64, 16], sizes = [64, 8], strides = [1, 1]} : vector<128x96xf32> to vector<64x8xf32>
    %cst_43 = arith.constant 0.353553385 : f32
    %139 = vector.broadcast %cst_43 : f32 to vector<64x8xf32>
    %140 = arith.mulf %138, %139 : vector<64x8xf32>
    %141 = vector.extract_strided_slice %34 {offsets = [64, 48], sizes = [64, 8], strides = [1, 1]} : vector<128x96xf32> to vector<64x8xf32>
    %142 = vector.extract_strided_slice %34 {offsets = [64, 80], sizes = [64, 8], strides = [1, 1]} : vector<128x96xf32> to vector<64x8xf32>
    %cst_44 = arith.constant dense<0.000000e+00> : vector<64x64xf32>
    %143 = tpu.matmul %140, %141, %cst_44 {dimension_numbers = #tpu.dot_dimension_numbers<[1], [1], [0], [0], [0, 0, 1, 0], [], []>} : vector<64x8xf32>, vector<64x8xf32>, vector<64x64xf32> -> vector<64x64xf32>
    %cst_45 = arith.constant dense<0xFF800000> : vector<64xf32>
    %144 = vector.multi_reduction <maximumf>, %143, %cst_45 [1] : vector<64x64xf32> to vector<64xf32>
    %145 = vector.shape_cast %144 : vector<64xf32> to vector<64x1xf32>
    %146 = vector.broadcast %145 : vector<64x1xf32> to vector<64x64xf32>
    %147 = arith.subf %143, %146 : vector<64x64xf32>
    %148 = math.exp %147 : vector<64x64xf32>
    %cst_46 = arith.constant dense<0.000000e+00> : vector<64xf32>
    %149 = vector.multi_reduction <add>, %148, %cst_46 [1] : vector<64x64xf32> to vector<64xf32>
    %150 = vector.shape_cast %149 : vector<64xf32> to vector<64x1xf32>
    %151 = tpu.reciprocal %150 {approx = true} : vector<64x1xf32> -> vector<64x1xf32>
    %152 = vector.broadcast %151 : vector<64x1xf32> to vector<64x64xf32>
    %153 = arith.mulf %148, %152 : vector<64x64xf32>
    %cst_47 = arith.constant dense<0.000000e+00> : vector<64x8xf32>
    %154 = tpu.matmul %153, %142, %cst_47 {dimension_numbers = #tpu.dot_dimension_numbers<[1], [0], [0], [1], [0, 0, 1, 1], [], []>} : vector<64x64xf32>, vector<64x8xf32>, vector<64x8xf32> -> vector<64x8xf32>
    %155 = vector.extract_strided_slice %34 {offsets = [64, 24], sizes = [64, 8], strides = [1, 1]} : vector<128x96xf32> to vector<64x8xf32>
    %cst_48 = arith.constant 0.353553385 : f32
    %156 = vector.broadcast %cst_48 : f32 to vector<64x8xf32>
    %157 = arith.mulf %155, %156 : vector<64x8xf32>
    %158 = vector.extract_strided_slice %34 {offsets = [64, 56], sizes = [64, 8], strides = [1, 1]} : vector<128x96xf32> to vector<64x8xf32>
    %159 = vector.extract_strided_slice %34 {offsets = [64, 88], sizes = [64, 8], strides = [1, 1]} : vector<128x96xf32> to vector<64x8xf32>
    %cst_49 = arith.constant dense<0.000000e+00> : vector<64x64xf32>
    %160 = tpu.matmul %157, %158, %cst_49 {dimension_numbers = #tpu.dot_dimension_numbers<[1], [1], [0], [0], [0, 0, 1, 0], [], []>} : vector<64x8xf32>, vector<64x8xf32>, vector<64x64xf32> -> vector<64x64xf32>
    %cst_50 = arith.constant dense<0xFF800000> : vector<64xf32>
    %161 = vector.multi_reduction <maximumf>, %160, %cst_50 [1] : vector<64x64xf32> to vector<64xf32>
    %162 = vector.shape_cast %161 : vector<64xf32> to vector<64x1xf32>
    %163 = vector.broadcast %162 : vector<64x1xf32> to vector<64x64xf32>
    %164 = arith.subf %160, %163 : vector<64x64xf32>
    %165 = math.exp %164 : vector<64x64xf32>
    %cst_51 = arith.constant dense<0.000000e+00> : vector<64xf32>
    %166 = vector.multi_reduction <add>, %165, %cst_51 [1] : vector<64x64xf32> to vector<64xf32>
    %167 = vector.shape_cast %166 : vector<64xf32> to vector<64x1xf32>
    %168 = tpu.reciprocal %167 {approx = true} : vector<64x1xf32> -> vector<64x1xf32>
    %169 = vector.broadcast %168 : vector<64x1xf32> to vector<64x64xf32>
    %170 = arith.mulf %165, %169 : vector<64x64xf32>
    %cst_52 = arith.constant dense<0.000000e+00> : vector<64x8xf32>
    %171 = tpu.matmul %170, %159, %cst_52 {dimension_numbers = #tpu.dot_dimension_numbers<[1], [0], [0], [1], [0, 0, 1, 1], [], []>} : vector<64x64xf32>, vector<64x8xf32>, vector<64x8xf32> -> vector<64x8xf32>
    %172 = tpu.concatenate %120, %137, %154, %171 in 1 : vector<64x8xf32>, vector<64x8xf32>, vector<64x8xf32>, vector<64x8xf32> -> vector<64x32xf32>
    %173 = tpu.concatenate %103, %172 in 0 : vector<64x32xf32>, vector<64x32xf32> -> vector<128x32xf32>
    %c0_53 = arith.constant 0 : index
    %c0_54 = arith.constant 0 : index
    %174 = vector.load %arg4[%c0_53, %c0_54] : memref<32x32xf32, #tpu.memory_space<vmem>>, vector<32x32xf32>
    %cst_55 = arith.constant dense<0.000000e+00> : vector<128x32xf32>
    %175 = tpu.matmul %173, %174, %cst_55 {dimension_numbers = #tpu.dot_dimension_numbers<[1], [0], [0], [1], [0, 0, 1, 1], [], []>} : vector<128x32xf32>, vector<32x32xf32>, vector<128x32xf32> -> vector<128x32xf32>
    %176 = vector.broadcast %10 : vector<1x32xf32> to vector<128x32xf32>
    %177 = arith.addf %175, %176 : vector<128x32xf32>
    %178 = tpu.transpose %177, [1, 0] : vector<128x32xf32> -> vector<32x128xf32>
    %179 = vector.extract_strided_slice %178 {offsets = [0, 0], sizes = [32, 64], strides = [1, 1]} : vector<32x128xf32> to vector<32x64xf32>
    %c0_56 = arith.constant 0 : index
    %c0_57 = arith.constant 0 : index
    %c0_58 = arith.constant 0 : index
    %180 = vector.load %arg5[%c0_56, %c0_57, %c0_58] : memref<2x32x64xf32, #tpu.memory_space<vmem>>, vector<1x32x64xf32>
    %181 = vector.shape_cast %180 : vector<1x32x64xf32> to vector<32x64xf32>
    %182 = vector.shape_cast %179 : vector<32x64xf32> to vector<1x32x64xf32>
    tpu.vector_store %arg5[%c0_56, %c0_57, %c0_58], %182 {strides = array<i32>} : memref<2x32x64xf32, #tpu.memory_space<vmem>>, vector<1x32x64xf32>,
    %183 = vector.extract_strided_slice %178 {offsets = [0, 64], sizes = [32, 64], strides = [1, 1]} : vector<32x128xf32> to vector<32x64xf32>
    %c1_59 = arith.constant 1 : index
    %c0_60 = arith.constant 0 : index
    %c0_61 = arith.constant 0 : index
    %184 = vector.load %arg5[%c1_59, %c0_60, %c0_61] : memref<2x32x64xf32, #tpu.memory_space<vmem>>, vector<1x32x64xf32>
    %185 = vector.shape_cast %184 : vector<1x32x64xf32> to vector<32x64xf32>
    %186 = vector.shape_cast %183 : vector<32x64xf32> to vector<1x32x64xf32>
    tpu.vector_store %arg5[%c1_59, %c0_60, %c0_61], %186 {strides = array<i32>} : memref<2x32x64xf32, #tpu.memory_space<vmem>>, vector<1x32x64xf32>,
    return
  }
  func.func @transform_0(%arg0: i32) -> (i32, i32, i32) {
    %c0_i32 = arith.constant 0 : i32
    %c0_i32_0 = arith.constant 0 : i32
    %c0_i32_1 = arith.constant 0 : i32
    return %arg0, %c0_i32, %c0_i32_0 : i32, i32, i32
  }
  func.func @transform_1(%arg0: i32) -> (i32, i32) {
    %c0_i32 = arith.constant 0 : i32
    %c0_i32_0 = arith.constant 0 : i32
    %c0_i32_1 = arith.constant 0 : i32
    return %c0_i32, %c0_i32_0 : i32, i32
  }
  func.func @transform_2(%arg0: i32) -> (i32, i32) {
    %c0_i32 = arith.constant 0 : i32
    %c0_i32_0 = arith.constant 0 : i32
    %c0_i32_1 = arith.constant 0 : i32
    return %c0_i32, %c0_i32_0 : i32, i32
  }
  func.func @transform_3(%arg0: i32) -> (i32, i32) {
    %c0_i32 = arith.constant 0 : i32
    %c0_i32_0 = arith.constant 0 : i32
    %c0_i32_1 = arith.constant 0 : i32
    return %c0_i32, %c0_i32_0 : i32, i32
  }
  func.func @transform_4(%arg0: i32) -> (i32, i32, i32) {
    %c0_i32 = arith.constant 0 : i32
    %c0_i32_0 = arith.constant 0 : i32
    %c0_i32_1 = arith.constant 0 : i32
    return %arg0, %c0_i32, %c0_i32_0 : i32, i32, i32
  }
}

</mosaic_0001>

<llo_original>
// kernel: tpu_custom_call.1
$region0: #{tpu_custom_call.1}
  #allocation0 [shape = 'u32[]', space=smem, size = 0x4, offset = 0x4, fixed_abs, tag = 'smem constant byte address 0x4 - core index']
  #allocation1 [shape = 'u32[144,128]{1,0:T(1,128)}', space=vmem, size = 0x12000, scoped, tag = 'internal scratch']
  %s0 = inlined_call_operand.hbm [shape: f32[2,32,64], index: 0, kind: input, shape index: {}]
  %s1 = inlined_call_operand.hbm [shape: f32[3,32], index: 1, kind: input, shape index: {}]
  %s2 = inlined_call_operand.hbm [shape: f32[32,96], index: 2, kind: input, shape index: {}]
  %s3 = inlined_call_operand.hbm [shape: f32[32,32], index: 3, kind: input, shape index: {}]
  %s4 = inlined_call_operand.hbm [shape: f32[2,32,64], index: 4, kind: output, shape index: {}]
  %s5 = sld [smem:[#allocation0]]
  $region42: #{tpu_custom_call.1} parent=0
    _
  %s7 = ssub.s32 1, %s5
  %s8 = scalar_select 0, %s7, %s5
  $region1: #{tpu_custom_call.1} parent=0
    #allocation2 [shape = 'u8[32768]{0}', space=vmem, size = 0x8000, scoped, tag = 'input window, operand 0, single buffered']
    #allocation3 [shape = 's32[1]{0}', space=sflag, size = 0x4, scoped, tag = 'scoped memory for tpu_custom_call.1']
    #allocation4 [shape = 's32[1]{0}', space=sflag, size = 0x4, scoped, tag = 'scoped memory for tpu_custom_call.1']
    #allocation5 [shape = 'u8[2048]{0}', space=vmem, size = 0x800, scoped, tag = 'input window, operand 1, single buffered']
    #allocation6 [shape = 's32[1]{0}', space=sflag, size = 0x4, scoped, tag = 'scoped memory for tpu_custom_call.1']
    #allocation7 [shape = 'u8[16384]{0}', space=vmem, size = 0x4000, scoped, tag = 'input window, operand 2, single buffered']
    #allocation8 [shape = 'u8[16384]{0}', space=vmem, size = 0x4000, scoped, tag = 'input window, operand 3, single buffered']
    #allocation9 [shape = 's32[1]{0}', space=sflag, size = 0x4, scoped, tag = 'scoped memory for tpu_custom_call.1']
    #allocation10 [shape = 'u8[32768]{0}', space=vmem, size = 0x8000, scoped, tag = 'output window, operand 0, single buffered']
    %9 = vsyncpa [#allocation3], 0
    %10 = vsyncpa [#allocation6], 0
    %11 = vsyncpa [#allocation9], 0
    %12 = vsyncpa [#allocation4], 0
    // Predicated region
    $region2: #{tpu_custom_call.1} parent=1 // pred_check
      _
    $region3: #{tpu_custom_call.1} parent=1 // pred_check_branch
      %14 = sbr.rel (0) target = $region5
    $region4: #{tpu_custom_call.1} parent=1 // pred_region
      %s16 = ssub.s32 1024, 1024
      %17 = vsyncadd [#allocation3], %s16
      %s18 = sshll.u32 [#allocation2], 4
      %s19 = int_to_ptr.vmem [resolvable:$true] %s18
      %24 = dma.hbm_to_vmem [thread:$0]  %s0, 1024, %s19, [#allocation3], 128, 128, 8
    $region5: #{tpu_custom_call.1} parent=1 // pred_fallthru
      _
    // Predicated region
    $region6: #{tpu_custom_call.1} parent=1 // pred_check
      _
    $region7: #{tpu_custom_call.1} parent=1 // pred_check_branch
      %26 = sbr.rel (0) target = $region9
    $region8: #{tpu_custom_call.1} parent=1 // pred_region
      %s28 = ssub.s32 64, 64
      %29 = vsyncadd [#allocation6], %s28
      %s31 = sshll.u32 [#allocation5], 4
      %s32 = int_to_ptr.vmem [resolvable:$true] %s31
      %34 = dma.hbm_to_vmem [thread:$0]  %s1, 64, %s32, [#allocation6]
    $region9: #{tpu_custom_call.1} parent=1 // pred_fallthru
      _
    // Predicated region
    $region10: #{tpu_custom_call.1} parent=1 // pred_check
      _
    $region11: #{tpu_custom_call.1} parent=1 // pred_check_branch
      %36 = sbr.rel (0) target = $region13
    $region12: #{tpu_custom_call.1} parent=1 // pred_region
      %s38 = ssub.s32 512, 512
      %39 = vsyncadd [#allocation6], %s38
      %s40 = sshll.u32 [#allocation7], 4
      %s41 = int_to_ptr.vmem [resolvable:$true] %s40
      %46 = dma.hbm_to_vmem [thread:$0]  %s2, 512, %s41, [#allocation6], 128, 128, 8
    $region13: #{tpu_custom_call.1} parent=1 // pred_fallthru
      _
    // Predicated region
    $region14: #{tpu_custom_call.1} parent=1 // pred_check
      _
    $region15: #{tpu_custom_call.1} parent=1 // pred_check_branch
      %48 = sbr.rel (0) target = $region17
    $region16: #{tpu_custom_call.1} parent=1 // pred_region
      %s50 = ssub.s32 512, 512
      %51 = vsyncadd [#allocation9], %s50
      %s52 = sshll.u32 [#allocation8], 4
      %s53 = int_to_ptr.vmem [resolvable:$true] %s52
      %58 = dma.hbm_to_vmem [thread:$0]  %s3, 512, %s53, [#allocation9], 128, 128, 8
    $region17: #{tpu_custom_call.1} parent=1 // pred_fallthru
      _
    // Predicated region
    $region18: #{tpu_custom_call.1} parent=1 // pred_check
      _
    $region19: #{tpu_custom_call.1} parent=1 // pred_check_branch
      %60 = sbr.rel (0) target = $region21
    $region20: #{tpu_custom_call.1} parent=1 // pred_region
      %61 = dma.done [#allocation3], 1024
    $region21: #{tpu_custom_call.1} parent=1 // pred_fallthru
      _
    // Predicated region
    $region22: #{tpu_custom_call.1} parent=1 // pred_check
      _
    $region23: #{tpu_custom_call.1} parent=1 // pred_check_branch
      %63 = sbr.rel (0) target = $region25
    $region24: #{tpu_custom_call.1} parent=1 // pred_region
      %64 = dma.done [#allocation6], 64
    $region25: #{tpu_custom_call.1} parent=1 // pred_fallthru
      _
    // Predicated region
    $region26: #{tpu_custom_call.1} parent=1 // pred_check
      _
    $region27: #{tpu_custom_call.1} parent=1 // pred_check_branch
      %66 = sbr.rel (0) target = $region29
    $region28: #{tpu_custom_call.1} parent=1 // pred_region
      %67 = dma.done [#allocation6], 512
    $region29: #{tpu_custom_call.1} parent=1 // pred_fallthru
      _
    // Predicated region
    $region30: #{tpu_custom_call.1} parent=1 // pred_check
      _
    $region31: #{tpu_custom_call.1} parent=1 // pred_check_branch
      %69 = sbr.rel (0) target = $region33
    $region32: #{tpu_custom_call.1} parent=1 // pred_region
      %70 = dma.done [#allocation9], 512
    $region33: #{tpu_custom_call.1} parent=1 // pred_fallthru
      _
    %v71 = vld [vmem:[#allocation2] sm:$0xff]
    %v72 = vld [vmem:[#allocation2 + $0x8] sm:$0xff]
    %v73 = vld [vmem:[#allocation2 + $0x10] sm:$0xff]
    %v74 = vld [vmem:[#allocation2 + $0x18] sm:$0xff]
    %75 = vxpose.xlu0.b32.start [1/16] %v71, 128
    %76 = vxpose.xlu0.b32.cont [2/16] %v72, 128
    %77 = vxpose.xlu0.b32.cont [3/16] %v73, 128
    %78 = vxpose.xlu0.b32.cont [4/16] %v74, 128
    %79 = vxpose.xlu0.b32.cont [5/16] 0.0, 128
    %80 = vxpose.xlu0.b32.cont [6/16] 0.0, 128
    %81 = vxpose.xlu0.b32.cont [7/16] 0.0, 128
    %82 = vxpose.xlu0.b32.cont [8/16] 0.0, 128
    %83 = vxpose.xlu0.b32.cont [9/16] 0.0, 128
    %84 = vxpose.xlu0.b32.cont [10/16] 0.0, 128
    %85 = vxpose.xlu0.b32.cont [11/16] 0.0, 128
    %86 = vxpose.xlu0.b32.cont [12/16] 0.0, 128
    %87 = vxpose.xlu0.b32.cont [13/16] 0.0, 128
    %88 = vxpose.xlu0.b32.cont [14/16] 0.0, 128
    %89 = vxpose.xlu0.b32.cont [15/16] 0.0, 128
    %90 = vxpose.xlu0.b32.end [16/16] 0.0, 128
    %v91 = vpop.trf.xlu0
    %v92 = vpop.trf.xlu0
    %v93 = vpop.trf.xlu0
    %v94 = vpop.trf.xlu0
    %v95 = vpop.trf.xlu0
    %v96 = vpop.trf.xlu0
    %v97 = vpop.trf.xlu0
    %v98 = vpop.trf.xlu0
    %v99 = vpop.trf.xlu0
    %v100 = vpop.trf.xlu0
    %v101 = vpop.trf.xlu0
    %v102 = vpop.trf.xlu0
    %v103 = vpop.trf.xlu0
    %v104 = vpop.trf.xlu0
    %v105 = vpop.trf.xlu0
    %v106 = vpop.trf.xlu0
    %s107 = scalar_lea.vmem [#allocation2], 32
    %v108 = vld [vmem:[%s107] sm:$0xff]
    %v109 = vld [vmem:[%s107 + $0x8] sm:$0xff]
    %v110 = vld [vmem:[%s107 + $0x10] sm:$0xff]
    %v111 = vld [vmem:[%s107 + $0x18] sm:$0xff]
    %112 = vxpose.xlu0.b32.start [1/16] %v108, 128
    %113 = vxpose.xlu0.b32.cont [2/16] %v109, 128
    %114 = vxpose.xlu0.b32.cont [3/16] %v110, 128
    %115 = vxpose.xlu0.b32.cont [4/16] %v111, 128
    %116 = vxpose.xlu0.b32.cont [5/16] 0.0, 128
    %117 = vxpose.xlu0.b32.cont [6/16] 0.0, 128
    %118 = vxpose.xlu0.b32.cont [7/16] 0.0, 128
    %119 = vxpose.xlu0.b32.cont [8/16] 0.0, 128
    %120 = vxpose.xlu0.b32.cont [9/16] 0.0, 128
    %121 = vxpose.xlu0.b32.cont [10/16] 0.0, 128
    %122 = vxpose.xlu0.b32.cont [11/16] 0.0, 128
    %123 = vxpose.xlu0.b32.cont [12/16] 0.0, 128
    %124 = vxpose.xlu0.b32.cont [13/16] 0.0, 128
    %125 = vxpose.xlu0.b32.cont [14/16] 0.0, 128
    %126 = vxpose.xlu0.b32.cont [15/16] 0.0, 128
    %127 = vxpose.xlu0.b32.end [16/16] 0.0, 128
    %v128 = vpop.trf.xlu0
    %v129 = vpop.trf.xlu0
    %v130 = vpop.trf.xlu0
    %v131 = vpop.trf.xlu0
    %v132 = vpop.trf.xlu0
    %v133 = vpop.trf.xlu0
    %v134 = vpop.trf.xlu0
    %v135 = vpop.trf.xlu0
    %v136 = vpop.trf.xlu0
    %v137 = vpop.trf.xlu0
    %v138 = vpop.trf.xlu0
    %v139 = vpop.trf.xlu0
    %v140 = vpop.trf.xlu0
    %v141 = vpop.trf.xlu0
    %v142 = vpop.trf.xlu0
    %v143 = vpop.trf.xlu0
    %v144 = vld [vmem:[#allocation5] sm:$0x7]
    %vm145 = vcmask 261120
    %v146 = vsel %vm145, %v91, 0.0
    %147 = vadd.xlane.f32.xlu0 %v146
    %v148 = vpop.xlane.xlu0 %147
    %v149 = vsel %vm145, %v92, 0.0
    %150 = vadd.xlane.f32.xlu0 %v149
    %v151 = vpop.xlane.xlu0 %150
    %v152 = vsel %vm145, %v93, 0.0
    %153 = vadd.xlane.f32.xlu0 %v152
    %v154 = vpop.xlane.xlu0 %153
    %v155 = vsel %vm145, %v94, 0.0
    %156 = vadd.xlane.f32.xlu0 %v155
    %v157 = vpop.xlane.xlu0 %156
    %v158 = vsel %vm145, %v95, 0.0
    %159 = vadd.xlane.f32.xlu0 %v158
    %v160 = vpop.xlane.xlu0 %159
    %v161 = vsel %vm145, %v96, 0.0
    %162 = vadd.xlane.f32.xlu0 %v161
    %v163 = vpop.xlane.xlu0 %162
    %v164 = vsel %vm145, %v97, 0.0
    %165 = vadd.xlane.f32.xlu0 %v164
    %v166 = vpop.xlane.xlu0 %165
    %v167 = vsel %vm145, %v98, 0.0
    %168 = vadd.xlane.f32.xlu0 %v167
    %v169 = vpop.xlane.xlu0 %168
    %v170 = vsel %vm145, %v128, 0.0
    %171 = vadd.xlane.f32.xlu0 %v170
    %v172 = vpop.xlane.xlu0 %171
    %v173 = vsel %vm145, %v129, 0.0
    %174 = vadd.xlane.f32.xlu0 %v173
    %v175 = vpop.xlane.xlu0 %174
    %v176 = vsel %vm145, %v130, 0.0
    %177 = vadd.xlane.f32.xlu0 %v176
    %v178 = vpop.xlane.xlu0 %177
    %v179 = vsel %vm145, %v131, 0.0
    %180 = vadd.xlane.f32.xlu0 %v179
    %v181 = vpop.xlane.xlu0 %180
    %v182 = vsel %vm145, %v132, 0.0
    %183 = vadd.xlane.f32.xlu0 %v182
    %v184 = vpop.xlane.xlu0 %183
    %v185 = vsel %vm145, %v133, 0.0
    %186 = vadd.xlane.f32.xlu0 %v185
    %v187 = vpop.xlane.xlu0 %186
    %v188 = vsel %vm145, %v134, 0.0
    %189 = vadd.xlane.f32.xlu0 %v188
    %v190 = vpop.xlane.xlu0 %189
    %v191 = vsel %vm145, %v135, 0.0
    %192 = vadd.xlane.f32.xlu0 %v191
    %v193 = vpop.xlane.xlu0 %192
    %v194 = vrcp.pop 32.0
    %v195 = vmul.f32 %v148, %v194
    %v196 = vmul.f32 %v151, %v194
    %v197 = vmul.f32 %v154, %v194
    %v198 = vmul.f32 %v157, %v194
    %v199 = vmul.f32 %v160, %v194
    %v200 = vmul.f32 %v163, %v194
    %v201 = vmul.f32 %v166, %v194
    %v202 = vmul.f32 %v169, %v194
    %v203 = vmul.f32 %v172, %v194
    %v204 = vmul.f32 %v175, %v194
    %v205 = vmul.f32 %v178, %v194
    %v206 = vmul.f32 %v181, %v194
    %v207 = vmul.f32 %v184, %v194
    %v208 = vmul.f32 %v187, %v194
    %v209 = vmul.f32 %v190, %v194
    %v210 = vmul.f32 %v193, %v194
    %v211 = vsub.f32 %v91, %v195
    %v212 = vsub.f32 %v92, %v196
    %v213 = vsub.f32 %v93, %v197
    %v214 = vsub.f32 %v94, %v198
    %v215 = vsub.f32 %v95, %v199
    %v216 = vsub.f32 %v96, %v200
    %v217 = vsub.f32 %v97, %v201
    %v218 = vsub.f32 %v98, %v202
    %v219 = vsub.f32 %v128, %v203
    %v220 = vsub.f32 %v129, %v204
    %v221 = vsub.f32 %v130, %v205
    %v222 = vsub.f32 %v131, %v206
    %v223 = vsub.f32 %v132, %v207
    %v224 = vsub.f32 %v133, %v208
    %v225 = vsub.f32 %v134, %v209
    %v226 = vsub.f32 %v135, %v210
    %v227 = vmul.f32 %v211, %v211
    %v228 = vmul.f32 %v212, %v212
    %v229 = vmul.f32 %v213, %v213
    %v230 = vmul.f32 %v214, %v214
    %v231 = vmul.f32 %v215, %v215
    %v232 = vmul.f32 %v216, %v216
    %v233 = vmul.f32 %v217, %v217
    %v234 = vmul.f32 %v218, %v218
    %v235 = vmul.f32 %v219, %v219
    %v236 = vmul.f32 %v220, %v220
    %v237 = vmul.f32 %v221, %v221
    %v238 = vmul.f32 %v222, %v222
    %v239 = vmul.f32 %v223, %v223
    %v240 = vmul.f32 %v224, %v224
    %v241 = vmul.f32 %v225, %v225
    %v242 = vmul.f32 %v226, %v226
    %v243 = vsel %vm145, %v227, 0.0
    %244 = vadd.xlane.f32.xlu0 %v243
    %v245 = vpop.xlane.xlu0 %244
    %v246 = vsel %vm145, %v228, 0.0
    %247 = vadd.xlane.f32.xlu0 %v246
    %v248 = vpop.xlane.xlu0 %247
    %v249 = vsel %vm145, %v229, 0.0
    %250 = vadd.xlane.f32.xlu0 %v249
    %v251 = vpop.xlane.xlu0 %250
    %v252 = vsel %vm145, %v230, 0.0
    %253 = vadd.xlane.f32.xlu0 %v252
    %v254 = vpop.xlane.xlu0 %253
    %v255 = vsel %vm145, %v231, 0.0
    %256 = vadd.xlane.f32.xlu0 %v255
    %v257 = vpop.xlane.xlu0 %256
    %v258 = vsel %vm145, %v232, 0.0
    %259 = vadd.xlane.f32.xlu0 %v258
    %v260 = vpop.xlane.xlu0 %259
    %v261 = vsel %vm145, %v233, 0.0
    %262 = vadd.xlane.f32.xlu0 %v261
    %v263 = vpop.xlane.xlu0 %262
    %v264 = vsel %vm145, %v234, 0.0
    %265 = vadd.xlane.f32.xlu0 %v264
    %v266 = vpop.xlane.xlu0 %265
    %v267 = vsel %vm145, %v235, 0.0
    %268 = vadd.xlane.f32.xlu0 %v267
    %v269 = vpop.xlane.xlu0 %268
    %v270 = vsel %vm145, %v236, 0.0
    %271 = vadd.xlane.f32.xlu0 %v270
    %v272 = vpop.xlane.xlu0 %271
    %v273 = vsel %vm145, %v237, 0.0
    %274 = vadd.xlane.f32.xlu0 %v273
    %v275 = vpop.xlane.xlu0 %274
    %v276 = vsel %vm145, %v238, 0.0
    %277 = vadd.xlane.f32.xlu0 %v276
    %v278 = vpop.xlane.xlu0 %277
    %v279 = vsel %vm145, %v239, 0.0
    %280 = vadd.xlane.f32.xlu0 %v279
    %v281 = vpop.xlane.xlu0 %280
    %v282 = vsel %vm145, %v240, 0.0
    %283 = vadd.xlane.f32.xlu0 %v282
    %v284 = vpop.xlane.xlu0 %283
    %v285 = vsel %vm145, %v241, 0.0
    %286 = vadd.xlane.f32.xlu0 %v285
    %v287 = vpop.xlane.xlu0 %286
    %v288 = vsel %vm145, %v242, 0.0
    %289 = vadd.xlane.f32.xlu0 %v288
    %v290 = vpop.xlane.xlu0 %289
    %v291 = vmul.f32 %v245, %v194
    %v292 = vmul.f32 %v248, %v194
    %v293 = vmul.f32 %v251, %v194
    %v294 = vmul.f32 %v254, %v194
    %v295 = vmul.f32 %v257, %v194
    %v296 = vmul.f32 %v260, %v194
    %v297 = vmul.f32 %v263, %v194
    %v298 = vmul.f32 %v266, %v194
    %v299 = vmul.f32 %v269, %v194
    %v300 = vmul.f32 %v272, %v194
    %v301 = vmul.f32 %v275, %v194
    %v302 = vmul.f32 %v278, %v194
    %v303 = vmul.f32 %v281, %v194
    %v304 = vmul.f32 %v284, %v194
    %v305 = vmul.f32 %v287, %v194
    %v306 = vmul.f32 %v290, %v194
    %v307 = vadd.f32 %v291, 1e-05
    %v308 = vadd.f32 %v292, 1e-05
    %v309 = vadd.f32 %v293, 1e-05
    %v310 = vadd.f32 %v294, 1e-05
    %v311 = vadd.f32 %v295, 1e-05
    %v312 = vadd.f32 %v296, 1e-05
    %v313 = vadd.f32 %v297, 1e-05
    %v314 = vadd.f32 %v298, 1e-05
    %v315 = vadd.f32 %v299, 1e-05
    %v316 = vadd.f32 %v300, 1e-05
    %v317 = vadd.f32 %v301, 1e-05
    %v318 = vadd.f32 %v302, 1e-05
    %v319 = vadd.f32 %v303, 1e-05
    %v320 = vadd.f32 %v304, 1e-05
    %v321 = vadd.f32 %v305, 1e-05
    %v322 = vadd.f32 %v306, 1e-05
    %v323 = vrsqrt.pop %v307
    %v324 = vrsqrt.pop %v308
    %v325 = vrsqrt.pop %v309
    %v326 = vrsqrt.pop %v310
    %v327 = vrsqrt.pop %v311
    %v328 = vrsqrt.pop %v312
    %v329 = vrsqrt.pop %v313
    %v330 = vrsqrt.pop %v314
    %v331 = vrsqrt.pop %v315
    %v332 = vrsqrt.pop %v316
    %v333 = vrsqrt.pop %v317
    %v334 = vrsqrt.pop %v318
    %v335 = vrsqrt.pop %v319
    %v336 = vrsqrt.pop %v320
    %v337 = vrsqrt.pop %v321
    %v338 = vrsqrt.pop %v322
    %v339 = vmul.f32 %v211, %v323
    %v340 = vmul.f32 %v212, %v324
    %v341 = vmul.f32 %v213, %v325
    %v342 = vmul.f32 %v214, %v326
    %v343 = vmul.f32 %v215, %v327
    %v344 = vmul.f32 %v216, %v328
    %v345 = vmul.f32 %v217, %v329
    %v346 = vmul.f32 %v218, %v330
    %v347 = vmul.f32 %v219, %v331
    %v348 = vmul.f32 %v220, %v332
    %v349 = vmul.f32 %v221, %v333
    %v350 = vmul.f32 %v222, %v334
    %v351 = vmul.f32 %v223, %v335
    %v352 = vmul.f32 %v224, %v336
    %v353 = vmul.f32 %v225, %v337
    %v354 = vmul.f32 %v226, %v338
    %v355 = vlaneseq
    %v356 = vshrl.u32 %v355, 7
    %v357 = vsub.s32 0, %v356
    %v358 = vrot.slane %v144, %v357
    %v359 = vmul.f32 %v339, %v358
    %v360 = vmul.f32 %v340, %v358
    %v361 = vmul.f32 %v341, %v358
    %v362 = vmul.f32 %v342, %v358
    %v363 = vmul.f32 %v343, %v358
    %v364 = vmul.f32 %v344, %v358
    %v365 = vmul.f32 %v345, %v358
    %v366 = vmul.f32 %v346, %v358
    %v367 = vmul.f32 %v347, %v358
    %v368 = vmul.f32 %v348, %v358
    %v369 = vmul.f32 %v349, %v358
    %v370 = vmul.f32 %v350, %v358
    %v371 = vmul.f32 %v351, %v358
    %v372 = vmul.f32 %v352, %v358
    %v373 = vmul.f32 %v353, %v358
    %v374 = vmul.f32 %v354, %v358
    %v375 = vlaneseq
    %v376 = vshrl.u32 %v375, 7
    %v377 = vsub.s32 1, %v376
    %v378 = vrot.slane %v144, %v377
    %v379 = vadd.f32 %v359, %v378
    %v380 = vadd.f32 %v360, %v378
    %v381 = vadd.f32 %v361, %v378
    %v382 = vadd.f32 %v362, %v378
    %v383 = vadd.f32 %v363, %v378
    %v384 = vadd.f32 %v364, %v378
    %v385 = vadd.f32 %v365, %v378
    %v386 = vadd.f32 %v366, %v378
    %v387 = vadd.f32 %v367, %v378
    %v388 = vadd.f32 %v368, %v378
    %v389 = vadd.f32 %v369, %v378
    %v390 = vadd.f32 %v370, %v378
    %v391 = vadd.f32 %v371, %v378
    %v392 = vadd.f32 %v372, %v378
    %v393 = vadd.f32 %v373, %v378
    %v394 = vadd.f32 %v374, %v378
    %v395 = vld [vmem:[#allocation7] sm:$0xff]
    %v396 = vld [vmem:[#allocation7 + $0x8] sm:$0xff]
    %v397 = vld [vmem:[#allocation7 + $0x10] sm:$0xff]
    %v398 = vld [vmem:[#allocation7 + $0x18] sm:$0xff]
    %v400 = vsel %vm145, %v379, 0
    %v403 = vsel %vm145, %v380, 0
    %v406 = vsel %vm145, %v381, 0
    %v409 = vsel %vm145, %v382, 0
    %v412 = vsel %vm145, %v383, 0
    %v415 = vsel %vm145, %v384, 0
    %v418 = vsel %vm145, %v385, 0
    %v421 = vsel %vm145, %v386, 0
    %v424 = vsel %vm145, %v387, 0
    %v427 = vsel %vm145, %v388, 0
    %v430 = vsel %vm145, %v389, 0
    %v433 = vsel %vm145, %v390, 0
    %v436 = vsel %vm145, %v391, 0
    %v439 = vsel %vm145, %v392, 0
    %v442 = vsel %vm145, %v393, 0
    %v445 = vsel %vm145, %v394, 0
    %447 = vmatprep.subr.mxu0 0.0
    %448 = vmatpush1.msra.mxu0 %v395
    %449 = vmatprep.subr.mxu0 0.0
    %450 = vmatpush1.msra.mxu0 %v396
    %451 = vmatprep.subr.mxu0 0.0
    %452 = vmatpush1.msra.mxu0 %v397
    %453 = vmatprep.subr.mxu0 0.0
    %454 = vmatpush1.msra.mxu0 %v398
    %455 = vmatprep.subr.mxu0 0.0
    %456 = vmatpush1.msra.mxu0 0.0
    %457 = vmatprep.subr.mxu0 0.0
    %458 = vmatpush1.msra.mxu0 0.0
    %459 = vmatprep.subr.mxu0 0.0
    %460 = vmatpush1.msra.mxu0 0.0
    %461 = vmatprep.subr.mxu0 0.0
    %462 = vmatpush1.msra.mxu0 0.0
    %463 = vmatprep.subr.mxu0 0.0
    %464 = vmatpush1.msra.mxu0 0.0
    %465 = vmatprep.subr.mxu0 0.0
    %466 = vmatpush1.msra.mxu0 0.0
    %467 = vmatprep.subr.mxu0 0.0
    %468 = vmatpush1.msra.mxu0 0.0
    %469 = vmatprep.subr.mxu0 0.0
    %470 = vmatpush1.msra.mxu0 0.0
    %471 = vmatprep.subr.mxu0 0.0
    %472 = vmatpush1.msra.mxu0 0.0
    %473 = vmatprep.subr.mxu0 0.0
    %474 = vmatpush1.msra.mxu0 0.0
    %475 = vmatprep.subr.mxu0 0.0
    %476 = vmatpush1.msra.mxu0 0.0
    %477 = vmatprep.subr.mxu0 0.0
    %478 = vmatpush1.msra.mxu0 0.0
    %479 = vmatprep.subr.mxu0 0.0
    %480 = vmatpush1.msra.mxu0 0.0
    %481 = vmatprep.subr.mxu0 0.0
    %482 = vmatpush1.msra.mxu0 0.0
    %483 = vmatprep.subr.mxu0 0.0
    %484 = vmatpush1.msra.mxu0 0.0
    %485 = vmatprep.subr.mxu0 0.0
    %486 = vmatpush1.msra.mxu0 0.0
    %487 = vmatprep.subr.mxu0 0.0
    %488 = vmatpush1.msra.mxu0 0.0
    %489 = vmatprep.subr.mxu0 0.0
    %490 = vmatpush1.msra.mxu0 0.0
    %491 = vmatprep.subr.mxu0 0.0
    %492 = vmatpush1.msra.mxu0 0.0
    %493 = vmatprep.subr.mxu0 0.0
    %494 = vmatpush1.msra.mxu0 0.0
    %495 = vmatprep.subr.mxu0 0.0
    %496 = vmatpush1.msra.mxu0 0.0
    %497 = vmatprep.subr.mxu0 0.0
    %498 = vmatpush1.msra.mxu0 0.0
    %499 = vmatprep.subr.mxu0 0.0
    %500 = vmatpush1.msra.mxu0 0.0
    %501 = vmatprep.subr.mxu0 0.0
    %502 = vmatpush1.msra.mxu0 0.0
    %503 = vmatprep.subr.mxu0 0.0
    %504 = vmatpush1.msra.mxu0 0.0
    %505 = vmatprep.subr.mxu0 0.0
    %506 = vmatpush1.msra.mxu0 0.0
    %507 = vmatprep.subr.mxu0 0.0
    %508 = vmatpush1.msra.mxu0 0.0
    %509 = vmatprep.subr.mxu0 0.0
    %510 = vmatpush1.msra.mxu0 0.0
    %511 = vmatprep.mubr.f32.mxu0 0.0
    %512 = vmatmul.mubr.f32.gmra.mrb[0].mxu0 %v400
    %v513 = vpop.f32.mrb[0].mxu0
    %v514 = vadd.f32 0.0, %v513
    %v515 = vpop.f32.mrb[0].mxu0
    %516 = vmatprep.mubr.f32.mxu0 0.0
    %517 = vmatmul.mubr.f32.gmra.mrb[0].mxu0 %v403
    %v518 = vpop.f32.mrb[0].mxu0
    %v519 = vadd.f32 0.0, %v518
    %v520 = vpop.f32.mrb[0].mxu0
    %521 = vmatprep.mubr.f32.mxu0 0.0
    %522 = vmatmul.mubr.f32.gmra.mrb[0].mxu0 %v406
    %v523 = vpop.f32.mrb[0].mxu0
    %v524 = vadd.f32 0.0, %v523
    %v525 = vpop.f32.mrb[0].mxu0
    %526 = vmatprep.mubr.f32.mxu0 0.0
    %527 = vmatmul.mubr.f32.gmra.mrb[0].mxu0 %v409
    %v528 = vpop.f32.mrb[0].mxu0
    %v529 = vadd.f32 0.0, %v528
    %v530 = vpop.f32.mrb[0].mxu0
    %531 = vmatprep.mubr.f32.mxu0 0.0
    %532 = vmatmul.mubr.f32.gmra.mrb[0].mxu0 %v412
    %v533 = vpop.f32.mrb[0].mxu0
    %v534 = vadd.f32 0.0, %v533
    %v535 = vpop.f32.mrb[0].mxu0
    %536 = vmatprep.mubr.f32.mxu0 0.0
    %537 = vmatmul.mubr.f32.gmra.mrb[0].mxu0 %v415
    %v538 = vpop.f32.mrb[0].mxu0
    %v539 = vadd.f32 0.0, %v538
    %v540 = vpop.f32.mrb[0].mxu0
    %541 = vmatprep.mubr.f32.mxu0 0.0
    %542 = vmatmul.mubr.f32.gmra.mrb[0].mxu0 %v418
    %v543 = vpop.f32.mrb[0].mxu0
    %v544 = vadd.f32 0.0, %v543
    %v545 = vpop.f32.mrb[0].mxu0
    %546 = vmatprep.mubr.f32.mxu0 0.0
    %547 = vmatmul.mubr.f32.gmra.mrb[0].mxu0 %v421
    %v548 = vpop.f32.mrb[0].mxu0
    %v549 = vadd.f32 0.0, %v548
    %v550 = vpop.f32.mrb[0].mxu0
    %551 = vmatprep.mubr.f32.mxu0 0.0
    %552 = vmatmul.mubr.f32.gmra.mrb[0].mxu0 %v424
    %v553 = vpop.f32.mrb[0].mxu0
    %v554 = vadd.f32 0.0, %v553
    %v555 = vpop.f32.mrb[0].mxu0
    %556 = vmatprep.mubr.f32.mxu0 0.0
    %557 = vmatmul.mubr.f32.gmra.mrb[0].mxu0 %v427
    %v558 = vpop.f32.mrb[0].mxu0
    %v559 = vadd.f32 0.0, %v558
    %v560 = vpop.f32.mrb[0].mxu0
    %561 = vmatprep.mubr.f32.mxu0 0.0
    %562 = vmatmul.mubr.f32.gmra.mrb[0].mxu0 %v430
    %v563 = vpop.f32.mrb[0].mxu0
    %v564 = vadd.f32 0.0, %v563
    %v565 = vpop.f32.mrb[0].mxu0
    %566 = vmatprep.mubr.f32.mxu0 0.0
    %567 = vmatmul.mubr.f32.gmra.mrb[0].mxu0 %v433
    %v568 = vpop.f32.mrb[0].mxu0
    %v569 = vadd.f32 0.0, %v568
    %v570 = vpop.f32.mrb[0].mxu0
    %571 = vmatprep.mubr.f32.mxu0 0.0
    %572 = vmatmul.mubr.f32.gmra.mrb[0].mxu0 %v436
    %v573 = vpop.f32.mrb[0].mxu0
    %v574 = vadd.f32 0.0, %v573
    %v575 = vpop.f32.mrb[0].mxu0
    %576 = vmatprep.mubr.f32.mxu0 0.0
    %577 = vmatmul.mubr.f32.gmra.mrb[0].mxu0 %v439
    %v578 = vpop.f32.mrb[0].mxu0
    %v579 = vadd.f32 0.0, %v578
    %v580 = vpop.f32.mrb[0].mxu0
    %581 = vmatprep.mubr.f32.mxu0 0.0
    %582 = vmatmul.mubr.f32.gmra.mrb[0].mxu0 %v442
    %v583 = vpop.f32.mrb[0].mxu0
    %v584 = vadd.f32 0.0, %v583
    %v585 = vpop.f32.mrb[0].mxu0
    %586 = vmatprep.mubr.f32.mxu0 0.0
    %587 = vmatmul.mubr.f32.gmra.mrb[0].mxu0 %v445
    %v588 = vpop.f32.mrb[0].mxu0
    %v589 = vadd.f32 0.0, %v588
    %v590 = vpop.f32.mrb[0].mxu0
    %591 = vdwg.mxu0
    %v592 = vmul.f32 %v514, 0.35355338
    %v593 = vmul.f32 %v519, 0.35355338
    %v594 = vmul.f32 %v524, 0.35355338
    %v595 = vmul.f32 %v529, 0.35355338
    %v596 = vmul.f32 %v534, 0.35355338
    %v597 = vmul.f32 %v539, 0.35355338
    %v598 = vmul.f32 %v544, 0.35355338
    %v599 = vmul.f32 %v549, 0.35355338
    %608 = vrot.lane.b32.xlu0 %v514, 96
    %v609 = vpop.permute.xlu0 %608
    %610 = vrot.lane.b32.xlu0 %v519, 96
    %v611 = vpop.permute.xlu0 %610
    %612 = vrot.lane.b32.xlu0 %v524, 96
    %v613 = vpop.permute.xlu0 %612
    %614 = vrot.lane.b32.xlu0 %v529, 96
    %v615 = vpop.permute.xlu0 %614
    %616 = vrot.lane.b32.xlu0 %v534, 96
    %v617 = vpop.permute.xlu0 %616
    %618 = vrot.lane.b32.xlu0 %v539, 96
    %v619 = vpop.permute.xlu0 %618
    %620 = vrot.lane.b32.xlu0 %v544, 96
    %v621 = vpop.permute.xlu0 %620
    %622 = vrot.lane.b32.xlu0 %v549, 96
    %v623 = vpop.permute.xlu0 %622
    %vm624 = vcmask 64512
    %v626 = vsel %vm624, %v592, 0
    %v629 = vsel %vm624, %v593, 0
    %v632 = vsel %vm624, %v594, 0
    %v635 = vsel %vm624, %v595, 0
    %v638 = vsel %vm624, %v596, 0
    %v641 = vsel %vm624, %v597, 0
    %v644 = vsel %vm624, %v598, 0
    %v647 = vsel %vm624, %v599, 0
    %v649 = vsel %vm624, %v609, 0
    %v651 = vsel %vm624, %v611, 0
    %v653 = vsel %vm624, %v613, 0
    %v655 = vsel %vm624, %v615, 0
    %v657 = vsel %vm624, %v617, 0
    %v659 = vsel %vm624, %v619, 0
    %v661 = vsel %vm624, %v621, 0
    %v663 = vsel %vm624, %v623, 0
    %665 = vmatprep.subr.mxu0 0.0
    %666 = vmatpush1.xpose.msra.mxu0 %v649
    %667 = vmatprep.subr.mxu0 0.0
    %668 = vmatpush1.xpose.msra.mxu0 %v651
    %669 = vmatprep.subr.mxu0 0.0
    %670 = vmatpush1.xpose.msra.mxu0 %v653
    %671 = vmatprep.subr.mxu0 0.0
    %672 = vmatpush1.xpose.msra.mxu0 %v655
    %673 = vmatprep.subr.mxu0 0.0
    %674 = vmatpush1.xpose.msra.mxu0 %v657
    %675 = vmatprep.subr.mxu0 0.0
    %676 = vmatpush1.xpose.msra.mxu0 %v659
    %677 = vmatprep.subr.mxu0 0.0
    %678 = vmatpush1.xpose.msra.mxu0 %v661
    %679 = vmatprep.subr.mxu0 0.0
    %680 = vmatpush1.xpose.msra.mxu0 %v663
    %681 = vmatprep.subr.mxu0 0.0
    %682 = vmatpush1.xpose.msra.mxu0 0.0
    %683 = vmatprep.subr.mxu0 0.0
    %684 = vmatpush1.xpose.msra.mxu0 0.0
    %685 = vmatprep.subr.mxu0 0.0
    %686 = vmatpush1.xpose.msra.mxu0 0.0
    %687 = vmatprep.subr.mxu0 0.0
    %688 = vmatpush1.xpose.msra.mxu0 0.0
    %689 = vmatprep.subr.mxu0 0.0
    %690 = vmatpush1.xpose.msra.mxu0 0.0
    %691 = vmatprep.subr.mxu0 0.0
    %692 = vmatpush1.xpose.msra.mxu0 0.0
    %693 = vmatprep.subr.mxu0 0.0
    %694 = vmatpush1.xpose.msra.mxu0 0.0
    %695 = vmatprep.subr.mxu0 0.0
    %696 = vmatpush1.xpose.msra.mxu0 0.0
    %697 = vmatprep.subr.mxu0 0.0
    %698 = vmatpush1.xpose.msra.mxu0 0.0
    %699 = vmatprep.subr.mxu0 0.0
    %700 = vmatpush1.xpose.msra.mxu0 0.0
    %701 = vmatprep.subr.mxu0 0.0
    %702 = vmatpush1.xpose.msra.mxu0 0.0
    %703 = vmatprep.subr.mxu0 0.0
    %704 = vmatpush1.xpose.msra.mxu0 0.0
    %705 = vmatprep.subr.mxu0 0.0
    %706 = vmatpush1.xpose.msra.mxu0 0.0
    %707 = vmatprep.subr.mxu0 0.0
    %708 = vmatpush1.xpose.msra.mxu0 0.0
    %709 = vmatprep.subr.mxu0 0.0
    %710 = vmatpush1.xpose.msra.mxu0 0.0
    %711 = vmatprep.subr.mxu0 0.0
    %712 = vmatpush1.xpose.msra.mxu0 0.0
    %713 = vmatprep.subr.mxu0 0.0
    %714 = vmatpush1.xpose.msra.mxu0 0.0
    %715 = vmatprep.subr.mxu0 0.0
    %716 = vmatpush1.xpose.msra.mxu0 0.0
    %717 = vmatprep.subr.mxu0 0.0
    %718 = vmatpush1.xpose.msra.mxu0 0.0
    %719 = vmatprep.subr.mxu0 0.0
    %720 = vmatpush1.xpose.msra.mxu0 0.0
    %721 = vmatprep.subr.mxu0 0.0
    %722 = vmatpush1.xpose.msra.mxu0 0.0
    %723 = vmatprep.subr.mxu0 0.0
    %724 = vmatpush1.xpose.msra.mxu0 0.0
    %725 = vmatprep.subr.mxu0 0.0
    %726 = vmatpush1.xpose.msra.mxu0 0.0
    %727 = vmatprep.subr.mxu0 0.0
    %728 = vmatpush1.xpose.msra.mxu0 0.0
    %729 = vmatprep.mubr.f32.mxu0 0.0
    %730 = vmatmul.mubr.f32.gmra.mrb[0].mxu0 %v626
    %v731 = vpop.f32.mrb[0].mxu0
    %v732 = vadd.f32 0.0, %v731
    %v733 = vpop.f32.mrb[0].mxu0
    %734 = vmatprep.mubr.f32.mxu0 0.0
    %735 = vmatmul.mubr.f32.gmra.mrb[0].mxu0 %v629
    %v736 = vpop.f32.mrb[0].mxu0
    %v737 = vadd.f32 0.0, %v736
    %v738 = vpop.f32.mrb[0].mxu0
    %739 = vmatprep.mubr.f32.mxu0 0.0
    %740 = vmatmul.mubr.f32.gmra.mrb[0].mxu0 %v632
    %v741 = vpop.f32.mrb[0].mxu0
    %v742 = vadd.f32 0.0, %v741
    %v743 = vpop.f32.mrb[0].mxu0
    %744 = vmatprep.mubr.f32.mxu0 0.0
    %745 = vmatmul.mubr.f32.gmra.mrb[0].mxu0 %v635
    %v746 = vpop.f32.mrb[0].mxu0
    %v747 = vadd.f32 0.0, %v746
    %v748 = vpop.f32.mrb[0].mxu0
    %749 = vmatprep.mubr.f32.mxu0 0.0
    %750 = vmatmul.mubr.f32.gmra.mrb[0].mxu0 %v638
    %v751 = vpop.f32.mrb[0].mxu0
    %v752 = vadd.f32 0.0, %v751
    %v753 = vpop.f32.mrb[0].mxu0
    %754 = vmatprep.mubr.f32.mxu0 0.0
    %755 = vmatmul.mubr.f32.gmra.mrb[0].mxu0 %v641
    %v756 = vpop.f32.mrb[0].mxu0
    %v757 = vadd.f32 0.0, %v756
    %v758 = vpop.f32.mrb[0].mxu0
    %759 = vmatprep.mubr.f32.mxu0 0.0
    %760 = vmatmul.mubr.f32.gmra.mrb[0].mxu0 %v644
    %v761 = vpop.f32.mrb[0].mxu0
    %v762 = vadd.f32 0.0, %v761
    %v763 = vpop.f32.mrb[0].mxu0
    %764 = vmatprep.mubr.f32.mxu0 0.0
    %765 = vmatmul.mubr.f32.gmra.mrb[0].mxu0 %v647
    %v766 = vpop.f32.mrb[0].mxu0
    %v767 = vadd.f32 0.0, %v766
    %v768 = vpop.f32.mrb[0].mxu0
    %769 = vdwg.mxu0
    %vm770 = vcmask 523264
    %v771 = vsel %vm770, %v732, -inf
    %772 = vmax.xlane.f32.xlu0 %v771
    %v773 = vpop.xlane.xlu0 %772
    %v774 = vsel %vm770, %v737, -inf
    %775 = vmax.xlane.f32.xlu0 %v774
    %v776 = vpop.xlane.xlu0 %775
    %v777 = vsel %vm770, %v742, -inf
    %778 = vmax.xlane.f32.xlu0 %v777
    %v779 = vpop.xlane.xlu0 %778
    %v780 = vsel %vm770, %v747, -inf
    %781 = vmax.xlane.f32.xlu0 %v780
    %v782 = vpop.xlane.xlu0 %781
    %v783 = vsel %vm770, %v752, -inf
    %784 = vmax.xlane.f32.xlu0 %v783
    %v785 = vpop.xlane.xlu0 %784
    %v786 = vsel %vm770, %v757, -inf
    %787 = vmax.xlane.f32.xlu0 %v786
    %v788 = vpop.xlane.xlu0 %787
    %v789 = vsel %vm770, %v762, -inf
    %790 = vmax.xlane.f32.xlu0 %v789
    %v791 = vpop.xlane.xlu0 %790
    %v792 = vsel %vm770, %v767, -inf
    %793 = vmax.xlane.f32.xlu0 %v792
    %v794 = vpop.xlane.xlu0 %793
    %v795 = vsub.f32 %v732, %v773
    %v796 = vsub.f32 %v737, %v776
    %v797 = vsub.f32 %v742, %v779
    %v798 = vsub.f32 %v747, %v782
    %v799 = vsub.f32 %v752, %v785
    %v800 = vsub.f32 %v757, %v788
    %v801 = vsub.f32 %v762, %v791
    %v802 = vsub.f32 %v767, %v794
    %v803 = vmul.f32 %v795, 1.442695
    %v804 = vpow.pop %v803
    %v805 = vmul.f32 %v796, 1.442695
    %v806 = vpow.pop %v805
    %v807 = vmul.f32 %v797, 1.442695
    %v808 = vpow.pop %v807
    %v809 = vmul.f32 %v798, 1.442695
    %v810 = vpow.pop %v809
    %v811 = vmul.f32 %v799, 1.442695
    %v812 = vpow.pop %v811
    %v813 = vmul.f32 %v800, 1.442695
    %v814 = vpow.pop %v813
    %v815 = vmul.f32 %v801, 1.442695
    %v816 = vpow.pop %v815
    %v817 = vmul.f32 %v802, 1.442695
    %v818 = vpow.pop %v817
    %v819 = vsel %vm770, %v804, 0.0
    %820 = vadd.xlane.f32.xlu0 %v819
    %v821 = vpop.xlane.xlu0 %820
    %v822 = vsel %vm770, %v806, 0.0
    %823 = vadd.xlane.f32.xlu0 %v822
    %v824 = vpop.xlane.xlu0 %823
    %v825 = vsel %vm770, %v808, 0.0
    %826 = vadd.xlane.f32.xlu0 %v825
    %v827 = vpop.xlane.xlu0 %826
    %v828 = vsel %vm770, %v810, 0.0
    %829 = vadd.xlane.f32.xlu0 %v828
    %v830 = vpop.xlane.xlu0 %829
    %v831 = vsel %vm770, %v812, 0.0
    %832 = vadd.xlane.f32.xlu0 %v831
    %v833 = vpop.xlane.xlu0 %832
    %v834 = vsel %vm770, %v814, 0.0
    %835 = vadd.xlane.f32.xlu0 %v834
    %v836 = vpop.xlane.xlu0 %835
    %v837 = vsel %vm770, %v816, 0.0
    %838 = vadd.xlane.f32.xlu0 %v837
    %v839 = vpop.xlane.xlu0 %838
    %v840 = vsel %vm770, %v818, 0.0
    %841 = vadd.xlane.f32.xlu0 %v840
    %v842 = vpop.xlane.xlu0 %841
    %v843 = vrcp.pop %v821
    %v844 = vrcp.pop %v824
    %v845 = vrcp.pop %v827
    %v846 = vrcp.pop %v830
    %v847 = vrcp.pop %v833
    %v848 = vrcp.pop %v836
    %v849 = vrcp.pop %v839
    %v850 = vrcp.pop %v842
    %v851 = vmul.f32 %v804, %v843
    %v852 = vmul.f32 %v806, %v844
    %v853 = vmul.f32 %v808, %v845
    %v854 = vmul.f32 %v810, %v846
    %v855 = vmul.f32 %v812, %v847
    %v856 = vmul.f32 %v814, %v848
    %v857 = vmul.f32 %v816, %v849
    %v858 = vmul.f32 %v818, %v850
    %859 = vrot.lane.b32.xlu0 %v514, 64
    %v860 = vpop.permute.xlu0 %859
    %861 = vrot.lane.b32.xlu0 %v519, 64
    %v862 = vpop.permute.xlu0 %861
    %863 = vrot.lane.b32.xlu0 %v524, 64
    %v864 = vpop.permute.xlu0 %863
    %865 = vrot.lane.b32.xlu0 %v529, 64
    %v866 = vpop.permute.xlu0 %865
    %867 = vrot.lane.b32.xlu0 %v534, 64
    %v868 = vpop.permute.xlu0 %867
    %869 = vrot.lane.b32.xlu0 %v539, 64
    %v870 = vpop.permute.xlu0 %869
    %871 = vrot.lane.b32.xlu0 %v544, 64
    %v872 = vpop.permute.xlu0 %871
    %873 = vrot.lane.b32.xlu0 %v549, 64
    %v874 = vpop.permute.xlu0 %873
    %v884 = vsel %vm770, %v851, 0
    %v887 = vsel %vm770, %v852, 0
    %v890 = vsel %vm770, %v853, 0
    %v893 = vsel %vm770, %v854, 0
    %v896 = vsel %vm770, %v855, 0
    %v899 = vsel %vm770, %v856, 0
    %v902 = vsel %vm770, %v857, 0
    %v905 = vsel %vm770, %v858, 0
    %907 = vmatprep.subr.mxu0 0.0
    %908 = vmatpush1.msra.mxu0 %v860
    %909 = vmatprep.subr.mxu0 0.0
    %910 = vmatpush1.msra.mxu0 %v862
    %911 = vmatprep.subr.mxu0 0.0
    %912 = vmatpush1.msra.mxu0 %v864
    %913 = vmatprep.subr.mxu0 0.0
    %914 = vmatpush1.msra.mxu0 %v866
    %915 = vmatprep.subr.mxu0 0.0
    %916 = vmatpush1.msra.mxu0 %v868
    %917 = vmatprep.subr.mxu0 0.0
    %918 = vmatpush1.msra.mxu0 %v870
    %919 = vmatprep.subr.mxu0 0.0
    %920 = vmatpush1.msra.mxu0 %v872
    %921 = vmatprep.subr.mxu0 0.0
    %922 = vmatpush1.msra.mxu0 %v874
    %923 = vmatprep.subr.mxu0 0.0
    %924 = vmatpush1.msra.mxu0 0.0
    %925 = vmatprep.subr.mxu0 0.0
    %926 = vmatpush1.msra.mxu0 0.0
    %927 = vmatprep.subr.mxu0 0.0
    %928 = vmatpush1.msra.mxu0 0.0
    %929 = vmatprep.subr.mxu0 0.0
    %930 = vmatpush1.msra.mxu0 0.0
    %931 = vmatprep.subr.mxu0 0.0
    %932 = vmatpush1.msra.mxu0 0.0
    %933 = vmatprep.subr.mxu0 0.0
    %934 = vmatpush1.msra.mxu0 0.0
    %935 = vmatprep.subr.mxu0 0.0
    %936 = vmatpush1.msra.mxu0 0.0
    %937 = vmatprep.subr.mxu0 0.0
    %938 = vmatpush1.msra.mxu0 0.0
    %939 = vmatprep.subr.mxu0 0.0
    %940 = vmatpush1.msra.mxu0 0.0
    %941 = vmatprep.subr.mxu0 0.0
    %942 = vmatpush1.msra.mxu0 0.0
    %943 = vmatprep.subr.mxu0 0.0
    %944 = vmatpush1.msra.mxu0 0.0
    %945 = vmatprep.subr.mxu0 0.0
    %946 = vmatpush1.msra.mxu0 0.0
    %947 = vmatprep.subr.mxu0 0.0
    %948 = vmatpush1.msra.mxu0 0.0
    %949 = vmatprep.subr.mxu0 0.0
    %950 = vmatpush1.msra.mxu0 0.0
    %951 = vmatprep.subr.mxu0 0.0
    %952 = vmatpush1.msra.mxu0 0.0
    %953 = vmatprep.subr.mxu0 0.0
    %954 = vmatpush1.msra.mxu0 0.0
    %955 = vmatprep.subr.mxu0 0.0
    %956 = vmatpush1.msra.mxu0 0.0
    %957 = vmatprep.subr.mxu0 0.0
    %958 = vmatpush1.msra.mxu0 0.0
    %959 = vmatprep.subr.mxu0 0.0
    %960 = vmatpush1.msra.mxu0 0.0
    %961 = vmatprep.subr.mxu0 0.0
    %962 = vmatpush1.msra.mxu0 0.0
    %963 = vmatprep.subr.mxu0 0.0
    %964 = vmatpush1.msra.mxu0 0.0
    %965 = vmatprep.subr.mxu0 0.0
    %966 = vmatpush1.msra.mxu0 0.0
    %967 = vmatprep.subr.mxu0 0.0
    %968 = vmatpush1.msra.mxu0 0.0
    %969 = vmatprep.subr.mxu0 0.0
    %970 = vmatpush1.msra.mxu0 0.0
    %971 = vmatprep.mubr.f32.mxu0 0.0
    %972 = vmatmul.mubr.f32.gmra.mrb[0].mxu0 %v884
    %v973 = vpop.f32.mrb[0].mxu0
    %v974 = vadd.f32 0.0, %v973
    %v975 = vpop.f32.mrb[0].mxu0
    %976 = vmatprep.mubr.f32.mxu0 0.0
    %977 = vmatmul.mubr.f32.gmra.mrb[0].mxu0 %v887
    %v978 = vpop.f32.mrb[0].mxu0
    %v979 = vadd.f32 0.0, %v978
    %v980 = vpop.f32.mrb[0].mxu0
    %981 = vmatprep.mubr.f32.mxu0 0.0
    %982 = vmatmul.mubr.f32.gmra.mrb[0].mxu0 %v890
    %v983 = vpop.f32.mrb[0].mxu0
    %v984 = vadd.f32 0.0, %v983
    %v985 = vpop.f32.mrb[0].mxu0
    %986 = vmatprep.mubr.f32.mxu0 0.0
    %987 = vmatmul.mubr.f32.gmra.mrb[0].mxu0 %v893
    %v988 = vpop.f32.mrb[0].mxu0
    %v989 = vadd.f32 0.0, %v988
    %v990 = vpop.f32.mrb[0].mxu0
    %991 = vmatprep.mubr.f32.mxu0 0.0
    %992 = vmatmul.mubr.f32.gmra.mrb[0].mxu0 %v896
    %v993 = vpop.f32.mrb[0].mxu0
    %v994 = vadd.f32 0.0, %v993
    %v995 = vpop.f32.mrb[0].mxu0
    %996 = vmatprep.mubr.f32.mxu0 0.0
    %997 = vmatmul.mubr.f32.gmra.mrb[0].mxu0 %v899
    %v998 = vpop.f32.mrb[0].mxu0
    %v999 = vadd.f32 0.0, %v998
    %v1000 = vpop.f32.mrb[0].mxu0
    %1001 = vmatprep.mubr.f32.mxu0 0.0
    %1002 = vmatmul.mubr.f32.gmra.mrb[0].mxu0 %v902
    %v1003 = vpop.f32.mrb[0].mxu0
    %v1004 = vadd.f32 0.0, %v1003
    %v1005 = vpop.f32.mrb[0].mxu0
    %1006 = vmatprep.mubr.f32.mxu0 0.0
    %1007 = vmatmul.mubr.f32.gmra.mrb[0].mxu0 %v905
    %v1008 = vpop.f32.mrb[0].mxu0
    %v1009 = vadd.f32 0.0, %v1008
    %v1010 = vpop.f32.mrb[0].mxu0
    %1011 = vdwg.mxu0
    %1012 = vrot.lane.b32.xlu0 %v592, 120
    %v1013 = vpop.permute.xlu0 %1012
    %1014 = vrot.lane.b32.xlu0 %v593, 120
    %v1015 = vpop.permute.xlu0 %1014
    %1016 = vrot.lane.b32.xlu0 %v594, 120
    %v1017 = vpop.permute.xlu0 %1016
    %1018 = vrot.lane.b32.xlu0 %v595, 120
    %v1019 = vpop.permute.xlu0 %1018
    %1020 = vrot.lane.b32.xlu0 %v596, 120
    %v1021 = vpop.permute.xlu0 %1020
    %1022 = vrot.lane.b32.xlu0 %v597, 120
    %v1023 = vpop.permute.xlu0 %1022
    %1024 = vrot.lane.b32.xlu0 %v598, 120
    %v1025 = vpop.permute.xlu0 %1024
    %1026 = vrot.lane.b32.xlu0 %v599, 120
    %v1027 = vpop.permute.xlu0 %1026
    %1028 = vrot.lane.b32.xlu0 %v514, 88
    %v1029 = vpop.permute.xlu0 %1028
    %1030 = vrot.lane.b32.xlu0 %v519, 88
    %v1031 = vpop.permute.xlu0 %1030
    %1032 = vrot.lane.b32.xlu0 %v524, 88
    %v1033 = vpop.permute.xlu0 %1032
    %1034 = vrot.lane.b32.xlu0 %v529, 88
    %v1035 = vpop.permute.xlu0 %1034
    %1036 = vrot.lane.b32.xlu0 %v534, 88
    %v1037 = vpop.permute.xlu0 %1036
    %1038 = vrot.lane.b32.xlu0 %v539, 88
    %v1039 = vpop.permute.xlu0 %1038
    %1040 = vrot.lane.b32.xlu0 %v544, 88
    %v1041 = vpop.permute.xlu0 %1040
    %1042 = vrot.lane.b32.xlu0 %v549, 88
    %v1043 = vpop.permute.xlu0 %1042
    %v1044 = vsel %vm624, %v1013, 0
    %v1046 = vsel %vm624, %v1015, 0
    %v1048 = vsel %vm624, %v1017, 0
    %v1050 = vsel %vm624, %v1019, 0
    %v1052 = vsel %vm624, %v1021, 0
    %v1054 = vsel %vm624, %v1023, 0
    %v1056 = vsel %vm624, %v1025, 0
    %v1058 = vsel %vm624, %v1027, 0
    %v1060 = vsel %vm624, %v1029, 0
    %v1062 = vsel %vm624, %v1031, 0
    %v1064 = vsel %vm624, %v1033, 0
    %v1066 = vsel %vm624, %v1035, 0
    %v1068 = vsel %vm624, %v1037, 0
    %v1070 = vsel %vm624, %v1039, 0
    %v1072 = vsel %vm624, %v1041, 0
    %v1074 = vsel %vm624, %v1043, 0
    %1076 = vmatprep.subr.mxu0 0.0
    %1077 = vmatpush1.xpose.msra.mxu0 %v1060
    %1078 = vmatprep.subr.mxu0 0.0
    %1079 = vmatpush1.xpose.msra.mxu0 %v1062
    %1080 = vmatprep.subr.mxu0 0.0
    %1081 = vmatpush1.xpose.msra.mxu0 %v1064
    %1082 = vmatprep.subr.mxu0 0.0
    %1083 = vmatpush1.xpose.msra.mxu0 %v1066
    %1084 = vmatprep.subr.mxu0 0.0
    %1085 = vmatpush1.xpose.msra.mxu0 %v1068
    %1086 = vmatprep.subr.mxu0 0.0
    %1087 = vmatpush1.xpose.msra.mxu0 %v1070
    %1088 = vmatprep.subr.mxu0 0.0
    %1089 = vmatpush1.xpose.msra.mxu0 %v1072
    %1090 = vmatprep.subr.mxu0 0.0
    %1091 = vmatpush1.xpose.msra.mxu0 %v1074
    %1092 = vmatprep.subr.mxu0 0.0
    %1093 = vmatpush1.xpose.msra.mxu0 0.0
    %1094 = vmatprep.subr.mxu0 0.0
    %1095 = vmatpush1.xpose.msra.mxu0 0.0
    %1096 = vmatprep.subr.mxu0 0.0
    %1097 = vmatpush1.xpose.msra.mxu0 0.0
    %1098 = vmatprep.subr.mxu0 0.0
    %1099 = vmatpush1.xpose.msra.mxu0 0.0
    %1100 = vmatprep.subr.mxu0 0.0
    %1101 = vmatpush1.xpose.msra.mxu0 0.0
    %1102 = vmatprep.subr.mxu0 0.0
    %1103 = vmatpush1.xpose.msra.mxu0 0.0
    %1104 = vmatprep.subr.mxu0 0.0
    %1105 = vmatpush1.xpose.msra.mxu0 0.0
    %1106 = vmatprep.subr.mxu0 0.0
    %1107 = vmatpush1.xpose.msra.mxu0 0.0
    %1108 = vmatprep.subr.mxu0 0.0
    %1109 = vmatpush1.xpose.msra.mxu0 0.0
    %1110 = vmatprep.subr.mxu0 0.0
    %1111 = vmatpush1.xpose.msra.mxu0 0.0
    %1112 = vmatprep.subr.mxu0 0.0
    %1113 = vmatpush1.xpose.msra.mxu0 0.0
    %1114 = vmatprep.subr.mxu0 0.0
    %1115 = vmatpush1.xpose.msra.mxu0 0.0
    %1116 = vmatprep.subr.mxu0 0.0
    %1117 = vmatpush1.xpose.msra.mxu0 0.0
    %1118 = vmatprep.subr.mxu0 0.0
    %1119 = vmatpush1.xpose.msra.mxu0 0.0
    %1120 = vmatprep.subr.mxu0 0.0
    %1121 = vmatpush1.xpose.msra.mxu0 0.0
    %1122 = vmatprep.subr.mxu0 0.0
    %1123 = vmatpush1.xpose.msra.mxu0 0.0
    %1124 = vmatprep.subr.mxu0 0.0
    %1125 = vmatpush1.xpose.msra.mxu0 0.0
    %1126 = vmatprep.subr.mxu0 0.0
    %1127 = vmatpush1.xpose.msra.mxu0 0.0
    %1128 = vmatprep.subr.mxu0 0.0
    %1129 = vmatpush1.xpose.msra.mxu0 0.0
    %1130 = vmatprep.subr.mxu0 0.0
    %1131 = vmatpush1.xpose.msra.mxu0 0.0
    %1132 = vmatprep.subr.mxu0 0.0
    %1133 = vmatpush1.xpose.msra.mxu0 0.0
    %1134 = vmatprep.subr.mxu0 0.0
    %1135 = vmatpush1.xpose.msra.mxu0 0.0
    %1136 = vmatprep.subr.mxu0 0.0
    %1137 = vmatpush1.xpose.msra.mxu0 0.0
    %1138 = vmatprep.subr.mxu0 0.0
    %1139 = vmatpush1.xpose.msra.mxu0 0.0
    %1140 = vmatprep.mubr.f32.mxu0 0.0
    %1141 = vmatmul.mubr.f32.gmra.mrb[0].mxu0 %v1044
    %v1142 = vpop.f32.mrb[0].mxu0
    %v1143 = vadd.f32 0.0, %v1142
    %v1144 = vpop.f32.mrb[0].mxu0
    %1145 = vmatprep.mubr.f32.mxu0 0.0
    %1146 = vmatmul.mubr.f32.gmra.mrb[0].mxu0 %v1046
    %v1147 = vpop.f32.mrb[0].mxu0
    %v1148 = vadd.f32 0.0, %v1147
    %v1149 = vpop.f32.mrb[0].mxu0
    %1150 = vmatprep.mubr.f32.mxu0 0.0
    %1151 = vmatmul.mubr.f32.gmra.mrb[0].mxu0 %v1048
    %v1152 = vpop.f32.mrb[0].mxu0
    %v1153 = vadd.f32 0.0, %v1152
    %v1154 = vpop.f32.mrb[0].mxu0
    %1155 = vmatprep.mubr.f32.mxu0 0.0
    %1156 = vmatmul.mubr.f32.gmra.mrb[0].mxu0 %v1050
    %v1157 = vpop.f32.mrb[0].mxu0
    %v1158 = vadd.f32 0.0, %v1157
    %v1159 = vpop.f32.mrb[0].mxu0
    %1160 = vmatprep.mubr.f32.mxu0 0.0
    %1161 = vmatmul.mubr.f32.gmra.mrb[0].mxu0 %v1052
    %v1162 = vpop.f32.mrb[0].mxu0
    %v1163 = vadd.f32 0.0, %v1162
    %v1164 = vpop.f32.mrb[0].mxu0
    %1165 = vmatprep.mubr.f32.mxu0 0.0
    %1166 = vmatmul.mubr.f32.gmra.mrb[0].mxu0 %v1054
    %v1167 = vpop.f32.mrb[0].mxu0
    %v1168 = vadd.f32 0.0, %v1167
    %v1169 = vpop.f32.mrb[0].mxu0
    %1170 = vmatprep.mubr.f32.mxu0 0.0
    %1171 = vmatmul.mubr.f32.gmra.mrb[0].mxu0 %v1056
    %v1172 = vpop.f32.mrb[0].mxu0
    %v1173 = vadd.f32 0.0, %v1172
    %v1174 = vpop.f32.mrb[0].mxu0
    %1175 = vmatprep.mubr.f32.mxu0 0.0
    %1176 = vmatmul.mubr.f32.gmra.mrb[0].mxu0 %v1058
    %v1177 = vpop.f32.mrb[0].mxu0
    %v1178 = vadd.f32 0.0, %v1177
    %v1179 = vpop.f32.mrb[0].mxu0
    %1180 = vdwg.mxu0
    %v1181 = vsel %vm770, %v1143, -inf
    %1182 = vmax.xlane.f32.xlu0 %v1181
    %v1183 = vpop.xlane.xlu0 %1182
    %v1184 = vsel %vm770, %v1148, -inf
    %1185 = vmax.xlane.f32.xlu0 %v1184
    %v1186 = vpop.xlane.xlu0 %1185
    %v1187 = vsel %vm770, %v1153, -inf
    %1188 = vmax.xlane.f32.xlu0 %v1187
    %v1189 = vpop.xlane.xlu0 %1188
    %v1190 = vsel %vm770, %v1158, -inf
    %1191 = vmax.xlane.f32.xlu0 %v1190
    %v1192 = vpop.xlane.xlu0 %1191
    %v1193 = vsel %vm770, %v1163, -inf
    %1194 = vmax.xlane.f32.xlu0 %v1193
    %v1195 = vpop.xlane.xlu0 %1194
    %v1196 = vsel %vm770, %v1168, -inf
    %1197 = vmax.xlane.f32.xlu0 %v1196
    %v1198 = vpop.xlane.xlu0 %1197
    %v1199 = vsel %vm770, %v1173, -inf
    %1200 = vmax.xlane.f32.xlu0 %v1199
    %v1201 = vpop.xlane.xlu0 %1200
    %v1202 = vsel %vm770, %v1178, -inf
    %1203 = vmax.xlane.f32.xlu0 %v1202
    %v1204 = vpop.xlane.xlu0 %1203
    %v1205 = vsub.f32 %v1143, %v1183
    %v1206 = vsub.f32 %v1148, %v1186
    %v1207 = vsub.f32 %v1153, %v1189
    %v1208 = vsub.f32 %v1158, %v1192
    %v1209 = vsub.f32 %v1163, %v1195
    %v1210 = vsub.f32 %v1168, %v1198
    %v1211 = vsub.f32 %v1173, %v1201
    %v1212 = vsub.f32 %v1178, %v1204
    %v1213 = vmul.f32 %v1205, 1.442695
    %v1214 = vpow.pop %v1213
    %v1215 = vmul.f32 %v1206, 1.442695
    %v1216 = vpow.pop %v1215
    %v1217 = vmul.f32 %v1207, 1.442695
    %v1218 = vpow.pop %v1217
    %v1219 = vmul.f32 %v1208, 1.442695
    %v1220 = vpow.pop %v1219
    %v1221 = vmul.f32 %v1209, 1.442695
    %v1222 = vpow.pop %v1221
    %v1223 = vmul.f32 %v1210, 1.442695
    %v1224 = vpow.pop %v1223
    %v1225 = vmul.f32 %v1211, 1.442695
    %v1226 = vpow.pop %v1225
    %v1227 = vmul.f32 %v1212, 1.442695
    %v1228 = vpow.pop %v1227
    %v1229 = vsel %vm770, %v1214, 0.0
    %1230 = vadd.xlane.f32.xlu0 %v1229
    %v1231 = vpop.xlane.xlu0 %1230
    %v1232 = vsel %vm770, %v1216, 0.0
    %1233 = vadd.xlane.f32.xlu0 %v1232
    %v1234 = vpop.xlane.xlu0 %1233
    %v1235 = vsel %vm770, %v1218, 0.0
    %1236 = vadd.xlane.f32.xlu0 %v1235
    %v1237 = vpop.xlane.xlu0 %1236
    %v1238 = vsel %vm770, %v1220, 0.0
    %1239 = vadd.xlane.f32.xlu0 %v1238
    %v1240 = vpop.xlane.xlu0 %1239
    %v1241 = vsel %vm770, %v1222, 0.0
    %1242 = vadd.xlane.f32.xlu0 %v1241
    %v1243 = vpop.xlane.xlu0 %1242
    %v1244 = vsel %vm770, %v1224, 0.0
    %1245 = vadd.xlane.f32.xlu0 %v1244
    %v1246 = vpop.xlane.xlu0 %1245
    %v1247 = vsel %vm770, %v1226, 0.0
    %1248 = vadd.xlane.f32.xlu0 %v1247
    %v1249 = vpop.xlane.xlu0 %1248
    %v1250 = vsel %vm770, %v1228, 0.0
    %1251 = vadd.xlane.f32.xlu0 %v1250
    %v1252 = vpop.xlane.xlu0 %1251
    %v1253 = vrcp.pop %v1231
    %v1254 = vrcp.pop %v1234
    %v1255 = vrcp.pop %v1237
    %v1256 = vrcp.pop %v1240
    %v1257 = vrcp.pop %v1243
    %v1258 = vrcp.pop %v1246
    %v1259 = vrcp.pop %v1249
    %v1260 = vrcp.pop %v1252
    %v1261 = vmul.f32 %v1214, %v1253
    %v1262 = vmul.f32 %v1216, %v1254
    %v1263 = vmul.f32 %v1218, %v1255
    %v1264 = vmul.f32 %v1220, %v1256
    %v1265 = vmul.f32 %v1222, %v1257
    %v1266 = vmul.f32 %v1224, %v1258
    %v1267 = vmul.f32 %v1226, %v1259
    %v1268 = vmul.f32 %v1228, %v1260
    %1269 = vrot.lane.b32.xlu0 %v514, 56
    %v1270 = vpop.permute.xlu0 %1269
    %1271 = vrot.lane.b32.xlu0 %v519, 56
    %v1272 = vpop.permute.xlu0 %1271
    %1273 = vrot.lane.b32.xlu0 %v524, 56
    %v1274 = vpop.permute.xlu0 %1273
    %1275 = vrot.lane.b32.xlu0 %v529, 56
    %v1276 = vpop.permute.xlu0 %1275
    %1277 = vrot.lane.b32.xlu0 %v534, 56
    %v1278 = vpop.permute.xlu0 %1277
    %1279 = vrot.lane.b32.xlu0 %v539, 56
    %v1280 = vpop.permute.xlu0 %1279
    %1281 = vrot.lane.b32.xlu0 %v544, 56
    %v1282 = vpop.permute.xlu0 %1281
    %1283 = vrot.lane.b32.xlu0 %v549, 56
    %v1284 = vpop.permute.xlu0 %1283
    %v1294 = vsel %vm770, %v1261, 0
    %v1297 = vsel %vm770, %v1262, 0
    %v1300 = vsel %vm770, %v1263, 0
    %v1303 = vsel %vm770, %v1264, 0
    %v1306 = vsel %vm770, %v1265, 0
    %v1309 = vsel %vm770, %v1266, 0
    %v1312 = vsel %vm770, %v1267, 0
    %v1315 = vsel %vm770, %v1268, 0
    %1317 = vmatprep.subr.mxu0 0.0
    %1318 = vmatpush1.msra.mxu0 %v1270
    %1319 = vmatprep.subr.mxu0 0.0
    %1320 = vmatpush1.msra.mxu0 %v1272
    %1321 = vmatprep.subr.mxu0 0.0
    %1322 = vmatpush1.msra.mxu0 %v1274
    %1323 = vmatprep.subr.mxu0 0.0
    %1324 = vmatpush1.msra.mxu0 %v1276
    %1325 = vmatprep.subr.mxu0 0.0
    %1326 = vmatpush1.msra.mxu0 %v1278
    %1327 = vmatprep.subr.mxu0 0.0
    %1328 = vmatpush1.msra.mxu0 %v1280
    %1329 = vmatprep.subr.mxu0 0.0
    %1330 = vmatpush1.msra.mxu0 %v1282
    %1331 = vmatprep.subr.mxu0 0.0
    %1332 = vmatpush1.msra.mxu0 %v1284
    %1333 = vmatprep.subr.mxu0 0.0
    %1334 = vmatpush1.msra.mxu0 0.0
    %1335 = vmatprep.subr.mxu0 0.0
    %1336 = vmatpush1.msra.mxu0 0.0
    %1337 = vmatprep.subr.mxu0 0.0
    %1338 = vmatpush1.msra.mxu0 0.0
    %1339 = vmatprep.subr.mxu0 0.0
    %1340 = vmatpush1.msra.mxu0 0.0
    %1341 = vmatprep.subr.mxu0 0.0
    %1342 = vmatpush1.msra.mxu0 0.0
    %1343 = vmatprep.subr.mxu0 0.0
    %1344 = vmatpush1.msra.mxu0 0.0
    %1345 = vmatprep.subr.mxu0 0.0
    %1346 = vmatpush1.msra.mxu0 0.0
    %1347 = vmatprep.subr.mxu0 0.0
    %1348 = vmatpush1.msra.mxu0 0.0
    %1349 = vmatprep.subr.mxu0 0.0
    %1350 = vmatpush1.msra.mxu0 0.0
    %1351 = vmatprep.subr.mxu0 0.0
    %1352 = vmatpush1.msra.mxu0 0.0
    %1353 = vmatprep.subr.mxu0 0.0
    %1354 = vmatpush1.msra.mxu0 0.0
    %1355 = vmatprep.subr.mxu0 0.0
    %1356 = vmatpush1.msra.mxu0 0.0
    %1357 = vmatprep.subr.mxu0 0.0
    %1358 = vmatpush1.msra.mxu0 0.0
    %1359 = vmatprep.subr.mxu0 0.0
    %1360 = vmatpush1.msra.mxu0 0.0
    %1361 = vmatprep.subr.mxu0 0.0
    %1362 = vmatpush1.msra.mxu0 0.0
    %1363 = vmatprep.subr.mxu0 0.0
    %1364 = vmatpush1.msra.mxu0 0.0
    %1365 = vmatprep.subr.mxu0 0.0
    %1366 = vmatpush1.msra.mxu0 0.0
    %1367 = vmatprep.subr.mxu0 0.0
    %1368 = vmatpush1.msra.mxu0 0.0
    %1369 = vmatprep.subr.mxu0 0.0
    %1370 = vmatpush1.msra.mxu0 0.0
    %1371 = vmatprep.subr.mxu0 0.0
    %1372 = vmatpush1.msra.mxu0 0.0
    %1373 = vmatprep.subr.mxu0 0.0
    %1374 = vmatpush1.msra.mxu0 0.0
    %1375 = vmatprep.subr.mxu0 0.0
    %1376 = vmatpush1.msra.mxu0 0.0
    %1377 = vmatprep.subr.mxu0 0.0
    %1378 = vmatpush1.msra.mxu0 0.0
    %1379 = vmatprep.subr.mxu0 0.0
    %1380 = vmatpush1.msra.mxu0 0.0
    %1381 = vmatprep.mubr.f32.mxu0 0.0
    %1382 = vmatmul.mubr.f32.gmra.mrb[0].mxu0 %v1294
    %v1383 = vpop.f32.mrb[0].mxu0
    %v1384 = vadd.f32 0.0, %v1383
    %v1385 = vpop.f32.mrb[0].mxu0
    %1386 = vmatprep.mubr.f32.mxu0 0.0
    %1387 = vmatmul.mubr.f32.gmra.mrb[0].mxu0 %v1297
    %v1388 = vpop.f32.mrb[0].mxu0
    %v1389 = vadd.f32 0.0, %v1388
    %v1390 = vpop.f32.mrb[0].mxu0
    %1391 = vmatprep.mubr.f32.mxu0 0.0
    %1392 = vmatmul.mubr.f32.gmra.mrb[0].mxu0 %v1300
    %v1393 = vpop.f32.mrb[0].mxu0
    %v1394 = vadd.f32 0.0, %v1393
    %v1395 = vpop.f32.mrb[0].mxu0
    %1396 = vmatprep.mubr.f32.mxu0 0.0
    %1397 = vmatmul.mubr.f32.gmra.mrb[0].mxu0 %v1303
    %v1398 = vpop.f32.mrb[0].mxu0
    %v1399 = vadd.f32 0.0, %v1398
    %v1400 = vpop.f32.mrb[0].mxu0
    %1401 = vmatprep.mubr.f32.mxu0 0.0
    %1402 = vmatmul.mubr.f32.gmra.mrb[0].mxu0 %v1306
    %v1403 = vpop.f32.mrb[0].mxu0
    %v1404 = vadd.f32 0.0, %v1403
    %v1405 = vpop.f32.mrb[0].mxu0
    %1406 = vmatprep.mubr.f32.mxu0 0.0
    %1407 = vmatmul.mubr.f32.gmra.mrb[0].mxu0 %v1309
    %v1408 = vpop.f32.mrb[0].mxu0
    %v1409 = vadd.f32 0.0, %v1408
    %v1410 = vpop.f32.mrb[0].mxu0
    %1411 = vmatprep.mubr.f32.mxu0 0.0
    %1412 = vmatmul.mubr.f32.gmra.mrb[0].mxu0 %v1312
    %v1413 = vpop.f32.mrb[0].mxu0
    %v1414 = vadd.f32 0.0, %v1413
    %v1415 = vpop.f32.mrb[0].mxu0
    %1416 = vmatprep.mubr.f32.mxu0 0.0
    %1417 = vmatmul.mubr.f32.gmra.mrb[0].mxu0 %v1315
    %v1418 = vpop.f32.mrb[0].mxu0
    %v1419 = vadd.f32 0.0, %v1418
    %v1420 = vpop.f32.mrb[0].mxu0
    %1421 = vdwg.mxu0
    %1422 = vrot.lane.b32.xlu0 %v592, 112
    %v1423 = vpop.permute.xlu0 %1422
    %1424 = vrot.lane.b32.xlu0 %v593, 112
    %v1425 = vpop.permute.xlu0 %1424
    %1426 = vrot.lane.b32.xlu0 %v594, 112
    %v1427 = vpop.permute.xlu0 %1426
    %1428 = vrot.lane.b32.xlu0 %v595, 112
    %v1429 = vpop.permute.xlu0 %1428
    %1430 = vrot.lane.b32.xlu0 %v596, 112
    %v1431 = vpop.permute.xlu0 %1430
    %1432 = vrot.lane.b32.xlu0 %v597, 112
    %v1433 = vpop.permute.xlu0 %1432
    %1434 = vrot.lane.b32.xlu0 %v598, 112
    %v1435 = vpop.permute.xlu0 %1434
    %1436 = vrot.lane.b32.xlu0 %v599, 112
    %v1437 = vpop.permute.xlu0 %1436
    %1438 = vrot.lane.b32.xlu0 %v514, 80
    %v1439 = vpop.permute.xlu0 %1438
    %1440 = vrot.lane.b32.xlu0 %v519, 80
    %v1441 = vpop.permute.xlu0 %1440
    %1442 = vrot.lane.b32.xlu0 %v524, 80
    %v1443 = vpop.permute.xlu0 %1442
    %1444 = vrot.lane.b32.xlu0 %v529, 80
    %v1445 = vpop.permute.xlu0 %1444
    %1446 = vrot.lane.b32.xlu0 %v534, 80
    %v1447 = vpop.permute.xlu0 %1446
    %1448 = vrot.lane.b32.xlu0 %v539, 80
    %v1449 = vpop.permute.xlu0 %1448
    %1450 = vrot.lane.b32.xlu0 %v544, 80
    %v1451 = vpop.permute.xlu0 %1450
    %1452 = vrot.lane.b32.xlu0 %v549, 80
    %v1453 = vpop.permute.xlu0 %1452
    %v1454 = vsel %vm624, %v1423, 0
    %v1456 = vsel %vm624, %v1425, 0
    %v1458 = vsel %vm624, %v1427, 0
    %v1460 = vsel %vm624, %v1429, 0
    %v1462 = vsel %vm624, %v1431, 0
    %v1464 = vsel %vm624, %v1433, 0
    %v1466 = vsel %vm624, %v1435, 0
    %v1468 = vsel %vm624, %v1437, 0
    %v1470 = vsel %vm624, %v1439, 0
    %v1472 = vsel %vm624, %v1441, 0
    %v1474 = vsel %vm624, %v1443, 0
    %v1476 = vsel %vm624, %v1445, 0
    %v1478 = vsel %vm624, %v1447, 0
    %v1480 = vsel %vm624, %v1449, 0
    %v1482 = vsel %vm624, %v1451, 0
    %v1484 = vsel %vm624, %v1453, 0
    %1486 = vmatprep.subr.mxu0 0.0
    %1487 = vmatpush1.xpose.msra.mxu0 %v1470
    %1488 = vmatprep.subr.mxu0 0.0
    %1489 = vmatpush1.xpose.msra.mxu0 %v1472
    %1490 = vmatprep.subr.mxu0 0.0
    %1491 = vmatpush1.xpose.msra.mxu0 %v1474
    %1492 = vmatprep.subr.mxu0 0.0
    %1493 = vmatpush1.xpose.msra.mxu0 %v1476
    %1494 = vmatprep.subr.mxu0 0.0
    %1495 = vmatpush1.xpose.msra.mxu0 %v1478
    %1496 = vmatprep.subr.mxu0 0.0
    %1497 = vmatpush1.xpose.msra.mxu0 %v1480
    %1498 = vmatprep.subr.mxu0 0.0
    %1499 = vmatpush1.xpose.msra.mxu0 %v1482
    %1500 = vmatprep.subr.mxu0 0.0
    %1501 = vmatpush1.xpose.msra.mxu0 %v1484
    %1502 = vmatprep.subr.mxu0 0.0
    %1503 = vmatpush1.xpose.msra.mxu0 0.0
    %1504 = vmatprep.subr.mxu0 0.0
    %1505 = vmatpush1.xpose.msra.mxu0 0.0
    %1506 = vmatprep.subr.mxu0 0.0
    %1507 = vmatpush1.xpose.msra.mxu0 0.0
    %1508 = vmatprep.subr.mxu0 0.0
    %1509 = vmatpush1.xpose.msra.mxu0 0.0
    %1510 = vmatprep.subr.mxu0 0.0
    %1511 = vmatpush1.xpose.msra.mxu0 0.0
    %1512 = vmatprep.subr.mxu0 0.0
    %1513 = vmatpush1.xpose.msra.mxu0 0.0
    %1514 = vmatprep.subr.mxu0 0.0
    %1515 = vmatpush1.xpose.msra.mxu0 0.0
    %1516 = vmatprep.subr.mxu0 0.0
    %1517 = vmatpush1.xpose.msra.mxu0 0.0
    %1518 = vmatprep.subr.mxu0 0.0
    %1519 = vmatpush1.xpose.msra.mxu0 0.0
    %1520 = vmatprep.subr.mxu0 0.0
    %1521 = vmatpush1.xpose.msra.mxu0 0.0
    %1522 = vmatprep.subr.mxu0 0.0
    %1523 = vmatpush1.xpose.msra.mxu0 0.0
    %1524 = vmatprep.subr.mxu0 0.0
    %1525 = vmatpush1.xpose.msra.mxu0 0.0
    %1526 = vmatprep.subr.mxu0 0.0
    %1527 = vmatpush1.xpose.msra.mxu0 0.0
    %1528 = vmatprep.subr.mxu0 0.0
    %1529 = vmatpush1.xpose.msra.mxu0 0.0
    %1530 = vmatprep.subr.mxu0 0.0
    %1531 = vmatpush1.xpose.msra.mxu0 0.0
    %1532 = vmatprep.subr.mxu0 0.0
    %1533 = vmatpush1.xpose.msra.mxu0 0.0
    %1534 = vmatprep.subr.mxu0 0.0
    %1535 = vmatpush1.xpose.msra.mxu0 0.0
    %1536 = vmatprep.subr.mxu0 0.0
    %1537 = vmatpush1.xpose.msra.mxu0 0.0
    %1538 = vmatprep.subr.mxu0 0.0
    %1539 = vmatpush1.xpose.msra.mxu0 0.0
    %1540 = vmatprep.subr.mxu0 0.0
    %1541 = vmatpush1.xpose.msra.mxu0 0.0
    %1542 = vmatprep.subr.mxu0 0.0
    %1543 = vmatpush1.xpose.msra.mxu0 0.0
    %1544 = vmatprep.subr.mxu0 0.0
    %1545 = vmatpush1.xpose.msra.mxu0 0.0
    %1546 = vmatprep.subr.mxu0 0.0
    %1547 = vmatpush1.xpose.msra.mxu0 0.0
    %1548 = vmatprep.subr.mxu0 0.0
    %1549 = vmatpush1.xpose.msra.mxu0 0.0
    %1550 = vmatprep.mubr.f32.mxu0 0.0
    %1551 = vmatmul.mubr.f32.gmra.mrb[0].mxu0 %v1454
    %v1552 = vpop.f32.mrb[0].mxu0
    %v1553 = vadd.f32 0.0, %v1552
    %v1554 = vpop.f32.mrb[0].mxu0
    %1555 = vmatprep.mubr.f32.mxu0 0.0
    %1556 = vmatmul.mubr.f32.gmra.mrb[0].mxu0 %v1456
    %v1557 = vpop.f32.mrb[0].mxu0
    %v1558 = vadd.f32 0.0, %v1557
    %v1559 = vpop.f32.mrb[0].mxu0
    %1560 = vmatprep.mubr.f32.mxu0 0.0
    %1561 = vmatmul.mubr.f32.gmra.mrb[0].mxu0 %v1458
    %v1562 = vpop.f32.mrb[0].mxu0
    %v1563 = vadd.f32 0.0, %v1562
    %v1564 = vpop.f32.mrb[0].mxu0
    %1565 = vmatprep.mubr.f32.mxu0 0.0
    %1566 = vmatmul.mubr.f32.gmra.mrb[0].mxu0 %v1460
    %v1567 = vpop.f32.mrb[0].mxu0
    %v1568 = vadd.f32 0.0, %v1567
    %v1569 = vpop.f32.mrb[0].mxu0
    %1570 = vmatprep.mubr.f32.mxu0 0.0
    %1571 = vmatmul.mubr.f32.gmra.mrb[0].mxu0 %v1462
    %v1572 = vpop.f32.mrb[0].mxu0
    %v1573 = vadd.f32 0.0, %v1572
    %v1574 = vpop.f32.mrb[0].mxu0
    %1575 = vmatprep.mubr.f32.mxu0 0.0
    %1576 = vmatmul.mubr.f32.gmra.mrb[0].mxu0 %v1464
    %v1577 = vpop.f32.mrb[0].mxu0
    %v1578 = vadd.f32 0.0, %v1577
    %v1579 = vpop.f32.mrb[0].mxu0
    %1580 = vmatprep.mubr.f32.mxu0 0.0
    %1581 = vmatmul.mubr.f32.gmra.mrb[0].mxu0 %v1466
    %v1582 = vpop.f32.mrb[0].mxu0
    %v1583 = vadd.f32 0.0, %v1582
    %v1584 = vpop.f32.mrb[0].mxu0
    %1585 = vmatprep.mubr.f32.mxu0 0.0
    %1586 = vmatmul.mubr.f32.gmra.mrb[0].mxu0 %v1468
    %v1587 = vpop.f32.mrb[0].mxu0
    %v1588 = vadd.f32 0.0, %v1587
    %v1589 = vpop.f32.mrb[0].mxu0
    %1590 = vdwg.mxu0
    %v1591 = vsel %vm770, %v1553, -inf
    %1592 = vmax.xlane.f32.xlu0 %v1591
    %v1593 = vpop.xlane.xlu0 %1592
    %v1594 = vsel %vm770, %v1558, -inf
    %1595 = vmax.xlane.f32.xlu0 %v1594
    %v1596 = vpop.xlane.xlu0 %1595
    %v1597 = vsel %vm770, %v1563, -inf
    %1598 = vmax.xlane.f32.xlu0 %v1597
    %v1599 = vpop.xlane.xlu0 %1598
    %v1600 = vsel %vm770, %v1568, -inf
    %1601 = vmax.xlane.f32.xlu0 %v1600
    %v1602 = vpop.xlane.xlu0 %1601
    %v1603 = vsel %vm770, %v1573, -inf
    %1604 = vmax.xlane.f32.xlu0 %v1603
    %v1605 = vpop.xlane.xlu0 %1604
    %v1606 = vsel %vm770, %v1578, -inf
    %1607 = vmax.xlane.f32.xlu0 %v1606
    %v1608 = vpop.xlane.xlu0 %1607
    %v1609 = vsel %vm770, %v1583, -inf
    %1610 = vmax.xlane.f32.xlu0 %v1609
    %v1611 = vpop.xlane.xlu0 %1610
    %v1612 = vsel %vm770, %v1588, -inf
    %1613 = vmax.xlane.f32.xlu0 %v1612
    %v1614 = vpop.xlane.xlu0 %1613
    %v1615 = vsub.f32 %v1553, %v1593
    %v1616 = vsub.f32 %v1558, %v1596
    %v1617 = vsub.f32 %v1563, %v1599
    %v1618 = vsub.f32 %v1568, %v1602
    %v1619 = vsub.f32 %v1573, %v1605
    %v1620 = vsub.f32 %v1578, %v1608
    %v1621 = vsub.f32 %v1583, %v1611
    %v1622 = vsub.f32 %v1588, %v1614
    %v1623 = vmul.f32 %v1615, 1.442695
    %v1624 = vpow.pop %v1623
    %v1625 = vmul.f32 %v1616, 1.442695
    %v1626 = vpow.pop %v1625
    %v1627 = vmul.f32 %v1617, 1.442695
    %v1628 = vpow.pop %v1627
    %v1629 = vmul.f32 %v1618, 1.442695
    %v1630 = vpow.pop %v1629
    %v1631 = vmul.f32 %v1619, 1.442695
    %v1632 = vpow.pop %v1631
    %v1633 = vmul.f32 %v1620, 1.442695
    %v1634 = vpow.pop %v1633
    %v1635 = vmul.f32 %v1621, 1.442695
    %v1636 = vpow.pop %v1635
    %v1637 = vmul.f32 %v1622, 1.442695
    %v1638 = vpow.pop %v1637
    %v1639 = vsel %vm770, %v1624, 0.0
    %1640 = vadd.xlane.f32.xlu0 %v1639
    %v1641 = vpop.xlane.xlu0 %1640
    %v1642 = vsel %vm770, %v1626, 0.0
    %1643 = vadd.xlane.f32.xlu0 %v1642
    %v1644 = vpop.xlane.xlu0 %1643
    %v1645 = vsel %vm770, %v1628, 0.0
    %1646 = vadd.xlane.f32.xlu0 %v1645
    %v1647 = vpop.xlane.xlu0 %1646
    %v1648 = vsel %vm770, %v1630, 0.0
    %1649 = vadd.xlane.f32.xlu0 %v1648
    %v1650 = vpop.xlane.xlu0 %1649
    %v1651 = vsel %vm770, %v1632, 0.0
    %1652 = vadd.xlane.f32.xlu0 %v1651
    %v1653 = vpop.xlane.xlu0 %1652
    %v1654 = vsel %vm770, %v1634, 0.0
    %1655 = vadd.xlane.f32.xlu0 %v1654
    %v1656 = vpop.xlane.xlu0 %1655
    %v1657 = vsel %vm770, %v1636, 0.0
    %1658 = vadd.xlane.f32.xlu0 %v1657
    %v1659 = vpop.xlane.xlu0 %1658
    %v1660 = vsel %vm770, %v1638, 0.0
    %1661 = vadd.xlane.f32.xlu0 %v1660
    %v1662 = vpop.xlane.xlu0 %1661
    %v1663 = vrcp.pop %v1641
    %v1664 = vrcp.pop %v1644
    %v1665 = vrcp.pop %v1647
    %v1666 = vrcp.pop %v1650
    %v1667 = vrcp.pop %v1653
    %v1668 = vrcp.pop %v1656
    %v1669 = vrcp.pop %v1659
    %v1670 = vrcp.pop %v1662
    %v1671 = vmul.f32 %v1624, %v1663
    %v1672 = vmul.f32 %v1626, %v1664
    %v1673 = vmul.f32 %v1628, %v1665
    %v1674 = vmul.f32 %v1630, %v1666
    %v1675 = vmul.f32 %v1632, %v1667
    %v1676 = vmul.f32 %v1634, %v1668
    %v1677 = vmul.f32 %v1636, %v1669
    %v1678 = vmul.f32 %v1638, %v1670
    %1679 = vrot.lane.b32.xlu0 %v514, 48
    %v1680 = vpop.permute.xlu0 %1679
    %1681 = vrot.lane.b32.xlu0 %v519, 48
    %v1682 = vpop.permute.xlu0 %1681
    %1683 = vrot.lane.b32.xlu0 %v524, 48
    %v1684 = vpop.permute.xlu0 %1683
    %1685 = vrot.lane.b32.xlu0 %v529, 48
    %v1686 = vpop.permute.xlu0 %1685
    %1687 = vrot.lane.b32.xlu0 %v534, 48
    %v1688 = vpop.permute.xlu0 %1687
    %1689 = vrot.lane.b32.xlu0 %v539, 48
    %v1690 = vpop.permute.xlu0 %1689
    %1691 = vrot.lane.b32.xlu0 %v544, 48
    %v1692 = vpop.permute.xlu0 %1691
    %1693 = vrot.lane.b32.xlu0 %v549, 48
    %v1694 = vpop.permute.xlu0 %1693
    %v1704 = vsel %vm770, %v1671, 0
    %v1707 = vsel %vm770, %v1672, 0
    %v1710 = vsel %vm770, %v1673, 0
    %v1713 = vsel %vm770, %v1674, 0
    %v1716 = vsel %vm770, %v1675, 0
    %v1719 = vsel %vm770, %v1676, 0
    %v1722 = vsel %vm770, %v1677, 0
    %v1725 = vsel %vm770, %v1678, 0
    %1727 = vmatprep.subr.mxu0 0.0
    %1728 = vmatpush1.msra.mxu0 %v1680
    %1729 = vmatprep.subr.mxu0 0.0
    %1730 = vmatpush1.msra.mxu0 %v1682
    %1731 = vmatprep.subr.mxu0 0.0
    %1732 = vmatpush1.msra.mxu0 %v1684
    %1733 = vmatprep.subr.mxu0 0.0
    %1734 = vmatpush1.msra.mxu0 %v1686
    %1735 = vmatprep.subr.mxu0 0.0
    %1736 = vmatpush1.msra.mxu0 %v1688
    %1737 = vmatprep.subr.mxu0 0.0
    %1738 = vmatpush1.msra.mxu0 %v1690
    %1739 = vmatprep.subr.mxu0 0.0
    %1740 = vmatpush1.msra.mxu0 %v1692
    %1741 = vmatprep.subr.mxu0 0.0
    %1742 = vmatpush1.msra.mxu0 %v1694
    %1743 = vmatprep.subr.mxu0 0.0
    %1744 = vmatpush1.msra.mxu0 0.0
    %1745 = vmatprep.subr.mxu0 0.0
    %1746 = vmatpush1.msra.mxu0 0.0
    %1747 = vmatprep.subr.mxu0 0.0
    %1748 = vmatpush1.msra.mxu0 0.0
    %1749 = vmatprep.subr.mxu0 0.0
    %1750 = vmatpush1.msra.mxu0 0.0
    %1751 = vmatprep.subr.mxu0 0.0
    %1752 = vmatpush1.msra.mxu0 0.0
    %1753 = vmatprep.subr.mxu0 0.0
    %1754 = vmatpush1.msra.mxu0 0.0
    %1755 = vmatprep.subr.mxu0 0.0
    %1756 = vmatpush1.msra.mxu0 0.0
    %1757 = vmatprep.subr.mxu0 0.0
    %1758 = vmatpush1.msra.mxu0 0.0
    %1759 = vmatprep.subr.mxu0 0.0
    %1760 = vmatpush1.msra.mxu0 0.0
    %1761 = vmatprep.subr.mxu0 0.0
    %1762 = vmatpush1.msra.mxu0 0.0
    %1763 = vmatprep.subr.mxu0 0.0
    %1764 = vmatpush1.msra.mxu0 0.0
    %1765 = vmatprep.subr.mxu0 0.0
    %1766 = vmatpush1.msra.mxu0 0.0
    %1767 = vmatprep.subr.mxu0 0.0
    %1768 = vmatpush1.msra.mxu0 0.0
    %1769 = vmatprep.subr.mxu0 0.0
    %1770 = vmatpush1.msra.mxu0 0.0
    %1771 = vmatprep.subr.mxu0 0.0
    %1772 = vmatpush1.msra.mxu0 0.0
    %1773 = vmatprep.subr.mxu0 0.0
    %1774 = vmatpush1.msra.mxu0 0.0
    %1775 = vmatprep.subr.mxu0 0.0
    %1776 = vmatpush1.msra.mxu0 0.0
    %1777 = vmatprep.subr.mxu0 0.0
    %1778 = vmatpush1.msra.mxu0 0.0
    %1779 = vmatprep.subr.mxu0 0.0
    %1780 = vmatpush1.msra.mxu0 0.0
    %1781 = vmatprep.subr.mxu0 0.0
    %1782 = vmatpush1.msra.mxu0 0.0
    %1783 = vmatprep.subr.mxu0 0.0
    %1784 = vmatpush1.msra.mxu0 0.0
    %1785 = vmatprep.subr.mxu0 0.0
    %1786 = vmatpush1.msra.mxu0 0.0
    %1787 = vmatprep.subr.mxu0 0.0
    %1788 = vmatpush1.msra.mxu0 0.0
    %1789 = vmatprep.subr.mxu0 0.0
    %1790 = vmatpush1.msra.mxu0 0.0
    %1791 = vmatprep.mubr.f32.mxu0 0.0
    %1792 = vmatmul.mubr.f32.gmra.mrb[0].mxu0 %v1704
    %v1793 = vpop.f32.mrb[0].mxu0
    %v1794 = vadd.f32 0.0, %v1793
    %v1795 = vpop.f32.mrb[0].mxu0
    %1796 = vmatprep.mubr.f32.mxu0 0.0
    %1797 = vmatmul.mubr.f32.gmra.mrb[0].mxu0 %v1707
    %v1798 = vpop.f32.mrb[0].mxu0
    %v1799 = vadd.f32 0.0, %v1798
    %v1800 = vpop.f32.mrb[0].mxu0
    %1801 = vmatprep.mubr.f32.mxu0 0.0
    %1802 = vmatmul.mubr.f32.gmra.mrb[0].mxu0 %v1710
    %v1803 = vpop.f32.mrb[0].mxu0
    %v1804 = vadd.f32 0.0, %v1803
    %v1805 = vpop.f32.mrb[0].mxu0
    %1806 = vmatprep.mubr.f32.mxu0 0.0
    %1807 = vmatmul.mubr.f32.gmra.mrb[0].mxu0 %v1713
    %v1808 = vpop.f32.mrb[0].mxu0
    %v1809 = vadd.f32 0.0, %v1808
    %v1810 = vpop.f32.mrb[0].mxu0
    %1811 = vmatprep.mubr.f32.mxu0 0.0
    %1812 = vmatmul.mubr.f32.gmra.mrb[0].mxu0 %v1716
    %v1813 = vpop.f32.mrb[0].mxu0
    %v1814 = vadd.f32 0.0, %v1813
    %v1815 = vpop.f32.mrb[0].mxu0
    %1816 = vmatprep.mubr.f32.mxu0 0.0
    %1817 = vmatmul.mubr.f32.gmra.mrb[0].mxu0 %v1719
    %v1818 = vpop.f32.mrb[0].mxu0
    %v1819 = vadd.f32 0.0, %v1818
    %v1820 = vpop.f32.mrb[0].mxu0
    %1821 = vmatprep.mubr.f32.mxu0 0.0
    %1822 = vmatmul.mubr.f32.gmra.mrb[0].mxu0 %v1722
    %v1823 = vpop.f32.mrb[0].mxu0
    %v1824 = vadd.f32 0.0, %v1823
    %v1825 = vpop.f32.mrb[0].mxu0
    %1826 = vmatprep.mubr.f32.mxu0 0.0
    %1827 = vmatmul.mubr.f32.gmra.mrb[0].mxu0 %v1725
    %v1828 = vpop.f32.mrb[0].mxu0
    %v1829 = vadd.f32 0.0, %v1828
    %v1830 = vpop.f32.mrb[0].mxu0
    %1831 = vdwg.mxu0
    %1832 = vrot.lane.b32.xlu0 %v592, 104
    %v1833 = vpop.permute.xlu0 %1832
    %1834 = vrot.lane.b32.xlu0 %v593, 104
    %v1835 = vpop.permute.xlu0 %1834
    %1836 = vrot.lane.b32.xlu0 %v594, 104
    %v1837 = vpop.permute.xlu0 %1836
    %1838 = vrot.lane.b32.xlu0 %v595, 104
    %v1839 = vpop.permute.xlu0 %1838
    %1840 = vrot.lane.b32.xlu0 %v596, 104
    %v1841 = vpop.permute.xlu0 %1840
    %1842 = vrot.lane.b32.xlu0 %v597, 104
    %v1843 = vpop.permute.xlu0 %1842
    %1844 = vrot.lane.b32.xlu0 %v598, 104
    %v1845 = vpop.permute.xlu0 %1844
    %1846 = vrot.lane.b32.xlu0 %v599, 104
    %v1847 = vpop.permute.xlu0 %1846
    %1848 = vrot.lane.b32.xlu0 %v514, 72
    %v1849 = vpop.permute.xlu0 %1848
    %1850 = vrot.lane.b32.xlu0 %v519, 72
    %v1851 = vpop.permute.xlu0 %1850
    %1852 = vrot.lane.b32.xlu0 %v524, 72
    %v1853 = vpop.permute.xlu0 %1852
    %1854 = vrot.lane.b32.xlu0 %v529, 72
    %v1855 = vpop.permute.xlu0 %1854
    %1856 = vrot.lane.b32.xlu0 %v534, 72
    %v1857 = vpop.permute.xlu0 %1856
    %1858 = vrot.lane.b32.xlu0 %v539, 72
    %v1859 = vpop.permute.xlu0 %1858
    %1860 = vrot.lane.b32.xlu0 %v544, 72
    %v1861 = vpop.permute.xlu0 %1860
    %1862 = vrot.lane.b32.xlu0 %v549, 72
    %v1863 = vpop.permute.xlu0 %1862
    %v1864 = vsel %vm624, %v1833, 0
    %v1866 = vsel %vm624, %v1835, 0
    %v1868 = vsel %vm624, %v1837, 0
    %v1870 = vsel %vm624, %v1839, 0
    %v1872 = vsel %vm624, %v1841, 0
    %v1874 = vsel %vm624, %v1843, 0
    %v1876 = vsel %vm624, %v1845, 0
    %v1878 = vsel %vm624, %v1847, 0
    %v1880 = vsel %vm624, %v1849, 0
    %v1882 = vsel %vm624, %v1851, 0
    %v1884 = vsel %vm624, %v1853, 0
    %v1886 = vsel %vm624, %v1855, 0
    %v1888 = vsel %vm624, %v1857, 0
    %v1890 = vsel %vm624, %v1859, 0
    %v1892 = vsel %vm624, %v1861, 0
    %v1894 = vsel %vm624, %v1863, 0
    %1896 = vmatprep.subr.mxu0 0.0
    %1897 = vmatpush1.xpose.msra.mxu0 %v1880
    %1898 = vmatprep.subr.mxu0 0.0
    %1899 = vmatpush1.xpose.msra.mxu0 %v1882
    %1900 = vmatprep.subr.mxu0 0.0
    %1901 = vmatpush1.xpose.msra.mxu0 %v1884
    %1902 = vmatprep.subr.mxu0 0.0
    %1903 = vmatpush1.xpose.msra.mxu0 %v1886
    %1904 = vmatprep.subr.mxu0 0.0
    %1905 = vmatpush1.xpose.msra.mxu0 %v1888
    %1906 = vmatprep.subr.mxu0 0.0
    %1907 = vmatpush1.xpose.msra.mxu0 %v1890
    %1908 = vmatprep.subr.mxu0 0.0
    %1909 = vmatpush1.xpose.msra.mxu0 %v1892
    %1910 = vmatprep.subr.mxu0 0.0
    %1911 = vmatpush1.xpose.msra.mxu0 %v1894
    %1912 = vmatprep.subr.mxu0 0.0
    %1913 = vmatpush1.xpose.msra.mxu0 0.0
    %1914 = vmatprep.subr.mxu0 0.0
    %1915 = vmatpush1.xpose.msra.mxu0 0.0
    %1916 = vmatprep.subr.mxu0 0.0
    %1917 = vmatpush1.xpose.msra.mxu0 0.0
    %1918 = vmatprep.subr.mxu0 0.0
    %1919 = vmatpush1.xpose.msra.mxu0 0.0
    %1920 = vmatprep.subr.mxu0 0.0
    %1921 = vmatpush1.xpose.msra.mxu0 0.0
    %1922 = vmatprep.subr.mxu0 0.0
    %1923 = vmatpush1.xpose.msra.mxu0 0.0
    %1924 = vmatprep.subr.mxu0 0.0
    %1925 = vmatpush1.xpose.msra.mxu0 0.0
    %1926 = vmatprep.subr.mxu0 0.0
    %1927 = vmatpush1.xpose.msra.mxu0 0.0
    %1928 = vmatprep.subr.mxu0 0.0
    %1929 = vmatpush1.xpose.msra.mxu0 0.0
    %1930 = vmatprep.subr.mxu0 0.0
    %1931 = vmatpush1.xpose.msra.mxu0 0.0
    %1932 = vmatprep.subr.mxu0 0.0
    %1933 = vmatpush1.xpose.msra.mxu0 0.0
    %1934 = vmatprep.subr.mxu0 0.0
    %1935 = vmatpush1.xpose.msra.mxu0 0.0
    %1936 = vmatprep.subr.mxu0 0.0
    %1937 = vmatpush1.xpose.msra.mxu0 0.0
    %1938 = vmatprep.subr.mxu0 0.0
    %1939 = vmatpush1.xpose.msra.mxu0 0.0
    %1940 = vmatprep.subr.mxu0 0.0
    %1941 = vmatpush1.xpose.msra.mxu0 0.0
    %1942 = vmatprep.subr.mxu0 0.0
    %1943 = vmatpush1.xpose.msra.mxu0 0.0
    %1944 = vmatprep.subr.mxu0 0.0
    %1945 = vmatpush1.xpose.msra.mxu0 0.0
    %1946 = vmatprep.subr.mxu0 0.0
    %1947 = vmatpush1.xpose.msra.mxu0 0.0
    %1948 = vmatprep.subr.mxu0 0.0
    %1949 = vmatpush1.xpose.msra.mxu0 0.0
    %1950 = vmatprep.subr.mxu0 0.0
    %1951 = vmatpush1.xpose.msra.mxu0 0.0
    %1952 = vmatprep.subr.mxu0 0.0
    %1953 = vmatpush1.xpose.msra.mxu0 0.0
    %1954 = vmatprep.subr.mxu0 0.0
    %1955 = vmatpush1.xpose.msra.mxu0 0.0
    %1956 = vmatprep.subr.mxu0 0.0
    %1957 = vmatpush1.xpose.msra.mxu0 0.0
    %1958 = vmatprep.subr.mxu0 0.0
    %1959 = vmatpush1.xpose.msra.mxu0 0.0
    %1960 = vmatprep.mubr.f32.mxu0 0.0
    %1961 = vmatmul.mubr.f32.gmra.mrb[0].mxu0 %v1864
    %v1962 = vpop.f32.mrb[0].mxu0
    %v1963 = vadd.f32 0.0, %v1962
    %v1964 = vpop.f32.mrb[0].mxu0
    %1965 = vmatprep.mubr.f32.mxu0 0.0
    %1966 = vmatmul.mubr.f32.gmra.mrb[0].mxu0 %v1866
    %v1967 = vpop.f32.mrb[0].mxu0
    %v1968 = vadd.f32 0.0, %v1967
    %v1969 = vpop.f32.mrb[0].mxu0
    %1970 = vmatprep.mubr.f32.mxu0 0.0
    %1971 = vmatmul.mubr.f32.gmra.mrb[0].mxu0 %v1868
    %v1972 = vpop.f32.mrb[0].mxu0
    %v1973 = vadd.f32 0.0, %v1972
    %v1974 = vpop.f32.mrb[0].mxu0
    %1975 = vmatprep.mubr.f32.mxu0 0.0
    %1976 = vmatmul.mubr.f32.gmra.mrb[0].mxu0 %v1870
    %v1977 = vpop.f32.mrb[0].mxu0
    %v1978 = vadd.f32 0.0, %v1977
    %v1979 = vpop.f32.mrb[0].mxu0
    %1980 = vmatprep.mubr.f32.mxu0 0.0
    %1981 = vmatmul.mubr.f32.gmra.mrb[0].mxu0 %v1872
    %v1982 = vpop.f32.mrb[0].mxu0
    %v1983 = vadd.f32 0.0, %v1982
    %v1984 = vpop.f32.mrb[0].mxu0
    %1985 = vmatprep.mubr.f32.mxu0 0.0
    %1986 = vmatmul.mubr.f32.gmra.mrb[0].mxu0 %v1874
    %v1987 = vpop.f32.mrb[0].mxu0
    %v1988 = vadd.f32 0.0, %v1987
    %v1989 = vpop.f32.mrb[0].mxu0
    %1990 = vmatprep.mubr.f32.mxu0 0.0
    %1991 = vmatmul.mubr.f32.gmra.mrb[0].mxu0 %v1876
    %v1992 = vpop.f32.mrb[0].mxu0
    %v1993 = vadd.f32 0.0, %v1992
    %v1994 = vpop.f32.mrb[0].mxu0
    %1995 = vmatprep.mubr.f32.mxu0 0.0
    %1996 = vmatmul.mubr.f32.gmra.mrb[0].mxu0 %v1878
    %v1997 = vpop.f32.mrb[0].mxu0
    %v1998 = vadd.f32 0.0, %v1997
    %v1999 = vpop.f32.mrb[0].mxu0
    %2000 = vdwg.mxu0
    %v2001 = vsel %vm770, %v1963, -inf
    %2002 = vmax.xlane.f32.xlu0 %v2001
    %v2003 = vpop.xlane.xlu0 %2002
    %v2004 = vsel %vm770, %v1968, -inf
    %2005 = vmax.xlane.f32.xlu0 %v2004
    %v2006 = vpop.xlane.xlu0 %2005
    %v2007 = vsel %vm770, %v1973, -inf
    %2008 = vmax.xlane.f32.xlu0 %v2007
    %v2009 = vpop.xlane.xlu0 %2008
    %v2010 = vsel %vm770, %v1978, -inf
    %2011 = vmax.xlane.f32.xlu0 %v2010
    %v2012 = vpop.xlane.xlu0 %2011
    %v2013 = vsel %vm770, %v1983, -inf
    %2014 = vmax.xlane.f32.xlu0 %v2013
    %v2015 = vpop.xlane.xlu0 %2014
    %v2016 = vsel %vm770, %v1988, -inf
    %2017 = vmax.xlane.f32.xlu0 %v2016
    %v2018 = vpop.xlane.xlu0 %2017
    %v2019 = vsel %vm770, %v1993, -inf
    %2020 = vmax.xlane.f32.xlu0 %v2019
    %v2021 = vpop.xlane.xlu0 %2020
    %v2022 = vsel %vm770, %v1998, -inf
    %2023 = vmax.xlane.f32.xlu0 %v2022
    %v2024 = vpop.xlane.xlu0 %2023
    %v2025 = vsub.f32 %v1963, %v2003
    %v2026 = vsub.f32 %v1968, %v2006
    %v2027 = vsub.f32 %v1973, %v2009
    %v2028 = vsub.f32 %v1978, %v2012
    %v2029 = vsub.f32 %v1983, %v2015
    %v2030 = vsub.f32 %v1988, %v2018
    %v2031 = vsub.f32 %v1993, %v2021
    %v2032 = vsub.f32 %v1998, %v2024
    %v2033 = vmul.f32 %v2025, 1.442695
    %v2034 = vpow.pop %v2033
    %v2035 = vmul.f32 %v2026, 1.442695
    %v2036 = vpow.pop %v2035
    %v2037 = vmul.f32 %v2027, 1.442695
    %v2038 = vpow.pop %v2037
    %v2039 = vmul.f32 %v2028, 1.442695
    %v2040 = vpow.pop %v2039
    %v2041 = vmul.f32 %v2029, 1.442695
    %v2042 = vpow.pop %v2041
    %v2043 = vmul.f32 %v2030, 1.442695
    %v2044 = vpow.pop %v2043
    %v2045 = vmul.f32 %v2031, 1.442695
    %v2046 = vpow.pop %v2045
    %v2047 = vmul.f32 %v2032, 1.442695
    %v2048 = vpow.pop %v2047
    %v2049 = vsel %vm770, %v2034, 0.0
    %2050 = vadd.xlane.f32.xlu0 %v2049
    %v2051 = vpop.xlane.xlu0 %2050
    %v2052 = vsel %vm770, %v2036, 0.0
    %2053 = vadd.xlane.f32.xlu0 %v2052
    %v2054 = vpop.xlane.xlu0 %2053
    %v2055 = vsel %vm770, %v2038, 0.0
    %2056 = vadd.xlane.f32.xlu0 %v2055
    %v2057 = vpop.xlane.xlu0 %2056
    %v2058 = vsel %vm770, %v2040, 0.0
    %2059 = vadd.xlane.f32.xlu0 %v2058
    %v2060 = vpop.xlane.xlu0 %2059
    %v2061 = vsel %vm770, %v2042, 0.0
    %2062 = vadd.xlane.f32.xlu0 %v2061
    %v2063 = vpop.xlane.xlu0 %2062
    %v2064 = vsel %vm770, %v2044, 0.0
    %2065 = vadd.xlane.f32.xlu0 %v2064
    %v2066 = vpop.xlane.xlu0 %2065
    %v2067 = vsel %vm770, %v2046, 0.0
    %2068 = vadd.xlane.f32.xlu0 %v2067
    %v2069 = vpop.xlane.xlu0 %2068
    %v2070 = vsel %vm770, %v2048, 0.0
    %2071 = vadd.xlane.f32.xlu0 %v2070
    %v2072 = vpop.xlane.xlu0 %2071
    %v2073 = vrcp.pop %v2051
    %v2074 = vrcp.pop %v2054
    %v2075 = vrcp.pop %v2057
    %v2076 = vrcp.pop %v2060
    %v2077 = vrcp.pop %v2063
    %v2078 = vrcp.pop %v2066
    %v2079 = vrcp.pop %v2069
    %v2080 = vrcp.pop %v2072
    %v2081 = vmul.f32 %v2034, %v2073
    %v2082 = vmul.f32 %v2036, %v2074
    %v2083 = vmul.f32 %v2038, %v2075
    %v2084 = vmul.f32 %v2040, %v2076
    %v2085 = vmul.f32 %v2042, %v2077
    %v2086 = vmul.f32 %v2044, %v2078
    %v2087 = vmul.f32 %v2046, %v2079
    %v2088 = vmul.f32 %v2048, %v2080
    %2089 = vrot.lane.b32.xlu0 %v514, 40
    %v2090 = vpop.permute.xlu0 %2089
    %2091 = vrot.lane.b32.xlu0 %v519, 40
    %v2092 = vpop.permute.xlu0 %2091
    %2093 = vrot.lane.b32.xlu0 %v524, 40
    %v2094 = vpop.permute.xlu0 %2093
    %2095 = vrot.lane.b32.xlu0 %v529, 40
    %v2096 = vpop.permute.xlu0 %2095
    %2097 = vrot.lane.b32.xlu0 %v534, 40
    %v2098 = vpop.permute.xlu0 %2097
    %2099 = vrot.lane.b32.xlu0 %v539, 40
    %v2100 = vpop.permute.xlu0 %2099
    %2101 = vrot.lane.b32.xlu0 %v544, 40
    %v2102 = vpop.permute.xlu0 %2101
    %2103 = vrot.lane.b32.xlu0 %v549, 40
    %v2104 = vpop.permute.xlu0 %2103
    %v2114 = vsel %vm770, %v2081, 0
    %v2117 = vsel %vm770, %v2082, 0
    %v2120 = vsel %vm770, %v2083, 0
    %v2123 = vsel %vm770, %v2084, 0
    %v2126 = vsel %vm770, %v2085, 0
    %v2129 = vsel %vm770, %v2086, 0
    %v2132 = vsel %vm770, %v2087, 0
    %v2135 = vsel %vm770, %v2088, 0
    %2137 = vmatprep.subr.mxu0 0.0
    %2138 = vmatpush1.msra.mxu0 %v2090
    %2139 = vmatprep.subr.mxu0 0.0
    %2140 = vmatpush1.msra.mxu0 %v2092
    %2141 = vmatprep.subr.mxu0 0.0
    %2142 = vmatpush1.msra.mxu0 %v2094
    %2143 = vmatprep.subr.mxu0 0.0
    %2144 = vmatpush1.msra.mxu0 %v2096
    %2145 = vmatprep.subr.mxu0 0.0
    %2146 = vmatpush1.msra.mxu0 %v2098
    %2147 = vmatprep.subr.mxu0 0.0
    %2148 = vmatpush1.msra.mxu0 %v2100
    %2149 = vmatprep.subr.mxu0 0.0
    %2150 = vmatpush1.msra.mxu0 %v2102
    %2151 = vmatprep.subr.mxu0 0.0
    %2152 = vmatpush1.msra.mxu0 %v2104
    %2153 = vmatprep.subr.mxu0 0.0
    %2154 = vmatpush1.msra.mxu0 0.0
    %2155 = vmatprep.subr.mxu0 0.0
    %2156 = vmatpush1.msra.mxu0 0.0
    %2157 = vmatprep.subr.mxu0 0.0
    %2158 = vmatpush1.msra.mxu0 0.0
    %2159 = vmatprep.subr.mxu0 0.0
    %2160 = vmatpush1.msra.mxu0 0.0
    %2161 = vmatprep.subr.mxu0 0.0
    %2162 = vmatpush1.msra.mxu0 0.0
    %2163 = vmatprep.subr.mxu0 0.0
    %2164 = vmatpush1.msra.mxu0 0.0
    %2165 = vmatprep.subr.mxu0 0.0
    %2166 = vmatpush1.msra.mxu0 0.0
    %2167 = vmatprep.subr.mxu0 0.0
    %2168 = vmatpush1.msra.mxu0 0.0
    %2169 = vmatprep.subr.mxu0 0.0
    %2170 = vmatpush1.msra.mxu0 0.0
    %2171 = vmatprep.subr.mxu0 0.0
    %2172 = vmatpush1.msra.mxu0 0.0
    %2173 = vmatprep.subr.mxu0 0.0
    %2174 = vmatpush1.msra.mxu0 0.0
    %2175 = vmatprep.subr.mxu0 0.0
    %2176 = vmatpush1.msra.mxu0 0.0
    %2177 = vmatprep.subr.mxu0 0.0
    %2178 = vmatpush1.msra.mxu0 0.0
    %2179 = vmatprep.subr.mxu0 0.0
    %2180 = vmatpush1.msra.mxu0 0.0
    %2181 = vmatprep.subr.mxu0 0.0
    %2182 = vmatpush1.msra.mxu0 0.0
    %2183 = vmatprep.subr.mxu0 0.0
    %2184 = vmatpush1.msra.mxu0 0.0
    %2185 = vmatprep.subr.mxu0 0.0
    %2186 = vmatpush1.msra.mxu0 0.0
    %2187 = vmatprep.subr.mxu0 0.0
    %2188 = vmatpush1.msra.mxu0 0.0
    %2189 = vmatprep.subr.mxu0 0.0
    %2190 = vmatpush1.msra.mxu0 0.0
    %2191 = vmatprep.subr.mxu0 0.0
    %2192 = vmatpush1.msra.mxu0 0.0
    %2193 = vmatprep.subr.mxu0 0.0
    %2194 = vmatpush1.msra.mxu0 0.0
    %2195 = vmatprep.subr.mxu0 0.0
    %2196 = vmatpush1.msra.mxu0 0.0
    %2197 = vmatprep.subr.mxu0 0.0
    %2198 = vmatpush1.msra.mxu0 0.0
    %2199 = vmatprep.subr.mxu0 0.0
    %2200 = vmatpush1.msra.mxu0 0.0
    %2201 = vmatprep.mubr.f32.mxu0 0.0
    %2202 = vmatmul.mubr.f32.gmra.mrb[0].mxu0 %v2114
    %v2203 = vpop.f32.mrb[0].mxu0
    %v2204 = vadd.f32 0.0, %v2203
    %v2205 = vpop.f32.mrb[0].mxu0
    %2206 = vmatprep.mubr.f32.mxu0 0.0
    %2207 = vmatmul.mubr.f32.gmra.mrb[0].mxu0 %v2117
    %v2208 = vpop.f32.mrb[0].mxu0
    %v2209 = vadd.f32 0.0, %v2208
    %v2210 = vpop.f32.mrb[0].mxu0
    %2211 = vmatprep.mubr.f32.mxu0 0.0
    %2212 = vmatmul.mubr.f32.gmra.mrb[0].mxu0 %v2120
    %v2213 = vpop.f32.mrb[0].mxu0
    %v2214 = vadd.f32 0.0, %v2213
    %v2215 = vpop.f32.mrb[0].mxu0
    %2216 = vmatprep.mubr.f32.mxu0 0.0
    %2217 = vmatmul.mubr.f32.gmra.mrb[0].mxu0 %v2123
    %v2218 = vpop.f32.mrb[0].mxu0
    %v2219 = vadd.f32 0.0, %v2218
    %v2220 = vpop.f32.mrb[0].mxu0
    %2221 = vmatprep.mubr.f32.mxu0 0.0
    %2222 = vmatmul.mubr.f32.gmra.mrb[0].mxu0 %v2126
    %v2223 = vpop.f32.mrb[0].mxu0
    %v2224 = vadd.f32 0.0, %v2223
    %v2225 = vpop.f32.mrb[0].mxu0
    %2226 = vmatprep.mubr.f32.mxu0 0.0
    %2227 = vmatmul.mubr.f32.gmra.mrb[0].mxu0 %v2129
    %v2228 = vpop.f32.mrb[0].mxu0
    %v2229 = vadd.f32 0.0, %v2228
    %v2230 = vpop.f32.mrb[0].mxu0
    %2231 = vmatprep.mubr.f32.mxu0 0.0
    %2232 = vmatmul.mubr.f32.gmra.mrb[0].mxu0 %v2132
    %v2233 = vpop.f32.mrb[0].mxu0
    %v2234 = vadd.f32 0.0, %v2233
    %v2235 = vpop.f32.mrb[0].mxu0
    %2236 = vmatprep.mubr.f32.mxu0 0.0
    %2237 = vmatmul.mubr.f32.gmra.mrb[0].mxu0 %v2135
    %v2238 = vpop.f32.mrb[0].mxu0
    %v2239 = vadd.f32 0.0, %v2238
    %v2240 = vpop.f32.mrb[0].mxu0
    %2241 = vdwg.mxu0
    %2250 = vrot.lane.b32.xlu0 %v1384, 8
    %v2251 = vpop.permute.xlu0 %2250
    %2252 = vrot.lane.b32.xlu0 %v1389, 8
    %v2253 = vpop.permute.xlu0 %2252
    %2254 = vrot.lane.b32.xlu0 %v1394, 8
    %v2255 = vpop.permute.xlu0 %2254
    %2256 = vrot.lane.b32.xlu0 %v1399, 8
    %v2257 = vpop.permute.xlu0 %2256
    %2258 = vrot.lane.b32.xlu0 %v1404, 8
    %v2259 = vpop.permute.xlu0 %2258
    %2260 = vrot.lane.b32.xlu0 %v1409, 8
    %v2261 = vpop.permute.xlu0 %2260
    %2262 = vrot.lane.b32.xlu0 %v1414, 8
    %v2263 = vpop.permute.xlu0 %2262
    %2264 = vrot.lane.b32.xlu0 %v1419, 8
    %v2265 = vpop.permute.xlu0 %2264
    %2282 = vrot.lane.b32.xlu0 %v1794, 16
    %v2283 = vpop.permute.xlu0 %2282
    %2284 = vrot.lane.b32.xlu0 %v1799, 16
    %v2285 = vpop.permute.xlu0 %2284
    %2286 = vrot.lane.b32.xlu0 %v1804, 16
    %v2287 = vpop.permute.xlu0 %2286
    %2288 = vrot.lane.b32.xlu0 %v1809, 16
    %v2289 = vpop.permute.xlu0 %2288
    %2290 = vrot.lane.b32.xlu0 %v1814, 16
    %v2291 = vpop.permute.xlu0 %2290
    %2292 = vrot.lane.b32.xlu0 %v1819, 16
    %v2293 = vpop.permute.xlu0 %2292
    %2294 = vrot.lane.b32.xlu0 %v1824, 16
    %v2295 = vpop.permute.xlu0 %2294
    %2296 = vrot.lane.b32.xlu0 %v1829, 16
    %v2297 = vpop.permute.xlu0 %2296
    %2314 = vrot.lane.b32.xlu0 %v2204, 24
    %v2315 = vpop.permute.xlu0 %2314
    %2316 = vrot.lane.b32.xlu0 %v2209, 24
    %v2317 = vpop.permute.xlu0 %2316
    %2318 = vrot.lane.b32.xlu0 %v2214, 24
    %v2319 = vpop.permute.xlu0 %2318
    %2320 = vrot.lane.b32.xlu0 %v2219, 24
    %v2321 = vpop.permute.xlu0 %2320
    %2322 = vrot.lane.b32.xlu0 %v2224, 24
    %v2323 = vpop.permute.xlu0 %2322
    %2324 = vrot.lane.b32.xlu0 %v2229, 24
    %v2325 = vpop.permute.xlu0 %2324
    %2326 = vrot.lane.b32.xlu0 %v2234, 24
    %v2327 = vpop.permute.xlu0 %2326
    %2328 = vrot.lane.b32.xlu0 %v2239, 24
    %v2329 = vpop.permute.xlu0 %2328
    %v2338 = vsel %vm624, %v974, %v2251
    %v2339 = vsel %vm624, %v979, %v2253
    %v2340 = vsel %vm624, %v984, %v2255
    %v2341 = vsel %vm624, %v989, %v2257
    %v2342 = vsel %vm624, %v994, %v2259
    %v2343 = vsel %vm624, %v999, %v2261
    %v2344 = vsel %vm624, %v1004, %v2263
    %v2345 = vsel %vm624, %v1009, %v2265
    %vm2346 = vcmask 130048
    %v2347 = vsel %vm2346, %v2338, %v2283
    %v2348 = vsel %vm2346, %v2339, %v2285
    %v2349 = vsel %vm2346, %v2340, %v2287
    %v2350 = vsel %vm2346, %v2341, %v2289
    %v2351 = vsel %vm2346, %v2342, %v2291
    %v2352 = vsel %vm2346, %v2343, %v2293
    %v2353 = vsel %vm2346, %v2344, %v2295
    %v2354 = vsel %vm2346, %v2345, %v2297
    %vm2355 = vcmask 195584
    %v2356 = vsel %vm2355, %v2347, %v2315
    %v2357 = vsel %vm2355, %v2348, %v2317
    %v2358 = vsel %vm2355, %v2349, %v2319
    %v2359 = vsel %vm2355, %v2350, %v2321
    %v2360 = vsel %vm2355, %v2351, %v2323
    %v2361 = vsel %vm2355, %v2352, %v2325
    %v2362 = vsel %vm2355, %v2353, %v2327
    %v2363 = vsel %vm2355, %v2354, %v2329
    %v2364 = vmul.f32 %v554, 0.35355338
    %v2365 = vmul.f32 %v559, 0.35355338
    %v2366 = vmul.f32 %v564, 0.35355338
    %v2367 = vmul.f32 %v569, 0.35355338
    %v2368 = vmul.f32 %v574, 0.35355338
    %v2369 = vmul.f32 %v579, 0.35355338
    %v2370 = vmul.f32 %v584, 0.35355338
    %v2371 = vmul.f32 %v589, 0.35355338
    %2380 = vrot.lane.b32.xlu0 %v554, 96
    %v2381 = vpop.permute.xlu0 %2380
    %2382 = vrot.lane.b32.xlu0 %v559, 96
    %v2383 = vpop.permute.xlu0 %2382
    %2384 = vrot.lane.b32.xlu0 %v564, 96
    %v2385 = vpop.permute.xlu0 %2384
    %2386 = vrot.lane.b32.xlu0 %v569, 96
    %v2387 = vpop.permute.xlu0 %2386
    %2388 = vrot.lane.b32.xlu0 %v574, 96
    %v2389 = vpop.permute.xlu0 %2388
    %2390 = vrot.lane.b32.xlu0 %v579, 96
    %v2391 = vpop.permute.xlu0 %2390
    %2392 = vrot.lane.b32.xlu0 %v584, 96
    %v2393 = vpop.permute.xlu0 %2392
    %2394 = vrot.lane.b32.xlu0 %v589, 96
    %v2395 = vpop.permute.xlu0 %2394
    %v2397 = vsel %vm624, %v2364, 0
    %v2400 = vsel %vm624, %v2365, 0
    %v2403 = vsel %vm624, %v2366, 0
    %v2406 = vsel %vm624, %v2367, 0
    %v2409 = vsel %vm624, %v2368, 0
    %v2412 = vsel %vm624, %v2369, 0
    %v2415 = vsel %vm624, %v2370, 0
    %v2418 = vsel %vm624, %v2371, 0
    %v2420 = vsel %vm624, %v2381, 0
    %v2422 = vsel %vm624, %v2383, 0
    %v2424 = vsel %vm624, %v2385, 0
    %v2426 = vsel %vm624, %v2387, 0
    %v2428 = vsel %vm624, %v2389, 0
    %v2430 = vsel %vm624, %v2391, 0
    %v2432 = vsel %vm624, %v2393, 0
    %v2434 = vsel %vm624, %v2395, 0
    %2436 = vmatprep.subr.mxu0 0.0
    %2437 = vmatpush1.xpose.msra.mxu0 %v2420
    %2438 = vmatprep.subr.mxu0 0.0
    %2439 = vmatpush1.xpose.msra.mxu0 %v2422
    %2440 = vmatprep.subr.mxu0 0.0
    %2441 = vmatpush1.xpose.msra.mxu0 %v2424
    %2442 = vmatprep.subr.mxu0 0.0
    %2443 = vmatpush1.xpose.msra.mxu0 %v2426
    %2444 = vmatprep.subr.mxu0 0.0
    %2445 = vmatpush1.xpose.msra.mxu0 %v2428
    %2446 = vmatprep.subr.mxu0 0.0
    %2447 = vmatpush1.xpose.msra.mxu0 %v2430
    %2448 = vmatprep.subr.mxu0 0.0
    %2449 = vmatpush1.xpose.msra.mxu0 %v2432
    %2450 = vmatprep.subr.mxu0 0.0
    %2451 = vmatpush1.xpose.msra.mxu0 %v2434
    %2452 = vmatprep.subr.mxu0 0.0
    %2453 = vmatpush1.xpose.msra.mxu0 0.0
    %2454 = vmatprep.subr.mxu0 0.0
    %2455 = vmatpush1.xpose.msra.mxu0 0.0
    %2456 = vmatprep.subr.mxu0 0.0
    %2457 = vmatpush1.xpose.msra.mxu0 0.0
    %2458 = vmatprep.subr.mxu0 0.0
    %2459 = vmatpush1.xpose.msra.mxu0 0.0
    %2460 = vmatprep.subr.mxu0 0.0
    %2461 = vmatpush1.xpose.msra.mxu0 0.0
    %2462 = vmatprep.subr.mxu0 0.0
    %2463 = vmatpush1.xpose.msra.mxu0 0.0
    %2464 = vmatprep.subr.mxu0 0.0
    %2465 = vmatpush1.xpose.msra.mxu0 0.0
    %2466 = vmatprep.subr.mxu0 0.0
    %2467 = vmatpush1.xpose.msra.mxu0 0.0
    %2468 = vmatprep.subr.mxu0 0.0
    %2469 = vmatpush1.xpose.msra.mxu0 0.0
    %2470 = vmatprep.subr.mxu0 0.0
    %2471 = vmatpush1.xpose.msra.mxu0 0.0
    %2472 = vmatprep.subr.mxu0 0.0
    %2473 = vmatpush1.xpose.msra.mxu0 0.0
    %2474 = vmatprep.subr.mxu0 0.0
    %2475 = vmatpush1.xpose.msra.mxu0 0.0
    %2476 = vmatprep.subr.mxu0 0.0
    %2477 = vmatpush1.xpose.msra.mxu0 0.0
    %2478 = vmatprep.subr.mxu0 0.0
    %2479 = vmatpush1.xpose.msra.mxu0 0.0
    %2480 = vmatprep.subr.mxu0 0.0
    %2481 = vmatpush1.xpose.msra.mxu0 0.0
    %2482 = vmatprep.subr.mxu0 0.0
    %2483 = vmatpush1.xpose.msra.mxu0 0.0
    %2484 = vmatprep.subr.mxu0 0.0
    %2485 = vmatpush1.xpose.msra.mxu0 0.0
    %2486 = vmatprep.subr.mxu0 0.0
    %2487 = vmatpush1.xpose.msra.mxu0 0.0
    %2488 = vmatprep.subr.mxu0 0.0
    %2489 = vmatpush1.xpose.msra.mxu0 0.0
    %2490 = vmatprep.subr.mxu0 0.0
    %2491 = vmatpush1.xpose.msra.mxu0 0.0
    %2492 = vmatprep.subr.mxu0 0.0
    %2493 = vmatpush1.xpose.msra.mxu0 0.0
    %2494 = vmatprep.subr.mxu0 0.0
    %2495 = vmatpush1.xpose.msra.mxu0 0.0
    %2496 = vmatprep.subr.mxu0 0.0
    %2497 = vmatpush1.xpose.msra.mxu0 0.0
    %2498 = vmatprep.subr.mxu0 0.0
    %2499 = vmatpush1.xpose.msra.mxu0 0.0
    %2500 = vmatprep.mubr.f32.mxu0 0.0
    %2501 = vmatmul.mubr.f32.gmra.mrb[0].mxu0 %v2397
    %v2502 = vpop.f32.mrb[0].mxu0
    %v2503 = vadd.f32 0.0, %v2502
    %v2504 = vpop.f32.mrb[0].mxu0
    %2505 = vmatprep.mubr.f32.mxu0 0.0
    %2506 = vmatmul.mubr.f32.gmra.mrb[0].mxu0 %v2400
    %v2507 = vpop.f32.mrb[0].mxu0
    %v2508 = vadd.f32 0.0, %v2507
    %v2509 = vpop.f32.mrb[0].mxu0
    %2510 = vmatprep.mubr.f32.mxu0 0.0
    %2511 = vmatmul.mubr.f32.gmra.mrb[0].mxu0 %v2403
    %v2512 = vpop.f32.mrb[0].mxu0
    %v2513 = vadd.f32 0.0, %v2512
    %v2514 = vpop.f32.mrb[0].mxu0
    %2515 = vmatprep.mubr.f32.mxu0 0.0
    %2516 = vmatmul.mubr.f32.gmra.mrb[0].mxu0 %v2406
    %v2517 = vpop.f32.mrb[0].mxu0
    %v2518 = vadd.f32 0.0, %v2517
    %v2519 = vpop.f32.mrb[0].mxu0
    %2520 = vmatprep.mubr.f32.mxu0 0.0
    %2521 = vmatmul.mubr.f32.gmra.mrb[0].mxu0 %v2409
    %v2522 = vpop.f32.mrb[0].mxu0
    %v2523 = vadd.f32 0.0, %v2522
    %v2524 = vpop.f32.mrb[0].mxu0
    %2525 = vmatprep.mubr.f32.mxu0 0.0
    %2526 = vmatmul.mubr.f32.gmra.mrb[0].mxu0 %v2412
    %v2527 = vpop.f32.mrb[0].mxu0
    %v2528 = vadd.f32 0.0, %v2527
    %v2529 = vpop.f32.mrb[0].mxu0
    %2530 = vmatprep.mubr.f32.mxu0 0.0
    %2531 = vmatmul.mubr.f32.gmra.mrb[0].mxu0 %v2415
    %v2532 = vpop.f32.mrb[0].mxu0
    %v2533 = vadd.f32 0.0, %v2532
    %v2534 = vpop.f32.mrb[0].mxu0
    %2535 = vmatprep.mubr.f32.mxu0 0.0
    %2536 = vmatmul.mubr.f32.gmra.mrb[0].mxu0 %v2418
    %v2537 = vpop.f32.mrb[0].mxu0
    %v2538 = vadd.f32 0.0, %v2537
    %v2539 = vpop.f32.mrb[0].mxu0
    %2540 = vdwg.mxu0
    %v2541 = vsel %vm770, %v2503, -inf
    %2542 = vmax.xlane.f32.xlu0 %v2541
    %v2543 = vpop.xlane.xlu0 %2542
    %v2544 = vsel %vm770, %v2508, -inf
    %2545 = vmax.xlane.f32.xlu0 %v2544
    %v2546 = vpop.xlane.xlu0 %2545
    %v2547 = vsel %vm770, %v2513, -inf
    %2548 = vmax.xlane.f32.xlu0 %v2547
    %v2549 = vpop.xlane.xlu0 %2548
    %v2550 = vsel %vm770, %v2518, -inf
    %2551 = vmax.xlane.f32.xlu0 %v2550
    %v2552 = vpop.xlane.xlu0 %2551
    %v2553 = vsel %vm770, %v2523, -inf
    %2554 = vmax.xlane.f32.xlu0 %v2553
    %v2555 = vpop.xlane.xlu0 %2554
    %v2556 = vsel %vm770, %v2528, -inf
    %2557 = vmax.xlane.f32.xlu0 %v2556
    %v2558 = vpop.xlane.xlu0 %2557
    %v2559 = vsel %vm770, %v2533, -inf
    %2560 = vmax.xlane.f32.xlu0 %v2559
    %v2561 = vpop.xlane.xlu0 %2560
    %v2562 = vsel %vm770, %v2538, -inf
    %2563 = vmax.xlane.f32.xlu0 %v2562
    %v2564 = vpop.xlane.xlu0 %2563
    %v2565 = vsub.f32 %v2503, %v2543
    %v2566 = vsub.f32 %v2508, %v2546
    %v2567 = vsub.f32 %v2513, %v2549
    %v2568 = vsub.f32 %v2518, %v2552
    %v2569 = vsub.f32 %v2523, %v2555
    %v2570 = vsub.f32 %v2528, %v2558
    %v2571 = vsub.f32 %v2533, %v2561
    %v2572 = vsub.f32 %v2538, %v2564
    %v2573 = vmul.f32 %v2565, 1.442695
    %v2574 = vpow.pop %v2573
    %v2575 = vmul.f32 %v2566, 1.442695
    %v2576 = vpow.pop %v2575
    %v2577 = vmul.f32 %v2567, 1.442695
    %v2578 = vpow.pop %v2577
    %v2579 = vmul.f32 %v2568, 1.442695
    %v2580 = vpow.pop %v2579
    %v2581 = vmul.f32 %v2569, 1.442695
    %v2582 = vpow.pop %v2581
    %v2583 = vmul.f32 %v2570, 1.442695
    %v2584 = vpow.pop %v2583
    %v2585 = vmul.f32 %v2571, 1.442695
    %v2586 = vpow.pop %v2585
    %v2587 = vmul.f32 %v2572, 1.442695
    %v2588 = vpow.pop %v2587
    %v2589 = vsel %vm770, %v2574, 0.0
    %2590 = vadd.xlane.f32.xlu0 %v2589
    %v2591 = vpop.xlane.xlu0 %2590
    %v2592 = vsel %vm770, %v2576, 0.0
    %2593 = vadd.xlane.f32.xlu0 %v2592
    %v2594 = vpop.xlane.xlu0 %2593
    %v2595 = vsel %vm770, %v2578, 0.0
    %2596 = vadd.xlane.f32.xlu0 %v2595
    %v2597 = vpop.xlane.xlu0 %2596
    %v2598 = vsel %vm770, %v2580, 0.0
    %2599 = vadd.xlane.f32.xlu0 %v2598
    %v2600 = vpop.xlane.xlu0 %2599
    %v2601 = vsel %vm770, %v2582, 0.0
    %2602 = vadd.xlane.f32.xlu0 %v2601
    %v2603 = vpop.xlane.xlu0 %2602
    %v2604 = vsel %vm770, %v2584, 0.0
    %2605 = vadd.xlane.f32.xlu0 %v2604
    %v2606 = vpop.xlane.xlu0 %2605
    %v2607 = vsel %vm770, %v2586, 0.0
    %2608 = vadd.xlane.f32.xlu0 %v2607
    %v2609 = vpop.xlane.xlu0 %2608
    %v2610 = vsel %vm770, %v2588, 0.0
    %2611 = vadd.xlane.f32.xlu0 %v2610
    %v2612 = vpop.xlane.xlu0 %2611
    %v2613 = vrcp.pop %v2591
    %v2614 = vrcp.pop %v2594
    %v2615 = vrcp.pop %v2597
    %v2616 = vrcp.pop %v2600
    %v2617 = vrcp.pop %v2603
    %v2618 = vrcp.pop %v2606
    %v2619 = vrcp.pop %v2609
    %v2620 = vrcp.pop %v2612
    %v2621 = vmul.f32 %v2574, %v2613
    %v2622 = vmul.f32 %v2576, %v2614
    %v2623 = vmul.f32 %v2578, %v2615
    %v2624 = vmul.f32 %v2580, %v2616
    %v2625 = vmul.f32 %v2582, %v2617
    %v2626 = vmul.f32 %v2584, %v2618
    %v2627 = vmul.f32 %v2586, %v2619
    %v2628 = vmul.f32 %v2588, %v2620
    %2629 = vrot.lane.b32.xlu0 %v554, 64
    %v2630 = vpop.permute.xlu0 %2629
    %2631 = vrot.lane.b32.xlu0 %v559, 64
    %v2632 = vpop.permute.xlu0 %2631
    %2633 = vrot.lane.b32.xlu0 %v564, 64
    %v2634 = vpop.permute.xlu0 %2633
    %2635 = vrot.lane.b32.xlu0 %v569, 64
    %v2636 = vpop.permute.xlu0 %2635
    %2637 = vrot.lane.b32.xlu0 %v574, 64
    %v2638 = vpop.permute.xlu0 %2637
    %2639 = vrot.lane.b32.xlu0 %v579, 64
    %v2640 = vpop.permute.xlu0 %2639
    %2641 = vrot.lane.b32.xlu0 %v584, 64
    %v2642 = vpop.permute.xlu0 %2641
    %2643 = vrot.lane.b32.xlu0 %v589, 64
    %v2644 = vpop.permute.xlu0 %2643
    %v2654 = vsel %vm770, %v2621, 0
    %v2657 = vsel %vm770, %v2622, 0
    %v2660 = vsel %vm770, %v2623, 0
    %v2663 = vsel %vm770, %v2624, 0
    %v2666 = vsel %vm770, %v2625, 0
    %v2669 = vsel %vm770, %v2626, 0
    %v2672 = vsel %vm770, %v2627, 0
    %v2675 = vsel %vm770, %v2628, 0
    %2677 = vmatprep.subr.mxu0 0.0
    %2678 = vmatpush1.msra.mxu0 %v2630
    %2679 = vmatprep.subr.mxu0 0.0
    %2680 = vmatpush1.msra.mxu0 %v2632
    %2681 = vmatprep.subr.mxu0 0.0
    %2682 = vmatpush1.msra.mxu0 %v2634
    %2683 = vmatprep.subr.mxu0 0.0
    %2684 = vmatpush1.msra.mxu0 %v2636
    %2685 = vmatprep.subr.mxu0 0.0
    %2686 = vmatpush1.msra.mxu0 %v2638
    %2687 = vmatprep.subr.mxu0 0.0
    %2688 = vmatpush1.msra.mxu0 %v2640
    %2689 = vmatprep.subr.mxu0 0.0
    %2690 = vmatpush1.msra.mxu0 %v2642
    %2691 = vmatprep.subr.mxu0 0.0
    %2692 = vmatpush1.msra.mxu0 %v2644
    %2693 = vmatprep.subr.mxu0 0.0
    %2694 = vmatpush1.msra.mxu0 0.0
    %2695 = vmatprep.subr.mxu0 0.0
    %2696 = vmatpush1.msra.mxu0 0.0
    %2697 = vmatprep.subr.mxu0 0.0
    %2698 = vmatpush1.msra.mxu0 0.0
    %2699 = vmatprep.subr.mxu0 0.0
    %2700 = vmatpush1.msra.mxu0 0.0
    %2701 = vmatprep.subr.mxu0 0.0
    %2702 = vmatpush1.msra.mxu0 0.0
    %2703 = vmatprep.subr.mxu0 0.0
    %2704 = vmatpush1.msra.mxu0 0.0
    %2705 = vmatprep.subr.mxu0 0.0
    %2706 = vmatpush1.msra.mxu0 0.0
    %2707 = vmatprep.subr.mxu0 0.0
    %2708 = vmatpush1.msra.mxu0 0.0
    %2709 = vmatprep.subr.mxu0 0.0
    %2710 = vmatpush1.msra.mxu0 0.0
    %2711 = vmatprep.subr.mxu0 0.0
    %2712 = vmatpush1.msra.mxu0 0.0
    %2713 = vmatprep.subr.mxu0 0.0
    %2714 = vmatpush1.msra.mxu0 0.0
    %2715 = vmatprep.subr.mxu0 0.0
    %2716 = vmatpush1.msra.mxu0 0.0
    %2717 = vmatprep.subr.mxu0 0.0
    %2718 = vmatpush1.msra.mxu0 0.0
    %2719 = vmatprep.subr.mxu0 0.0
    %2720 = vmatpush1.msra.mxu0 0.0
    %2721 = vmatprep.subr.mxu0 0.0
    %2722 = vmatpush1.msra.mxu0 0.0
    %2723 = vmatprep.subr.mxu0 0.0
    %2724 = vmatpush1.msra.mxu0 0.0
    %2725 = vmatprep.subr.mxu0 0.0
    %2726 = vmatpush1.msra.mxu0 0.0
    %2727 = vmatprep.subr.mxu0 0.0
    %2728 = vmatpush1.msra.mxu0 0.0
    %2729 = vmatprep.subr.mxu0 0.0
    %2730 = vmatpush1.msra.mxu0 0.0
    %2731 = vmatprep.subr.mxu0 0.0
    %2732 = vmatpush1.msra.mxu0 0.0
    %2733 = vmatprep.subr.mxu0 0.0
    %2734 = vmatpush1.msra.mxu0 0.0
    %2735 = vmatprep.subr.mxu0 0.0
    %2736 = vmatpush1.msra.mxu0 0.0
    %2737 = vmatprep.subr.mxu0 0.0
    %2738 = vmatpush1.msra.mxu0 0.0
    %2739 = vmatprep.subr.mxu0 0.0
    %2740 = vmatpush1.msra.mxu0 0.0
    %2741 = vmatprep.mubr.f32.mxu0 0.0
    %2742 = vmatmul.mubr.f32.gmra.mrb[0].mxu0 %v2654
    %v2743 = vpop.f32.mrb[0].mxu0
    %v2744 = vadd.f32 0.0, %v2743
    %v2745 = vpop.f32.mrb[0].mxu0
    %2746 = vmatprep.mubr.f32.mxu0 0.0
    %2747 = vmatmul.mubr.f32.gmra.mrb[0].mxu0 %v2657
    %v2748 = vpop.f32.mrb[0].mxu0
    %v2749 = vadd.f32 0.0, %v2748
    %v2750 = vpop.f32.mrb[0].mxu0
    %2751 = vmatprep.mubr.f32.mxu0 0.0
    %2752 = vmatmul.mubr.f32.gmra.mrb[0].mxu0 %v2660
    %v2753 = vpop.f32.mrb[0].mxu0
    %v2754 = vadd.f32 0.0, %v2753
    %v2755 = vpop.f32.mrb[0].mxu0
    %2756 = vmatprep.mubr.f32.mxu0 0.0
    %2757 = vmatmul.mubr.f32.gmra.mrb[0].mxu0 %v2663
    %v2758 = vpop.f32.mrb[0].mxu0
    %v2759 = vadd.f32 0.0, %v2758
    %v2760 = vpop.f32.mrb[0].mxu0
    %2761 = vmatprep.mubr.f32.mxu0 0.0
    %2762 = vmatmul.mubr.f32.gmra.mrb[0].mxu0 %v2666
    %v2763 = vpop.f32.mrb[0].mxu0
    %v2764 = vadd.f32 0.0, %v2763
    %v2765 = vpop.f32.mrb[0].mxu0
    %2766 = vmatprep.mubr.f32.mxu0 0.0
    %2767 = vmatmul.mubr.f32.gmra.mrb[0].mxu0 %v2669
    %v2768 = vpop.f32.mrb[0].mxu0
    %v2769 = vadd.f32 0.0, %v2768
    %v2770 = vpop.f32.mrb[0].mxu0
    %2771 = vmatprep.mubr.f32.mxu0 0.0
    %2772 = vmatmul.mubr.f32.gmra.mrb[0].mxu0 %v2672
    %v2773 = vpop.f32.mrb[0].mxu0
    %v2774 = vadd.f32 0.0, %v2773
    %v2775 = vpop.f32.mrb[0].mxu0
    %2776 = vmatprep.mubr.f32.mxu0 0.0
    %2777 = vmatmul.mubr.f32.gmra.mrb[0].mxu0 %v2675
    %v2778 = vpop.f32.mrb[0].mxu0
    %v2779 = vadd.f32 0.0, %v2778
    %v2780 = vpop.f32.mrb[0].mxu0
    %2781 = vdwg.mxu0
    %2782 = vrot.lane.b32.xlu0 %v2364, 120
    %v2783 = vpop.permute.xlu0 %2782
    %2784 = vrot.lane.b32.xlu0 %v2365, 120
    %v2785 = vpop.permute.xlu0 %2784
    %2786 = vrot.lane.b32.xlu0 %v2366, 120
    %v2787 = vpop.permute.xlu0 %2786
    %2788 = vrot.lane.b32.xlu0 %v2367, 120
    %v2789 = vpop.permute.xlu0 %2788
    %2790 = vrot.lane.b32.xlu0 %v2368, 120
    %v2791 = vpop.permute.xlu0 %2790
    %2792 = vrot.lane.b32.xlu0 %v2369, 120
    %v2793 = vpop.permute.xlu0 %2792
    %2794 = vrot.lane.b32.xlu0 %v2370, 120
    %v2795 = vpop.permute.xlu0 %2794
    %2796 = vrot.lane.b32.xlu0 %v2371, 120
    %v2797 = vpop.permute.xlu0 %2796
    %2798 = vrot.lane.b32.xlu0 %v554, 88
    %v2799 = vpop.permute.xlu0 %2798
    %2800 = vrot.lane.b32.xlu0 %v559, 88
    %v2801 = vpop.permute.xlu0 %2800
    %2802 = vrot.lane.b32.xlu0 %v564, 88
    %v2803 = vpop.permute.xlu0 %2802
    %2804 = vrot.lane.b32.xlu0 %v569, 88
    %v2805 = vpop.permute.xlu0 %2804
    %2806 = vrot.lane.b32.xlu0 %v574, 88
    %v2807 = vpop.permute.xlu0 %2806
    %2808 = vrot.lane.b32.xlu0 %v579, 88
    %v2809 = vpop.permute.xlu0 %2808
    %2810 = vrot.lane.b32.xlu0 %v584, 88
    %v2811 = vpop.permute.xlu0 %2810
    %2812 = vrot.lane.b32.xlu0 %v589, 88
    %v2813 = vpop.permute.xlu0 %2812
    %v2814 = vsel %vm624, %v2783, 0
    %v2816 = vsel %vm624, %v2785, 0
    %v2818 = vsel %vm624, %v2787, 0
    %v2820 = vsel %vm624, %v2789, 0
    %v2822 = vsel %vm624, %v2791, 0
    %v2824 = vsel %vm624, %v2793, 0
    %v2826 = vsel %vm624, %v2795, 0
    %v2828 = vsel %vm624, %v2797, 0
    %v2830 = vsel %vm624, %v2799, 0
    %v2832 = vsel %vm624, %v2801, 0
    %v2834 = vsel %vm624, %v2803, 0
    %v2836 = vsel %vm624, %v2805, 0
    %v2838 = vsel %vm624, %v2807, 0
    %v2840 = vsel %vm624, %v2809, 0
    %v2842 = vsel %vm624, %v2811, 0
    %v2844 = vsel %vm624, %v2813, 0
    %2846 = vmatprep.subr.mxu0 0.0
    %2847 = vmatpush1.xpose.msra.mxu0 %v2830
    %2848 = vmatprep.subr.mxu0 0.0
    %2849 = vmatpush1.xpose.msra.mxu0 %v2832
    %2850 = vmatprep.subr.mxu0 0.0
    %2851 = vmatpush1.xpose.msra.mxu0 %v2834
    %2852 = vmatprep.subr.mxu0 0.0
    %2853 = vmatpush1.xpose.msra.mxu0 %v2836
    %2854 = vmatprep.subr.mxu0 0.0
    %2855 = vmatpush1.xpose.msra.mxu0 %v2838
    %2856 = vmatprep.subr.mxu0 0.0
    %2857 = vmatpush1.xpose.msra.mxu0 %v2840
    %2858 = vmatprep.subr.mxu0 0.0
    %2859 = vmatpush1.xpose.msra.mxu0 %v2842
    %2860 = vmatprep.subr.mxu0 0.0
    %2861 = vmatpush1.xpose.msra.mxu0 %v2844
    %2862 = vmatprep.subr.mxu0 0.0
    %2863 = vmatpush1.xpose.msra.mxu0 0.0
    %2864 = vmatprep.subr.mxu0 0.0
    %2865 = vmatpush1.xpose.msra.mxu0 0.0
    %2866 = vmatprep.subr.mxu0 0.0
    %2867 = vmatpush1.xpose.msra.mxu0 0.0
    %2868 = vmatprep.subr.mxu0 0.0
    %2869 = vmatpush1.xpose.msra.mxu0 0.0
    %2870 = vmatprep.subr.mxu0 0.0
    %2871 = vmatpush1.xpose.msra.mxu0 0.0
    %2872 = vmatprep.subr.mxu0 0.0
    %2873 = vmatpush1.xpose.msra.mxu0 0.0
    %2874 = vmatprep.subr.mxu0 0.0
    %2875 = vmatpush1.xpose.msra.mxu0 0.0
    %2876 = vmatprep.subr.mxu0 0.0
    %2877 = vmatpush1.xpose.msra.mxu0 0.0
    %2878 = vmatprep.subr.mxu0 0.0
    %2879 = vmatpush1.xpose.msra.mxu0 0.0
    %2880 = vmatprep.subr.mxu0 0.0
    %2881 = vmatpush1.xpose.msra.mxu0 0.0
    %2882 = vmatprep.subr.mxu0 0.0
    %2883 = vmatpush1.xpose.msra.mxu0 0.0
    %2884 = vmatprep.subr.mxu0 0.0
    %2885 = vmatpush1.xpose.msra.mxu0 0.0
    %2886 = vmatprep.subr.mxu0 0.0
    %2887 = vmatpush1.xpose.msra.mxu0 0.0
    %2888 = vmatprep.subr.mxu0 0.0
    %2889 = vmatpush1.xpose.msra.mxu0 0.0
    %2890 = vmatprep.subr.mxu0 0.0
    %2891 = vmatpush1.xpose.msra.mxu0 0.0
    %2892 = vmatprep.subr.mxu0 0.0
    %2893 = vmatpush1.xpose.msra.mxu0 0.0
    %2894 = vmatprep.subr.mxu0 0.0
    %2895 = vmatpush1.xpose.msra.mxu0 0.0
    %2896 = vmatprep.subr.mxu0 0.0
    %2897 = vmatpush1.xpose.msra.mxu0 0.0
    %2898 = vmatprep.subr.mxu0 0.0
    %2899 = vmatpush1.xpose.msra.mxu0 0.0
    %2900 = vmatprep.subr.mxu0 0.0
    %2901 = vmatpush1.xpose.msra.mxu0 0.0
    %2902 = vmatprep.subr.mxu0 0.0
    %2903 = vmatpush1.xpose.msra.mxu0 0.0
    %2904 = vmatprep.subr.mxu0 0.0
    %2905 = vmatpush1.xpose.msra.mxu0 0.0
    %2906 = vmatprep.subr.mxu0 0.0
    %2907 = vmatpush1.xpose.msra.mxu0 0.0
    %2908 = vmatprep.subr.mxu0 0.0
    %2909 = vmatpush1.xpose.msra.mxu0 0.0
    %2910 = vmatprep.mubr.f32.mxu0 0.0
    %2911 = vmatmul.mubr.f32.gmra.mrb[0].mxu0 %v2814
    %v2912 = vpop.f32.mrb[0].mxu0
    %v2913 = vadd.f32 0.0, %v2912
    %v2914 = vpop.f32.mrb[0].mxu0
    %2915 = vmatprep.mubr.f32.mxu0 0.0
    %2916 = vmatmul.mubr.f32.gmra.mrb[0].mxu0 %v2816
    %v2917 = vpop.f32.mrb[0].mxu0
    %v2918 = vadd.f32 0.0, %v2917
    %v2919 = vpop.f32.mrb[0].mxu0
    %2920 = vmatprep.mubr.f32.mxu0 0.0
    %2921 = vmatmul.mubr.f32.gmra.mrb[0].mxu0 %v2818
    %v2922 = vpop.f32.mrb[0].mxu0
    %v2923 = vadd.f32 0.0, %v2922
    %v2924 = vpop.f32.mrb[0].mxu0
    %2925 = vmatprep.mubr.f32.mxu0 0.0
    %2926 = vmatmul.mubr.f32.gmra.mrb[0].mxu0 %v2820
    %v2927 = vpop.f32.mrb[0].mxu0
    %v2928 = vadd.f32 0.0, %v2927
    %v2929 = vpop.f32.mrb[0].mxu0
    %2930 = vmatprep.mubr.f32.mxu0 0.0
    %2931 = vmatmul.mubr.f32.gmra.mrb[0].mxu0 %v2822
    %v2932 = vpop.f32.mrb[0].mxu0
    %v2933 = vadd.f32 0.0, %v2932
    %v2934 = vpop.f32.mrb[0].mxu0
    %2935 = vmatprep.mubr.f32.mxu0 0.0
    %2936 = vmatmul.mubr.f32.gmra.mrb[0].mxu0 %v2824
    %v2937 = vpop.f32.mrb[0].mxu0
    %v2938 = vadd.f32 0.0, %v2937
    %v2939 = vpop.f32.mrb[0].mxu0
    %2940 = vmatprep.mubr.f32.mxu0 0.0
    %2941 = vmatmul.mubr.f32.gmra.mrb[0].mxu0 %v2826
    %v2942 = vpop.f32.mrb[0].mxu0
    %v2943 = vadd.f32 0.0, %v2942
    %v2944 = vpop.f32.mrb[0].mxu0
    %2945 = vmatprep.mubr.f32.mxu0 0.0
    %2946 = vmatmul.mubr.f32.gmra.mrb[0].mxu0 %v2828
    %v2947 = vpop.f32.mrb[0].mxu0
    %v2948 = vadd.f32 0.0, %v2947
    %v2949 = vpop.f32.mrb[0].mxu0
    %2950 = vdwg.mxu0
    %v2951 = vsel %vm770, %v2913, -inf
    %2952 = vmax.xlane.f32.xlu0 %v2951
    %v2953 = vpop.xlane.xlu0 %2952
    %v2954 = vsel %vm770, %v2918, -inf
    %2955 = vmax.xlane.f32.xlu0 %v2954
    %v2956 = vpop.xlane.xlu0 %2955
    %v2957 = vsel %vm770, %v2923, -inf
    %2958 = vmax.xlane.f32.xlu0 %v2957
    %v2959 = vpop.xlane.xlu0 %2958
    %v2960 = vsel %vm770, %v2928, -inf
    %2961 = vmax.xlane.f32.xlu0 %v2960
    %v2962 = vpop.xlane.xlu0 %2961
    %v2963 = vsel %vm770, %v2933, -inf
    %2964 = vmax.xlane.f32.xlu0 %v2963
    %v2965 = vpop.xlane.xlu0 %2964
    %v2966 = vsel %vm770, %v2938, -inf
    %2967 = vmax.xlane.f32.xlu0 %v2966
    %v2968 = vpop.xlane.xlu0 %2967
    %v2969 = vsel %vm770, %v2943, -inf
    %2970 = vmax.xlane.f32.xlu0 %v2969
    %v2971 = vpop.xlane.xlu0 %2970
    %v2972 = vsel %vm770, %v2948, -inf
    %2973 = vmax.xlane.f32.xlu0 %v2972
    %v2974 = vpop.xlane.xlu0 %2973
    %v2975 = vsub.f32 %v2913, %v2953
    %v2976 = vsub.f32 %v2918, %v2956
    %v2977 = vsub.f32 %v2923, %v2959
    %v2978 = vsub.f32 %v2928, %v2962
    %v2979 = vsub.f32 %v2933, %v2965
    %v2980 = vsub.f32 %v2938, %v2968
    %v2981 = vsub.f32 %v2943, %v2971
    %v2982 = vsub.f32 %v2948, %v2974
    %v2983 = vmul.f32 %v2975, 1.442695
    %v2984 = vpow.pop %v2983
    %v2985 = vmul.f32 %v2976, 1.442695
    %v2986 = vpow.pop %v2985
    %v2987 = vmul.f32 %v2977, 1.442695
    %v2988 = vpow.pop %v2987
    %v2989 = vmul.f32 %v2978, 1.442695
    %v2990 = vpow.pop %v2989
    %v2991 = vmul.f32 %v2979, 1.442695
    %v2992 = vpow.pop %v2991
    %v2993 = vmul.f32 %v2980, 1.442695
    %v2994 = vpow.pop %v2993
    %v2995 = vmul.f32 %v2981, 1.442695
    %v2996 = vpow.pop %v2995
    %v2997 = vmul.f32 %v2982, 1.442695
    %v2998 = vpow.pop %v2997
    %v2999 = vsel %vm770, %v2984, 0.0
    %3000 = vadd.xlane.f32.xlu0 %v2999
    %v3001 = vpop.xlane.xlu0 %3000
    %v3002 = vsel %vm770, %v2986, 0.0
    %3003 = vadd.xlane.f32.xlu0 %v3002
    %v3004 = vpop.xlane.xlu0 %3003
    %v3005 = vsel %vm770, %v2988, 0.0
    %3006 = vadd.xlane.f32.xlu0 %v3005
    %v3007 = vpop.xlane.xlu0 %3006
    %v3008 = vsel %vm770, %v2990, 0.0
    %3009 = vadd.xlane.f32.xlu0 %v3008
    %v3010 = vpop.xlane.xlu0 %3009
    %v3011 = vsel %vm770, %v2992, 0.0
    %3012 = vadd.xlane.f32.xlu0 %v3011
    %v3013 = vpop.xlane.xlu0 %3012
    %v3014 = vsel %vm770, %v2994, 0.0
    %3015 = vadd.xlane.f32.xlu0 %v3014
    %v3016 = vpop.xlane.xlu0 %3015
    %v3017 = vsel %vm770, %v2996, 0.0
    %3018 = vadd.xlane.f32.xlu0 %v3017
    %v3019 = vpop.xlane.xlu0 %3018
    %v3020 = vsel %vm770, %v2998, 0.0
    %3021 = vadd.xlane.f32.xlu0 %v3020
    %v3022 = vpop.xlane.xlu0 %3021
    %v3023 = vrcp.pop %v3001
    %v3024 = vrcp.pop %v3004
    %v3025 = vrcp.pop %v3007
    %v3026 = vrcp.pop %v3010
    %v3027 = vrcp.pop %v3013
    %v3028 = vrcp.pop %v3016
    %v3029 = vrcp.pop %v3019
    %v3030 = vrcp.pop %v3022
    %v3031 = vmul.f32 %v2984, %v3023
    %v3032 = vmul.f32 %v2986, %v3024
    %v3033 = vmul.f32 %v2988, %v3025
    %v3034 = vmul.f32 %v2990, %v3026
    %v3035 = vmul.f32 %v2992, %v3027
    %v3036 = vmul.f32 %v2994, %v3028
    %v3037 = vmul.f32 %v2996, %v3029
    %v3038 = vmul.f32 %v2998, %v3030
    %3039 = vrot.lane.b32.xlu0 %v554, 56
    %v3040 = vpop.permute.xlu0 %3039
    %3041 = vrot.lane.b32.xlu0 %v559, 56
    %v3042 = vpop.permute.xlu0 %3041
    %3043 = vrot.lane.b32.xlu0 %v564, 56
    %v3044 = vpop.permute.xlu0 %3043
    %3045 = vrot.lane.b32.xlu0 %v569, 56
    %v3046 = vpop.permute.xlu0 %3045
    %3047 = vrot.lane.b32.xlu0 %v574, 56
    %v3048 = vpop.permute.xlu0 %3047
    %3049 = vrot.lane.b32.xlu0 %v579, 56
    %v3050 = vpop.permute.xlu0 %3049
    %3051 = vrot.lane.b32.xlu0 %v584, 56
    %v3052 = vpop.permute.xlu0 %3051
    %3053 = vrot.lane.b32.xlu0 %v589, 56
    %v3054 = vpop.permute.xlu0 %3053
    %v3064 = vsel %vm770, %v3031, 0
    %v3067 = vsel %vm770, %v3032, 0
    %v3070 = vsel %vm770, %v3033, 0
    %v3073 = vsel %vm770, %v3034, 0
    %v3076 = vsel %vm770, %v3035, 0
    %v3079 = vsel %vm770, %v3036, 0
    %v3082 = vsel %vm770, %v3037, 0
    %v3085 = vsel %vm770, %v3038, 0
    %3087 = vmatprep.subr.mxu0 0.0
    %3088 = vmatpush1.msra.mxu0 %v3040
    %3089 = vmatprep.subr.mxu0 0.0
    %3090 = vmatpush1.msra.mxu0 %v3042
    %3091 = vmatprep.subr.mxu0 0.0
    %3092 = vmatpush1.msra.mxu0 %v3044
    %3093 = vmatprep.subr.mxu0 0.0
    %3094 = vmatpush1.msra.mxu0 %v3046
    %3095 = vmatprep.subr.mxu0 0.0
    %3096 = vmatpush1.msra.mxu0 %v3048
    %3097 = vmatprep.subr.mxu0 0.0
    %3098 = vmatpush1.msra.mxu0 %v3050
    %3099 = vmatprep.subr.mxu0 0.0
    %3100 = vmatpush1.msra.mxu0 %v3052
    %3101 = vmatprep.subr.mxu0 0.0
    %3102 = vmatpush1.msra.mxu0 %v3054
    %3103 = vmatprep.subr.mxu0 0.0
    %3104 = vmatpush1.msra.mxu0 0.0
    %3105 = vmatprep.subr.mxu0 0.0
    %3106 = vmatpush1.msra.mxu0 0.0
    %3107 = vmatprep.subr.mxu0 0.0
    %3108 = vmatpush1.msra.mxu0 0.0
    %3109 = vmatprep.subr.mxu0 0.0
    %3110 = vmatpush1.msra.mxu0 0.0
    %3111 = vmatprep.subr.mxu0 0.0
    %3112 = vmatpush1.msra.mxu0 0.0
    %3113 = vmatprep.subr.mxu0 0.0
    %3114 = vmatpush1.msra.mxu0 0.0
    %3115 = vmatprep.subr.mxu0 0.0
    %3116 = vmatpush1.msra.mxu0 0.0
    %3117 = vmatprep.subr.mxu0 0.0
    %3118 = vmatpush1.msra.mxu0 0.0
    %3119 = vmatprep.subr.mxu0 0.0
    %3120 = vmatpush1.msra.mxu0 0.0
    %3121 = vmatprep.subr.mxu0 0.0
    %3122 = vmatpush1.msra.mxu0 0.0
    %3123 = vmatprep.subr.mxu0 0.0
    %3124 = vmatpush1.msra.mxu0 0.0
    %3125 = vmatprep.subr.mxu0 0.0
    %3126 = vmatpush1.msra.mxu0 0.0
    %3127 = vmatprep.subr.mxu0 0.0
    %3128 = vmatpush1.msra.mxu0 0.0
    %3129 = vmatprep.subr.mxu0 0.0
    %3130 = vmatpush1.msra.mxu0 0.0
    %3131 = vmatprep.subr.mxu0 0.0
    %3132 = vmatpush1.msra.mxu0 0.0
    %3133 = vmatprep.subr.mxu0 0.0
    %3134 = vmatpush1.msra.mxu0 0.0
    %3135 = vmatprep.subr.mxu0 0.0
    %3136 = vmatpush1.msra.mxu0 0.0
    %3137 = vmatprep.subr.mxu0 0.0
    %3138 = vmatpush1.msra.mxu0 0.0
    %3139 = vmatprep.subr.mxu0 0.0
    %3140 = vmatpush1.msra.mxu0 0.0
    %3141 = vmatprep.subr.mxu0 0.0
    %3142 = vmatpush1.msra.mxu0 0.0
    %3143 = vmatprep.subr.mxu0 0.0
    %3144 = vmatpush1.msra.mxu0 0.0
    %3145 = vmatprep.subr.mxu0 0.0
    %3146 = vmatpush1.msra.mxu0 0.0
    %3147 = vmatprep.subr.mxu0 0.0
    %3148 = vmatpush1.msra.mxu0 0.0
    %3149 = vmatprep.subr.mxu0 0.0
    %3150 = vmatpush1.msra.mxu0 0.0
    %3151 = vmatprep.mubr.f32.mxu0 0.0
    %3152 = vmatmul.mubr.f32.gmra.mrb[0].mxu0 %v3064
    %v3153 = vpop.f32.mrb[0].mxu0
    %v3154 = vadd.f32 0.0, %v3153
    %v3155 = vpop.f32.mrb[0].mxu0
    %3156 = vmatprep.mubr.f32.mxu0 0.0
    %3157 = vmatmul.mubr.f32.gmra.mrb[0].mxu0 %v3067
    %v3158 = vpop.f32.mrb[0].mxu0
    %v3159 = vadd.f32 0.0, %v3158
    %v3160 = vpop.f32.mrb[0].mxu0
    %3161 = vmatprep.mubr.f32.mxu0 0.0
    %3162 = vmatmul.mubr.f32.gmra.mrb[0].mxu0 %v3070
    %v3163 = vpop.f32.mrb[0].mxu0
    %v3164 = vadd.f32 0.0, %v3163
    %v3165 = vpop.f32.mrb[0].mxu0
    %3166 = vmatprep.mubr.f32.mxu0 0.0
    %3167 = vmatmul.mubr.f32.gmra.mrb[0].mxu0 %v3073
    %v3168 = vpop.f32.mrb[0].mxu0
    %v3169 = vadd.f32 0.0, %v3168
    %v3170 = vpop.f32.mrb[0].mxu0
    %3171 = vmatprep.mubr.f32.mxu0 0.0
    %3172 = vmatmul.mubr.f32.gmra.mrb[0].mxu0 %v3076
    %v3173 = vpop.f32.mrb[0].mxu0
    %v3174 = vadd.f32 0.0, %v3173
    %v3175 = vpop.f32.mrb[0].mxu0
    %3176 = vmatprep.mubr.f32.mxu0 0.0
    %3177 = vmatmul.mubr.f32.gmra.mrb[0].mxu0 %v3079
    %v3178 = vpop.f32.mrb[0].mxu0
    %v3179 = vadd.f32 0.0, %v3178
    %v3180 = vpop.f32.mrb[0].mxu0
    %3181 = vmatprep.mubr.f32.mxu0 0.0
    %3182 = vmatmul.mubr.f32.gmra.mrb[0].mxu0 %v3082
    %v3183 = vpop.f32.mrb[0].mxu0
    %v3184 = vadd.f32 0.0, %v3183
    %v3185 = vpop.f32.mrb[0].mxu0
    %3186 = vmatprep.mubr.f32.mxu0 0.0
    %3187 = vmatmul.mubr.f32.gmra.mrb[0].mxu0 %v3085
    %v3188 = vpop.f32.mrb[0].mxu0
    %v3189 = vadd.f32 0.0, %v3188
    %v3190 = vpop.f32.mrb[0].mxu0
    %3191 = vdwg.mxu0
    %3192 = vrot.lane.b32.xlu0 %v2364, 112
    %v3193 = vpop.permute.xlu0 %3192
    %3194 = vrot.lane.b32.xlu0 %v2365, 112
    %v3195 = vpop.permute.xlu0 %3194
    %3196 = vrot.lane.b32.xlu0 %v2366, 112
    %v3197 = vpop.permute.xlu0 %3196
    %3198 = vrot.lane.b32.xlu0 %v2367, 112
    %v3199 = vpop.permute.xlu0 %3198
    %3200 = vrot.lane.b32.xlu0 %v2368, 112
    %v3201 = vpop.permute.xlu0 %3200
    %3202 = vrot.lane.b32.xlu0 %v2369, 112
    %v3203 = vpop.permute.xlu0 %3202
    %3204 = vrot.lane.b32.xlu0 %v2370, 112
    %v3205 = vpop.permute.xlu0 %3204
    %3206 = vrot.lane.b32.xlu0 %v2371, 112
    %v3207 = vpop.permute.xlu0 %3206
    %3208 = vrot.lane.b32.xlu0 %v554, 80
    %v3209 = vpop.permute.xlu0 %3208
    %3210 = vrot.lane.b32.xlu0 %v559, 80
    %v3211 = vpop.permute.xlu0 %3210
    %3212 = vrot.lane.b32.xlu0 %v564, 80
    %v3213 = vpop.permute.xlu0 %3212
    %3214 = vrot.lane.b32.xlu0 %v569, 80
    %v3215 = vpop.permute.xlu0 %3214
    %3216 = vrot.lane.b32.xlu0 %v574, 80
    %v3217 = vpop.permute.xlu0 %3216
    %3218 = vrot.lane.b32.xlu0 %v579, 80
    %v3219 = vpop.permute.xlu0 %3218
    %3220 = vrot.lane.b32.xlu0 %v584, 80
    %v3221 = vpop.permute.xlu0 %3220
    %3222 = vrot.lane.b32.xlu0 %v589, 80
    %v3223 = vpop.permute.xlu0 %3222
    %v3224 = vsel %vm624, %v3193, 0
    %v3226 = vsel %vm624, %v3195, 0
    %v3228 = vsel %vm624, %v3197, 0
    %v3230 = vsel %vm624, %v3199, 0
    %v3232 = vsel %vm624, %v3201, 0
    %v3234 = vsel %vm624, %v3203, 0
    %v3236 = vsel %vm624, %v3205, 0
    %v3238 = vsel %vm624, %v3207, 0
    %v3240 = vsel %vm624, %v3209, 0
    %v3242 = vsel %vm624, %v3211, 0
    %v3244 = vsel %vm624, %v3213, 0
    %v3246 = vsel %vm624, %v3215, 0
    %v3248 = vsel %vm624, %v3217, 0
    %v3250 = vsel %vm624, %v3219, 0
    %v3252 = vsel %vm624, %v3221, 0
    %v3254 = vsel %vm624, %v3223, 0
    %3256 = vmatprep.subr.mxu0 0.0
    %3257 = vmatpush1.xpose.msra.mxu0 %v3240
    %3258 = vmatprep.subr.mxu0 0.0
    %3259 = vmatpush1.xpose.msra.mxu0 %v3242
    %3260 = vmatprep.subr.mxu0 0.0
    %3261 = vmatpush1.xpose.msra.mxu0 %v3244
    %3262 = vmatprep.subr.mxu0 0.0
    %3263 = vmatpush1.xpose.msra.mxu0 %v3246
    %3264 = vmatprep.subr.mxu0 0.0
    %3265 = vmatpush1.xpose.msra.mxu0 %v3248
    %3266 = vmatprep.subr.mxu0 0.0
    %3267 = vmatpush1.xpose.msra.mxu0 %v3250
    %3268 = vmatprep.subr.mxu0 0.0
    %3269 = vmatpush1.xpose.msra.mxu0 %v3252
    %3270 = vmatprep.subr.mxu0 0.0
    %3271 = vmatpush1.xpose.msra.mxu0 %v3254
    %3272 = vmatprep.subr.mxu0 0.0
    %3273 = vmatpush1.xpose.msra.mxu0 0.0
    %3274 = vmatprep.subr.mxu0 0.0
    %3275 = vmatpush1.xpose.msra.mxu0 0.0
    %3276 = vmatprep.subr.mxu0 0.0
    %3277 = vmatpush1.xpose.msra.mxu0 0.0
    %3278 = vmatprep.subr.mxu0 0.0
    %3279 = vmatpush1.xpose.msra.mxu0 0.0
    %3280 = vmatprep.subr.mxu0 0.0
    %3281 = vmatpush1.xpose.msra.mxu0 0.0
    %3282 = vmatprep.subr.mxu0 0.0
    %3283 = vmatpush1.xpose.msra.mxu0 0.0
    %3284 = vmatprep.subr.mxu0 0.0
    %3285 = vmatpush1.xpose.msra.mxu0 0.0
    %3286 = vmatprep.subr.mxu0 0.0
    %3287 = vmatpush1.xpose.msra.mxu0 0.0
    %3288 = vmatprep.subr.mxu0 0.0
    %3289 = vmatpush1.xpose.msra.mxu0 0.0
    %3290 = vmatprep.subr.mxu0 0.0
    %3291 = vmatpush1.xpose.msra.mxu0 0.0
    %3292 = vmatprep.subr.mxu0 0.0
    %3293 = vmatpush1.xpose.msra.mxu0 0.0
    %3294 = vmatprep.subr.mxu0 0.0
    %3295 = vmatpush1.xpose.msra.mxu0 0.0
    %3296 = vmatprep.subr.mxu0 0.0
    %3297 = vmatpush1.xpose.msra.mxu0 0.0
    %3298 = vmatprep.subr.mxu0 0.0
    %3299 = vmatpush1.xpose.msra.mxu0 0.0
    %3300 = vmatprep.subr.mxu0 0.0
    %3301 = vmatpush1.xpose.msra.mxu0 0.0
    %3302 = vmatprep.subr.mxu0 0.0
    %3303 = vmatpush1.xpose.msra.mxu0 0.0
    %3304 = vmatprep.subr.mxu0 0.0
    %3305 = vmatpush1.xpose.msra.mxu0 0.0
    %3306 = vmatprep.subr.mxu0 0.0
    %3307 = vmatpush1.xpose.msra.mxu0 0.0
    %3308 = vmatprep.subr.mxu0 0.0
    %3309 = vmatpush1.xpose.msra.mxu0 0.0
    %3310 = vmatprep.subr.mxu0 0.0
    %3311 = vmatpush1.xpose.msra.mxu0 0.0
    %3312 = vmatprep.subr.mxu0 0.0
    %3313 = vmatpush1.xpose.msra.mxu0 0.0
    %3314 = vmatprep.subr.mxu0 0.0
    %3315 = vmatpush1.xpose.msra.mxu0 0.0
    %3316 = vmatprep.subr.mxu0 0.0
    %3317 = vmatpush1.xpose.msra.mxu0 0.0
    %3318 = vmatprep.subr.mxu0 0.0
    %3319 = vmatpush1.xpose.msra.mxu0 0.0
    %3320 = vmatprep.mubr.f32.mxu0 0.0
    %3321 = vmatmul.mubr.f32.gmra.mrb[0].mxu0 %v3224
    %v3322 = vpop.f32.mrb[0].mxu0
    %v3323 = vadd.f32 0.0, %v3322
    %v3324 = vpop.f32.mrb[0].mxu0
    %3325 = vmatprep.mubr.f32.mxu0 0.0
    %3326 = vmatmul.mubr.f32.gmra.mrb[0].mxu0 %v3226
    %v3327 = vpop.f32.mrb[0].mxu0
    %v3328 = vadd.f32 0.0, %v3327
    %v3329 = vpop.f32.mrb[0].mxu0
    %3330 = vmatprep.mubr.f32.mxu0 0.0
    %3331 = vmatmul.mubr.f32.gmra.mrb[0].mxu0 %v3228
    %v3332 = vpop.f32.mrb[0].mxu0
    %v3333 = vadd.f32 0.0, %v3332
    %v3334 = vpop.f32.mrb[0].mxu0
    %3335 = vmatprep.mubr.f32.mxu0 0.0
    %3336 = vmatmul.mubr.f32.gmra.mrb[0].mxu0 %v3230
    %v3337 = vpop.f32.mrb[0].mxu0
    %v3338 = vadd.f32 0.0, %v3337
    %v3339 = vpop.f32.mrb[0].mxu0
    %3340 = vmatprep.mubr.f32.mxu0 0.0
    %3341 = vmatmul.mubr.f32.gmra.mrb[0].mxu0 %v3232
    %v3342 = vpop.f32.mrb[0].mxu0
    %v3343 = vadd.f32 0.0, %v3342
    %v3344 = vpop.f32.mrb[0].mxu0
    %3345 = vmatprep.mubr.f32.mxu0 0.0
    %3346 = vmatmul.mubr.f32.gmra.mrb[0].mxu0 %v3234
    %v3347 = vpop.f32.mrb[0].mxu0
    %v3348 = vadd.f32 0.0, %v3347
    %v3349 = vpop.f32.mrb[0].mxu0
    %3350 = vmatprep.mubr.f32.mxu0 0.0
    %3351 = vmatmul.mubr.f32.gmra.mrb[0].mxu0 %v3236
    %v3352 = vpop.f32.mrb[0].mxu0
    %v3353 = vadd.f32 0.0, %v3352
    %v3354 = vpop.f32.mrb[0].mxu0
    %3355 = vmatprep.mubr.f32.mxu0 0.0
    %3356 = vmatmul.mubr.f32.gmra.mrb[0].mxu0 %v3238
    %v3357 = vpop.f32.mrb[0].mxu0
    %v3358 = vadd.f32 0.0, %v3357
    %v3359 = vpop.f32.mrb[0].mxu0
    %3360 = vdwg.mxu0
    %v3361 = vsel %vm770, %v3323, -inf
    %3362 = vmax.xlane.f32.xlu0 %v3361
    %v3363 = vpop.xlane.xlu0 %3362
    %v3364 = vsel %vm770, %v3328, -inf
    %3365 = vmax.xlane.f32.xlu0 %v3364
    %v3366 = vpop.xlane.xlu0 %3365
    %v3367 = vsel %vm770, %v3333, -inf
    %3368 = vmax.xlane.f32.xlu0 %v3367
    %v3369 = vpop.xlane.xlu0 %3368
    %v3370 = vsel %vm770, %v3338, -inf
    %3371 = vmax.xlane.f32.xlu0 %v3370
    %v3372 = vpop.xlane.xlu0 %3371
    %v3373 = vsel %vm770, %v3343, -inf
    %3374 = vmax.xlane.f32.xlu0 %v3373
    %v3375 = vpop.xlane.xlu0 %3374
    %v3376 = vsel %vm770, %v3348, -inf
    %3377 = vmax.xlane.f32.xlu0 %v3376
    %v3378 = vpop.xlane.xlu0 %3377
    %v3379 = vsel %vm770, %v3353, -inf
    %3380 = vmax.xlane.f32.xlu0 %v3379
    %v3381 = vpop.xlane.xlu0 %3380
    %v3382 = vsel %vm770, %v3358, -inf
    %3383 = vmax.xlane.f32.xlu0 %v3382
    %v3384 = vpop.xlane.xlu0 %3383
    %v3385 = vsub.f32 %v3323, %v3363
    %v3386 = vsub.f32 %v3328, %v3366
    %v3387 = vsub.f32 %v3333, %v3369
    %v3388 = vsub.f32 %v3338, %v3372
    %v3389 = vsub.f32 %v3343, %v3375
    %v3390 = vsub.f32 %v3348, %v3378
    %v3391 = vsub.f32 %v3353, %v3381
    %v3392 = vsub.f32 %v3358, %v3384
    %v3393 = vmul.f32 %v3385, 1.442695
    %v3394 = vpow.pop %v3393
    %v3395 = vmul.f32 %v3386, 1.442695
    %v3396 = vpow.pop %v3395
    %v3397 = vmul.f32 %v3387, 1.442695
    %v3398 = vpow.pop %v3397
    %v3399 = vmul.f32 %v3388, 1.442695
    %v3400 = vpow.pop %v3399
    %v3401 = vmul.f32 %v3389, 1.442695
    %v3402 = vpow.pop %v3401
    %v3403 = vmul.f32 %v3390, 1.442695
    %v3404 = vpow.pop %v3403
    %v3405 = vmul.f32 %v3391, 1.442695
    %v3406 = vpow.pop %v3405
    %v3407 = vmul.f32 %v3392, 1.442695
    %v3408 = vpow.pop %v3407
    %v3409 = vsel %vm770, %v3394, 0.0
    %3410 = vadd.xlane.f32.xlu0 %v3409
    %v3411 = vpop.xlane.xlu0 %3410
    %v3412 = vsel %vm770, %v3396, 0.0
    %3413 = vadd.xlane.f32.xlu0 %v3412
    %v3414 = vpop.xlane.xlu0 %3413
    %v3415 = vsel %vm770, %v3398, 0.0
    %3416 = vadd.xlane.f32.xlu0 %v3415
    %v3417 = vpop.xlane.xlu0 %3416
    %v3418 = vsel %vm770, %v3400, 0.0
    %3419 = vadd.xlane.f32.xlu0 %v3418
    %v3420 = vpop.xlane.xlu0 %3419
    %v3421 = vsel %vm770, %v3402, 0.0
    %3422 = vadd.xlane.f32.xlu0 %v3421
    %v3423 = vpop.xlane.xlu0 %3422
    %v3424 = vsel %vm770, %v3404, 0.0
    %3425 = vadd.xlane.f32.xlu0 %v3424
    %v3426 = vpop.xlane.xlu0 %3425
    %v3427 = vsel %vm770, %v3406, 0.0
    %3428 = vadd.xlane.f32.xlu0 %v3427
    %v3429 = vpop.xlane.xlu0 %3428
    %v3430 = vsel %vm770, %v3408, 0.0
    %3431 = vadd.xlane.f32.xlu0 %v3430
    %v3432 = vpop.xlane.xlu0 %3431
    %v3433 = vrcp.pop %v3411
    %v3434 = vrcp.pop %v3414
    %v3435 = vrcp.pop %v3417
    %v3436 = vrcp.pop %v3420
    %v3437 = vrcp.pop %v3423
    %v3438 = vrcp.pop %v3426
    %v3439 = vrcp.pop %v3429
    %v3440 = vrcp.pop %v3432
    %v3441 = vmul.f32 %v3394, %v3433
    %v3442 = vmul.f32 %v3396, %v3434
    %v3443 = vmul.f32 %v3398, %v3435
    %v3444 = vmul.f32 %v3400, %v3436
    %v3445 = vmul.f32 %v3402, %v3437
    %v3446 = vmul.f32 %v3404, %v3438
    %v3447 = vmul.f32 %v3406, %v3439
    %v3448 = vmul.f32 %v3408, %v3440
    %3449 = vrot.lane.b32.xlu0 %v554, 48
    %v3450 = vpop.permute.xlu0 %3449
    %3451 = vrot.lane.b32.xlu0 %v559, 48
    %v3452 = vpop.permute.xlu0 %3451
    %3453 = vrot.lane.b32.xlu0 %v564, 48
    %v3454 = vpop.permute.xlu0 %3453
    %3455 = vrot.lane.b32.xlu0 %v569, 48
    %v3456 = vpop.permute.xlu0 %3455
    %3457 = vrot.lane.b32.xlu0 %v574, 48
    %v3458 = vpop.permute.xlu0 %3457
    %3459 = vrot.lane.b32.xlu0 %v579, 48
    %v3460 = vpop.permute.xlu0 %3459
    %3461 = vrot.lane.b32.xlu0 %v584, 48
    %v3462 = vpop.permute.xlu0 %3461
    %3463 = vrot.lane.b32.xlu0 %v589, 48
    %v3464 = vpop.permute.xlu0 %3463
    %v3474 = vsel %vm770, %v3441, 0
    %v3477 = vsel %vm770, %v3442, 0
    %v3480 = vsel %vm770, %v3443, 0
    %v3483 = vsel %vm770, %v3444, 0
    %v3486 = vsel %vm770, %v3445, 0
    %v3489 = vsel %vm770, %v3446, 0
    %v3492 = vsel %vm770, %v3447, 0
    %v3495 = vsel %vm770, %v3448, 0
    %3497 = vmatprep.subr.mxu0 0.0
    %3498 = vmatpush1.msra.mxu0 %v3450
    %3499 = vmatprep.subr.mxu0 0.0
    %3500 = vmatpush1.msra.mxu0 %v3452
    %3501 = vmatprep.subr.mxu0 0.0
    %3502 = vmatpush1.msra.mxu0 %v3454
    %3503 = vmatprep.subr.mxu0 0.0
    %3504 = vmatpush1.msra.mxu0 %v3456
    %3505 = vmatprep.subr.mxu0 0.0
    %3506 = vmatpush1.msra.mxu0 %v3458
    %3507 = vmatprep.subr.mxu0 0.0
    %3508 = vmatpush1.msra.mxu0 %v3460
    %3509 = vmatprep.subr.mxu0 0.0
    %3510 = vmatpush1.msra.mxu0 %v3462
    %3511 = vmatprep.subr.mxu0 0.0
    %3512 = vmatpush1.msra.mxu0 %v3464
    %3513 = vmatprep.subr.mxu0 0.0
    %3514 = vmatpush1.msra.mxu0 0.0
    %3515 = vmatprep.subr.mxu0 0.0
    %3516 = vmatpush1.msra.mxu0 0.0
    %3517 = vmatprep.subr.mxu0 0.0
    %3518 = vmatpush1.msra.mxu0 0.0
    %3519 = vmatprep.subr.mxu0 0.0
    %3520 = vmatpush1.msra.mxu0 0.0
    %3521 = vmatprep.subr.mxu0 0.0
    %3522 = vmatpush1.msra.mxu0 0.0
    %3523 = vmatprep.subr.mxu0 0.0
    %3524 = vmatpush1.msra.mxu0 0.0
    %3525 = vmatprep.subr.mxu0 0.0
    %3526 = vmatpush1.msra.mxu0 0.0
    %3527 = vmatprep.subr.mxu0 0.0
    %3528 = vmatpush1.msra.mxu0 0.0
    %3529 = vmatprep.subr.mxu0 0.0
    %3530 = vmatpush1.msra.mxu0 0.0
    %3531 = vmatprep.subr.mxu0 0.0
    %3532 = vmatpush1.msra.mxu0 0.0
    %3533 = vmatprep.subr.mxu0 0.0
    %3534 = vmatpush1.msra.mxu0 0.0
    %3535 = vmatprep.subr.mxu0 0.0
    %3536 = vmatpush1.msra.mxu0 0.0
    %3537 = vmatprep.subr.mxu0 0.0
    %3538 = vmatpush1.msra.mxu0 0.0
    %3539 = vmatprep.subr.mxu0 0.0
    %3540 = vmatpush1.msra.mxu0 0.0
    %3541 = vmatprep.subr.mxu0 0.0
    %3542 = vmatpush1.msra.mxu0 0.0
    %3543 = vmatprep.subr.mxu0 0.0
    %3544 = vmatpush1.msra.mxu0 0.0
    %3545 = vmatprep.subr.mxu0 0.0
    %3546 = vmatpush1.msra.mxu0 0.0
    %3547 = vmatprep.subr.mxu0 0.0
    %3548 = vmatpush1.msra.mxu0 0.0
    %3549 = vmatprep.subr.mxu0 0.0
    %3550 = vmatpush1.msra.mxu0 0.0
    %3551 = vmatprep.subr.mxu0 0.0
    %3552 = vmatpush1.msra.mxu0 0.0
    %3553 = vmatprep.subr.mxu0 0.0
    %3554 = vmatpush1.msra.mxu0 0.0
    %3555 = vmatprep.subr.mxu0 0.0
    %3556 = vmatpush1.msra.mxu0 0.0
    %3557 = vmatprep.subr.mxu0 0.0
    %3558 = vmatpush1.msra.mxu0 0.0
    %3559 = vmatprep.subr.mxu0 0.0
    %3560 = vmatpush1.msra.mxu0 0.0
    %3561 = vmatprep.mubr.f32.mxu0 0.0
    %3562 = vmatmul.mubr.f32.gmra.mrb[0].mxu0 %v3474
    %v3563 = vpop.f32.mrb[0].mxu0
    %v3564 = vadd.f32 0.0, %v3563
    %v3565 = vpop.f32.mrb[0].mxu0
    %3566 = vmatprep.mubr.f32.mxu0 0.0
    %3567 = vmatmul.mubr.f32.gmra.mrb[0].mxu0 %v3477
    %v3568 = vpop.f32.mrb[0].mxu0
    %v3569 = vadd.f32 0.0, %v3568
    %v3570 = vpop.f32.mrb[0].mxu0
    %3571 = vmatprep.mubr.f32.mxu0 0.0
    %3572 = vmatmul.mubr.f32.gmra.mrb[0].mxu0 %v3480
    %v3573 = vpop.f32.mrb[0].mxu0
    %v3574 = vadd.f32 0.0, %v3573
    %v3575 = vpop.f32.mrb[0].mxu0
    %3576 = vmatprep.mubr.f32.mxu0 0.0
    %3577 = vmatmul.mubr.f32.gmra.mrb[0].mxu0 %v3483
    %v3578 = vpop.f32.mrb[0].mxu0
    %v3579 = vadd.f32 0.0, %v3578
    %v3580 = vpop.f32.mrb[0].mxu0
    %3581 = vmatprep.mubr.f32.mxu0 0.0
    %3582 = vmatmul.mubr.f32.gmra.mrb[0].mxu0 %v3486
    %v3583 = vpop.f32.mrb[0].mxu0
    %v3584 = vadd.f32 0.0, %v3583
    %v3585 = vpop.f32.mrb[0].mxu0
    %3586 = vmatprep.mubr.f32.mxu0 0.0
    %3587 = vmatmul.mubr.f32.gmra.mrb[0].mxu0 %v3489
    %v3588 = vpop.f32.mrb[0].mxu0
    %v3589 = vadd.f32 0.0, %v3588
    %v3590 = vpop.f32.mrb[0].mxu0
    %3591 = vmatprep.mubr.f32.mxu0 0.0
    %3592 = vmatmul.mubr.f32.gmra.mrb[0].mxu0 %v3492
    %v3593 = vpop.f32.mrb[0].mxu0
    %v3594 = vadd.f32 0.0, %v3593
    %v3595 = vpop.f32.mrb[0].mxu0
    %3596 = vmatprep.mubr.f32.mxu0 0.0
    %3597 = vmatmul.mubr.f32.gmra.mrb[0].mxu0 %v3495
    %v3598 = vpop.f32.mrb[0].mxu0
    %v3599 = vadd.f32 0.0, %v3598
    %v3600 = vpop.f32.mrb[0].mxu0
    %3601 = vdwg.mxu0
    %3602 = vrot.lane.b32.xlu0 %v2364, 104
    %v3603 = vpop.permute.xlu0 %3602
    %3604 = vrot.lane.b32.xlu0 %v2365, 104
    %v3605 = vpop.permute.xlu0 %3604
    %3606 = vrot.lane.b32.xlu0 %v2366, 104
    %v3607 = vpop.permute.xlu0 %3606
    %3608 = vrot.lane.b32.xlu0 %v2367, 104
    %v3609 = vpop.permute.xlu0 %3608
    %3610 = vrot.lane.b32.xlu0 %v2368, 104
    %v3611 = vpop.permute.xlu0 %3610
    %3612 = vrot.lane.b32.xlu0 %v2369, 104
    %v3613 = vpop.permute.xlu0 %3612
    %3614 = vrot.lane.b32.xlu0 %v2370, 104
    %v3615 = vpop.permute.xlu0 %3614
    %3616 = vrot.lane.b32.xlu0 %v2371, 104
    %v3617 = vpop.permute.xlu0 %3616
    %3618 = vrot.lane.b32.xlu0 %v554, 72
    %v3619 = vpop.permute.xlu0 %3618
    %3620 = vrot.lane.b32.xlu0 %v559, 72
    %v3621 = vpop.permute.xlu0 %3620
    %3622 = vrot.lane.b32.xlu0 %v564, 72
    %v3623 = vpop.permute.xlu0 %3622
    %3624 = vrot.lane.b32.xlu0 %v569, 72
    %v3625 = vpop.permute.xlu0 %3624
    %3626 = vrot.lane.b32.xlu0 %v574, 72
    %v3627 = vpop.permute.xlu0 %3626
    %3628 = vrot.lane.b32.xlu0 %v579, 72
    %v3629 = vpop.permute.xlu0 %3628
    %3630 = vrot.lane.b32.xlu0 %v584, 72
    %v3631 = vpop.permute.xlu0 %3630
    %3632 = vrot.lane.b32.xlu0 %v589, 72
    %v3633 = vpop.permute.xlu0 %3632
    %v3634 = vsel %vm624, %v3603, 0
    %v3636 = vsel %vm624, %v3605, 0
    %v3638 = vsel %vm624, %v3607, 0
    %v3640 = vsel %vm624, %v3609, 0
    %v3642 = vsel %vm624, %v3611, 0
    %v3644 = vsel %vm624, %v3613, 0
    %v3646 = vsel %vm624, %v3615, 0
    %v3648 = vsel %vm624, %v3617, 0
    %v3650 = vsel %vm624, %v3619, 0
    %v3652 = vsel %vm624, %v3621, 0
    %v3654 = vsel %vm624, %v3623, 0
    %v3656 = vsel %vm624, %v3625, 0
    %v3658 = vsel %vm624, %v3627, 0
    %v3660 = vsel %vm624, %v3629, 0
    %v3662 = vsel %vm624, %v3631, 0
    %v3664 = vsel %vm624, %v3633, 0
    %3666 = vmatprep.subr.mxu0 0.0
    %3667 = vmatpush1.xpose.msra.mxu0 %v3650
    %3668 = vmatprep.subr.mxu0 0.0
    %3669 = vmatpush1.xpose.msra.mxu0 %v3652
    %3670 = vmatprep.subr.mxu0 0.0
    %3671 = vmatpush1.xpose.msra.mxu0 %v3654
    %3672 = vmatprep.subr.mxu0 0.0
    %3673 = vmatpush1.xpose.msra.mxu0 %v3656
    %3674 = vmatprep.subr.mxu0 0.0
    %3675 = vmatpush1.xpose.msra.mxu0 %v3658
    %3676 = vmatprep.subr.mxu0 0.0
    %3677 = vmatpush1.xpose.msra.mxu0 %v3660
    %3678 = vmatprep.subr.mxu0 0.0
    %3679 = vmatpush1.xpose.msra.mxu0 %v3662
    %3680 = vmatprep.subr.mxu0 0.0
    %3681 = vmatpush1.xpose.msra.mxu0 %v3664
    %3682 = vmatprep.subr.mxu0 0.0
    %3683 = vmatpush1.xpose.msra.mxu0 0.0
    %3684 = vmatprep.subr.mxu0 0.0
    %3685 = vmatpush1.xpose.msra.mxu0 0.0
    %3686 = vmatprep.subr.mxu0 0.0
    %3687 = vmatpush1.xpose.msra.mxu0 0.0
    %3688 = vmatprep.subr.mxu0 0.0
    %3689 = vmatpush1.xpose.msra.mxu0 0.0
    %3690 = vmatprep.subr.mxu0 0.0
    %3691 = vmatpush1.xpose.msra.mxu0 0.0
    %3692 = vmatprep.subr.mxu0 0.0
    %3693 = vmatpush1.xpose.msra.mxu0 0.0
    %3694 = vmatprep.subr.mxu0 0.0
    %3695 = vmatpush1.xpose.msra.mxu0 0.0
    %3696 = vmatprep.subr.mxu0 0.0
    %3697 = vmatpush1.xpose.msra.mxu0 0.0
    %3698 = vmatprep.subr.mxu0 0.0
    %3699 = vmatpush1.xpose.msra.mxu0 0.0
    %3700 = vmatprep.subr.mxu0 0.0
    %3701 = vmatpush1.xpose.msra.mxu0 0.0
    %3702 = vmatprep.subr.mxu0 0.0
    %3703 = vmatpush1.xpose.msra.mxu0 0.0
    %3704 = vmatprep.subr.mxu0 0.0
    %3705 = vmatpush1.xpose.msra.mxu0 0.0
    %3706 = vmatprep.subr.mxu0 0.0
    %3707 = vmatpush1.xpose.msra.mxu0 0.0
    %3708 = vmatprep.subr.mxu0 0.0
    %3709 = vmatpush1.xpose.msra.mxu0 0.0
    %3710 = vmatprep.subr.mxu0 0.0
    %3711 = vmatpush1.xpose.msra.mxu0 0.0
    %3712 = vmatprep.subr.mxu0 0.0
    %3713 = vmatpush1.xpose.msra.mxu0 0.0
    %3714 = vmatprep.subr.mxu0 0.0
    %3715 = vmatpush1.xpose.msra.mxu0 0.0
    %3716 = vmatprep.subr.mxu0 0.0
    %3717 = vmatpush1.xpose.msra.mxu0 0.0
    %3718 = vmatprep.subr.mxu0 0.0
    %3719 = vmatpush1.xpose.msra.mxu0 0.0
    %3720 = vmatprep.subr.mxu0 0.0
    %3721 = vmatpush1.xpose.msra.mxu0 0.0
    %3722 = vmatprep.subr.mxu0 0.0
    %3723 = vmatpush1.xpose.msra.mxu0 0.0
    %3724 = vmatprep.subr.mxu0 0.0
    %3725 = vmatpush1.xpose.msra.mxu0 0.0
    %3726 = vmatprep.subr.mxu0 0.0
    %3727 = vmatpush1.xpose.msra.mxu0 0.0
    %3728 = vmatprep.subr.mxu0 0.0
    %3729 = vmatpush1.xpose.msra.mxu0 0.0
    %3730 = vmatprep.mubr.f32.mxu0 0.0
    %3731 = vmatmul.mubr.f32.gmra.mrb[0].mxu0 %v3634
    %v3732 = vpop.f32.mrb[0].mxu0
    %v3733 = vadd.f32 0.0, %v3732
    %v3734 = vpop.f32.mrb[0].mxu0
    %3735 = vmatprep.mubr.f32.mxu0 0.0
    %3736 = vmatmul.mubr.f32.gmra.mrb[0].mxu0 %v3636
    %v3737 = vpop.f32.mrb[0].mxu0
    %v3738 = vadd.f32 0.0, %v3737
    %v3739 = vpop.f32.mrb[0].mxu0
    %3740 = vmatprep.mubr.f32.mxu0 0.0
    %3741 = vmatmul.mubr.f32.gmra.mrb[0].mxu0 %v3638
    %v3742 = vpop.f32.mrb[0].mxu0
    %v3743 = vadd.f32 0.0, %v3742
    %v3744 = vpop.f32.mrb[0].mxu0
    %3745 = vmatprep.mubr.f32.mxu0 0.0
    %3746 = vmatmul.mubr.f32.gmra.mrb[0].mxu0 %v3640
    %v3747 = vpop.f32.mrb[0].mxu0
    %v3748 = vadd.f32 0.0, %v3747
    %v3749 = vpop.f32.mrb[0].mxu0
    %3750 = vmatprep.mubr.f32.mxu0 0.0
    %3751 = vmatmul.mubr.f32.gmra.mrb[0].mxu0 %v3642
    %v3752 = vpop.f32.mrb[0].mxu0
    %v3753 = vadd.f32 0.0, %v3752
    %v3754 = vpop.f32.mrb[0].mxu0
    %3755 = vmatprep.mubr.f32.mxu0 0.0
    %3756 = vmatmul.mubr.f32.gmra.mrb[0].mxu0 %v3644
    %v3757 = vpop.f32.mrb[0].mxu0
    %v3758 = vadd.f32 0.0, %v3757
    %v3759 = vpop.f32.mrb[0].mxu0
    %3760 = vmatprep.mubr.f32.mxu0 0.0
    %3761 = vmatmul.mubr.f32.gmra.mrb[0].mxu0 %v3646
    %v3762 = vpop.f32.mrb[0].mxu0
    %v3763 = vadd.f32 0.0, %v3762
    %v3764 = vpop.f32.mrb[0].mxu0
    %3765 = vmatprep.mubr.f32.mxu0 0.0
    %3766 = vmatmul.mubr.f32.gmra.mrb[0].mxu0 %v3648
    %v3767 = vpop.f32.mrb[0].mxu0
    %v3768 = vadd.f32 0.0, %v3767
    %v3769 = vpop.f32.mrb[0].mxu0
    %3770 = vdwg.mxu0
    %v3771 = vsel %vm770, %v3733, -inf
    %3772 = vmax.xlane.f32.xlu0 %v3771
    %v3773 = vpop.xlane.xlu0 %3772
    %v3774 = vsel %vm770, %v3738, -inf
    %3775 = vmax.xlane.f32.xlu0 %v3774
    %v3776 = vpop.xlane.xlu0 %3775
    %v3777 = vsel %vm770, %v3743, -inf
    %3778 = vmax.xlane.f32.xlu0 %v3777
    %v3779 = vpop.xlane.xlu0 %3778
    %v3780 = vsel %vm770, %v3748, -inf
    %3781 = vmax.xlane.f32.xlu0 %v3780
    %v3782 = vpop.xlane.xlu0 %3781
    %v3783 = vsel %vm770, %v3753, -inf
    %3784 = vmax.xlane.f32.xlu0 %v3783
    %v3785 = vpop.xlane.xlu0 %3784
    %v3786 = vsel %vm770, %v3758, -inf
    %3787 = vmax.xlane.f32.xlu0 %v3786
    %v3788 = vpop.xlane.xlu0 %3787
    %v3789 = vsel %vm770, %v3763, -inf
    %3790 = vmax.xlane.f32.xlu0 %v3789
    %v3791 = vpop.xlane.xlu0 %3790
    %v3792 = vsel %vm770, %v3768, -inf
    %3793 = vmax.xlane.f32.xlu0 %v3792
    %v3794 = vpop.xlane.xlu0 %3793
    %v3795 = vsub.f32 %v3733, %v3773
    %v3796 = vsub.f32 %v3738, %v3776
    %v3797 = vsub.f32 %v3743, %v3779
    %v3798 = vsub.f32 %v3748, %v3782
    %v3799 = vsub.f32 %v3753, %v3785
    %v3800 = vsub.f32 %v3758, %v3788
    %v3801 = vsub.f32 %v3763, %v3791
    %v3802 = vsub.f32 %v3768, %v3794
    %v3803 = vmul.f32 %v3795, 1.442695
    %v3804 = vpow.pop %v3803
    %v3805 = vmul.f32 %v3796, 1.442695
    %v3806 = vpow.pop %v3805
    %v3807 = vmul.f32 %v3797, 1.442695
    %v3808 = vpow.pop %v3807
    %v3809 = vmul.f32 %v3798, 1.442695
    %v3810 = vpow.pop %v3809
    %v3811 = vmul.f32 %v3799, 1.442695
    %v3812 = vpow.pop %v3811
    %v3813 = vmul.f32 %v3800, 1.442695
    %v3814 = vpow.pop %v3813
    %v3815 = vmul.f32 %v3801, 1.442695
    %v3816 = vpow.pop %v3815
    %v3817 = vmul.f32 %v3802, 1.442695
    %v3818 = vpow.pop %v3817
    %v3819 = vsel %vm770, %v3804, 0.0
    %3820 = vadd.xlane.f32.xlu0 %v3819
    %v3821 = vpop.xlane.xlu0 %3820
    %v3822 = vsel %vm770, %v3806, 0.0
    %3823 = vadd.xlane.f32.xlu0 %v3822
    %v3824 = vpop.xlane.xlu0 %3823
    %v3825 = vsel %vm770, %v3808, 0.0
    %3826 = vadd.xlane.f32.xlu0 %v3825
    %v3827 = vpop.xlane.xlu0 %3826
    %v3828 = vsel %vm770, %v3810, 0.0
    %3829 = vadd.xlane.f32.xlu0 %v3828
    %v3830 = vpop.xlane.xlu0 %3829
    %v3831 = vsel %vm770, %v3812, 0.0
    %3832 = vadd.xlane.f32.xlu0 %v3831
    %v3833 = vpop.xlane.xlu0 %3832
    %v3834 = vsel %vm770, %v3814, 0.0
    %3835 = vadd.xlane.f32.xlu0 %v3834
    %v3836 = vpop.xlane.xlu0 %3835
    %v3837 = vsel %vm770, %v3816, 0.0
    %3838 = vadd.xlane.f32.xlu0 %v3837
    %v3839 = vpop.xlane.xlu0 %3838
    %v3840 = vsel %vm770, %v3818, 0.0
    %3841 = vadd.xlane.f32.xlu0 %v3840
    %v3842 = vpop.xlane.xlu0 %3841
    %v3843 = vrcp.pop %v3821
    %v3844 = vrcp.pop %v3824
    %v3845 = vrcp.pop %v3827
    %v3846 = vrcp.pop %v3830
    %v3847 = vrcp.pop %v3833
    %v3848 = vrcp.pop %v3836
    %v3849 = vrcp.pop %v3839
    %v3850 = vrcp.pop %v3842
    %v3851 = vmul.f32 %v3804, %v3843
    %v3852 = vmul.f32 %v3806, %v3844
    %v3853 = vmul.f32 %v3808, %v3845
    %v3854 = vmul.f32 %v3810, %v3846
    %v3855 = vmul.f32 %v3812, %v3847
    %v3856 = vmul.f32 %v3814, %v3848
    %v3857 = vmul.f32 %v3816, %v3849
    %v3858 = vmul.f32 %v3818, %v3850
    %3859 = vrot.lane.b32.xlu0 %v554, 40
    %v3860 = vpop.permute.xlu0 %3859
    %3861 = vrot.lane.b32.xlu0 %v559, 40
    %v3862 = vpop.permute.xlu0 %3861
    %3863 = vrot.lane.b32.xlu0 %v564, 40
    %v3864 = vpop.permute.xlu0 %3863
    %3865 = vrot.lane.b32.xlu0 %v569, 40
    %v3866 = vpop.permute.xlu0 %3865
    %3867 = vrot.lane.b32.xlu0 %v574, 40
    %v3868 = vpop.permute.xlu0 %3867
    %3869 = vrot.lane.b32.xlu0 %v579, 40
    %v3870 = vpop.permute.xlu0 %3869
    %3871 = vrot.lane.b32.xlu0 %v584, 40
    %v3872 = vpop.permute.xlu0 %3871
    %3873 = vrot.lane.b32.xlu0 %v589, 40
    %v3874 = vpop.permute.xlu0 %3873
    %v3884 = vsel %vm770, %v3851, 0
    %v3887 = vsel %vm770, %v3852, 0
    %v3890 = vsel %vm770, %v3853, 0
    %v3893 = vsel %vm770, %v3854, 0
    %v3896 = vsel %vm770, %v3855, 0
    %v3899 = vsel %vm770, %v3856, 0
    %v3902 = vsel %vm770, %v3857, 0
    %v3905 = vsel %vm770, %v3858, 0
    %3907 = vmatprep.subr.mxu0 0.0
    %3908 = vmatpush1.msra.mxu0 %v3860
    %3909 = vmatprep.subr.mxu0 0.0
    %3910 = vmatpush1.msra.mxu0 %v3862
    %3911 = vmatprep.subr.mxu0 0.0
    %3912 = vmatpush1.msra.mxu0 %v3864
    %3913 = vmatprep.subr.mxu0 0.0
    %3914 = vmatpush1.msra.mxu0 %v3866
    %3915 = vmatprep.subr.mxu0 0.0
    %3916 = vmatpush1.msra.mxu0 %v3868
    %3917 = vmatprep.subr.mxu0 0.0
    %3918 = vmatpush1.msra.mxu0 %v3870
    %3919 = vmatprep.subr.mxu0 0.0
    %3920 = vmatpush1.msra.mxu0 %v3872
    %3921 = vmatprep.subr.mxu0 0.0
    %3922 = vmatpush1.msra.mxu0 %v3874
    %3923 = vmatprep.subr.mxu0 0.0
    %3924 = vmatpush1.msra.mxu0 0.0
    %3925 = vmatprep.subr.mxu0 0.0
    %3926 = vmatpush1.msra.mxu0 0.0
    %3927 = vmatprep.subr.mxu0 0.0
    %3928 = vmatpush1.msra.mxu0 0.0
    %3929 = vmatprep.subr.mxu0 0.0
    %3930 = vmatpush1.msra.mxu0 0.0
    %3931 = vmatprep.subr.mxu0 0.0
    %3932 = vmatpush1.msra.mxu0 0.0
    %3933 = vmatprep.subr.mxu0 0.0
    %3934 = vmatpush1.msra.mxu0 0.0
    %3935 = vmatprep.subr.mxu0 0.0
    %3936 = vmatpush1.msra.mxu0 0.0
    %3937 = vmatprep.subr.mxu0 0.0
    %3938 = vmatpush1.msra.mxu0 0.0
    %3939 = vmatprep.subr.mxu0 0.0
    %3940 = vmatpush1.msra.mxu0 0.0
    %3941 = vmatprep.subr.mxu0 0.0
    %3942 = vmatpush1.msra.mxu0 0.0
    %3943 = vmatprep.subr.mxu0 0.0
    %3944 = vmatpush1.msra.mxu0 0.0
    %3945 = vmatprep.subr.mxu0 0.0
    %3946 = vmatpush1.msra.mxu0 0.0
    %3947 = vmatprep.subr.mxu0 0.0
    %3948 = vmatpush1.msra.mxu0 0.0
    %3949 = vmatprep.subr.mxu0 0.0
    %3950 = vmatpush1.msra.mxu0 0.0
    %3951 = vmatprep.subr.mxu0 0.0
    %3952 = vmatpush1.msra.mxu0 0.0
    %3953 = vmatprep.subr.mxu0 0.0
    %3954 = vmatpush1.msra.mxu0 0.0
    %3955 = vmatprep.subr.mxu0 0.0
    %3956 = vmatpush1.msra.mxu0 0.0
    %3957 = vmatprep.subr.mxu0 0.0
    %3958 = vmatpush1.msra.mxu0 0.0
    %3959 = vmatprep.subr.mxu0 0.0
    %3960 = vmatpush1.msra.mxu0 0.0
    %3961 = vmatprep.subr.mxu0 0.0
    %3962 = vmatpush1.msra.mxu0 0.0
    %3963 = vmatprep.subr.mxu0 0.0
    %3964 = vmatpush1.msra.mxu0 0.0
    %3965 = vmatprep.subr.mxu0 0.0
    %3966 = vmatpush1.msra.mxu0 0.0
    %3967 = vmatprep.subr.mxu0 0.0
    %3968 = vmatpush1.msra.mxu0 0.0
    %3969 = vmatprep.subr.mxu0 0.0
    %3970 = vmatpush1.msra.mxu0 0.0
    %3971 = vmatprep.mubr.f32.mxu0 0.0
    %3972 = vmatmul.mubr.f32.gmra.mrb[0].mxu0 %v3884
    %v3973 = vpop.f32.mrb[0].mxu0
    %v3974 = vadd.f32 0.0, %v3973
    %v3975 = vpop.f32.mrb[0].mxu0
    %3976 = vmatprep.mubr.f32.mxu0 0.0
    %3977 = vmatmul.mubr.f32.gmra.mrb[0].mxu0 %v3887
    %v3978 = vpop.f32.mrb[0].mxu0
    %v3979 = vadd.f32 0.0, %v3978
    %v3980 = vpop.f32.mrb[0].mxu0
    %3981 = vmatprep.mubr.f32.mxu0 0.0
    %3982 = vmatmul.mubr.f32.gmra.mrb[0].mxu0 %v3890
    %v3983 = vpop.f32.mrb[0].mxu0
    %v3984 = vadd.f32 0.0, %v3983
    %v3985 = vpop.f32.mrb[0].mxu0
    %3986 = vmatprep.mubr.f32.mxu0 0.0
    %3987 = vmatmul.mubr.f32.gmra.mrb[0].mxu0 %v3893
    %v3988 = vpop.f32.mrb[0].mxu0
    %v3989 = vadd.f32 0.0, %v3988
    %v3990 = vpop.f32.mrb[0].mxu0
    %3991 = vmatprep.mubr.f32.mxu0 0.0
    %3992 = vmatmul.mubr.f32.gmra.mrb[0].mxu0 %v3896
    %v3993 = vpop.f32.mrb[0].mxu0
    %v3994 = vadd.f32 0.0, %v3993
    %v3995 = vpop.f32.mrb[0].mxu0
    %3996 = vmatprep.mubr.f32.mxu0 0.0
    %3997 = vmatmul.mubr.f32.gmra.mrb[0].mxu0 %v3899
    %v3998 = vpop.f32.mrb[0].mxu0
    %v3999 = vadd.f32 0.0, %v3998
    %v4000 = vpop.f32.mrb[0].mxu0
    %4001 = vmatprep.mubr.f32.mxu0 0.0
    %4002 = vmatmul.mubr.f32.gmra.mrb[0].mxu0 %v3902
    %v4003 = vpop.f32.mrb[0].mxu0
    %v4004 = vadd.f32 0.0, %v4003
    %v4005 = vpop.f32.mrb[0].mxu0
    %4006 = vmatprep.mubr.f32.mxu0 0.0
    %4007 = vmatmul.mubr.f32.gmra.mrb[0].mxu0 %v3905
    %v4008 = vpop.f32.mrb[0].mxu0
    %v4009 = vadd.f32 0.0, %v4008
    %v4010 = vpop.f32.mrb[0].mxu0
    %4011 = vdwg.mxu0
    %4020 = vrot.lane.b32.xlu0 %v3154, 8
    %v4021 = vpop.permute.xlu0 %4020
    %4022 = vrot.lane.b32.xlu0 %v3159, 8
    %v4023 = vpop.permute.xlu0 %4022
    %4024 = vrot.lane.b32.xlu0 %v3164, 8
    %v4025 = vpop.permute.xlu0 %4024
    %4026 = vrot.lane.b32.xlu0 %v3169, 8
    %v4027 = vpop.permute.xlu0 %4026
    %4028 = vrot.lane.b32.xlu0 %v3174, 8
    %v4029 = vpop.permute.xlu0 %4028
    %4030 = vrot.lane.b32.xlu0 %v3179, 8
    %v4031 = vpop.permute.xlu0 %4030
    %4032 = vrot.lane.b32.xlu0 %v3184, 8
    %v4033 = vpop.permute.xlu0 %4032
    %4034 = vrot.lane.b32.xlu0 %v3189, 8
    %v4035 = vpop.permute.xlu0 %4034
    %4052 = vrot.lane.b32.xlu0 %v3564, 16
    %v4053 = vpop.permute.xlu0 %4052
    %4054 = vrot.lane.b32.xlu0 %v3569, 16
    %v4055 = vpop.permute.xlu0 %4054
    %4056 = vrot.lane.b32.xlu0 %v3574, 16
    %v4057 = vpop.permute.xlu0 %4056
    %4058 = vrot.lane.b32.xlu0 %v3579, 16
    %v4059 = vpop.permute.xlu0 %4058
    %4060 = vrot.lane.b32.xlu0 %v3584, 16
    %v4061 = vpop.permute.xlu0 %4060
    %4062 = vrot.lane.b32.xlu0 %v3589, 16
    %v4063 = vpop.permute.xlu0 %4062
    %4064 = vrot.lane.b32.xlu0 %v3594, 16
    %v4065 = vpop.permute.xlu0 %4064
    %4066 = vrot.lane.b32.xlu0 %v3599, 16
    %v4067 = vpop.permute.xlu0 %4066
    %4084 = vrot.lane.b32.xlu0 %v3974, 24
    %v4085 = vpop.permute.xlu0 %4084
    %4086 = vrot.lane.b32.xlu0 %v3979, 24
    %v4087 = vpop.permute.xlu0 %4086
    %4088 = vrot.lane.b32.xlu0 %v3984, 24
    %v4089 = vpop.permute.xlu0 %4088
    %4090 = vrot.lane.b32.xlu0 %v3989, 24
    %v4091 = vpop.permute.xlu0 %4090
    %4092 = vrot.lane.b32.xlu0 %v3994, 24
    %v4093 = vpop.permute.xlu0 %4092
    %4094 = vrot.lane.b32.xlu0 %v3999, 24
    %v4095 = vpop.permute.xlu0 %4094
    %4096 = vrot.lane.b32.xlu0 %v4004, 24
    %v4097 = vpop.permute.xlu0 %4096
    %4098 = vrot.lane.b32.xlu0 %v4009, 24
    %v4099 = vpop.permute.xlu0 %4098
    %v4108 = vsel %vm624, %v2744, %v4021
    %v4109 = vsel %vm624, %v2749, %v4023
    %v4110 = vsel %vm624, %v2754, %v4025
    %v4111 = vsel %vm624, %v2759, %v4027
    %v4112 = vsel %vm624, %v2764, %v4029
    %v4113 = vsel %vm624, %v2769, %v4031
    %v4114 = vsel %vm624, %v2774, %v4033
    %v4115 = vsel %vm624, %v2779, %v4035
    %v4116 = vsel %vm2346, %v4108, %v4053
    %v4117 = vsel %vm2346, %v4109, %v4055
    %v4118 = vsel %vm2346, %v4110, %v4057
    %v4119 = vsel %vm2346, %v4111, %v4059
    %v4120 = vsel %vm2346, %v4112, %v4061
    %v4121 = vsel %vm2346, %v4113, %v4063
    %v4122 = vsel %vm2346, %v4114, %v4065
    %v4123 = vsel %vm2346, %v4115, %v4067
    %v4124 = vsel %vm2355, %v4116, %v4085
    %v4125 = vsel %vm2355, %v4117, %v4087
    %v4126 = vsel %vm2355, %v4118, %v4089
    %v4127 = vsel %vm2355, %v4119, %v4091
    %v4128 = vsel %vm2355, %v4120, %v4093
    %v4129 = vsel %vm2355, %v4121, %v4095
    %v4130 = vsel %vm2355, %v4122, %v4097
    %v4131 = vsel %vm2355, %v4123, %v4099
    %v4132 = vld [vmem:[#allocation8] sm:$0xff]
    %v4133 = vld [vmem:[#allocation8 + $0x8] sm:$0xff]
    %v4134 = vld [vmem:[#allocation8 + $0x10] sm:$0xff]
    %v4135 = vld [vmem:[#allocation8 + $0x18] sm:$0xff]
    %v4136 = vlaneseq
    %v4137 = vshrl.u32 %v4136, 7
    %v4138 = vsub.s32 2, %v4137
    %v4139 = vrot.slane %v144, %v4138
    %v4141 = vsel %vm145, %v2356, 0
    %v4144 = vsel %vm145, %v2357, 0
    %v4147 = vsel %vm145, %v2358, 0
    %v4150 = vsel %vm145, %v2359, 0
    %v4153 = vsel %vm145, %v2360, 0
    %v4156 = vsel %vm145, %v2361, 0
    %v4159 = vsel %vm145, %v2362, 0
    %v4162 = vsel %vm145, %v2363, 0
    %v4165 = vsel %vm145, %v4124, 0
    %v4168 = vsel %vm145, %v4125, 0
    %v4171 = vsel %vm145, %v4126, 0
    %v4174 = vsel %vm145, %v4127, 0
    %v4177 = vsel %vm145, %v4128, 0
    %v4180 = vsel %vm145, %v4129, 0
    %v4183 = vsel %vm145, %v4130, 0
    %v4186 = vsel %vm145, %v4131, 0
    %4188 = vmatprep.subr.mxu0 0.0
    %4189 = vmatpush1.msra.mxu0 %v4132
    %4190 = vmatprep.subr.mxu0 0.0
    %4191 = vmatpush1.msra.mxu0 %v4133
    %4192 = vmatprep.subr.mxu0 0.0
    %4193 = vmatpush1.msra.mxu0 %v4134
    %4194 = vmatprep.subr.mxu0 0.0
    %4195 = vmatpush1.msra.mxu0 %v4135
    %4196 = vmatprep.subr.mxu0 0.0
    %4197 = vmatpush1.msra.mxu0 0.0
    %4198 = vmatprep.subr.mxu0 0.0
    %4199 = vmatpush1.msra.mxu0 0.0
    %4200 = vmatprep.subr.mxu0 0.0
    %4201 = vmatpush1.msra.mxu0 0.0
    %4202 = vmatprep.subr.mxu0 0.0
    %4203 = vmatpush1.msra.mxu0 0.0
    %4204 = vmatprep.subr.mxu0 0.0
    %4205 = vmatpush1.msra.mxu0 0.0
    %4206 = vmatprep.subr.mxu0 0.0
    %4207 = vmatpush1.msra.mxu0 0.0
    %4208 = vmatprep.subr.mxu0 0.0
    %4209 = vmatpush1.msra.mxu0 0.0
    %4210 = vmatprep.subr.mxu0 0.0
    %4211 = vmatpush1.msra.mxu0 0.0
    %4212 = vmatprep.subr.mxu0 0.0
    %4213 = vmatpush1.msra.mxu0 0.0
    %4214 = vmatprep.subr.mxu0 0.0
    %4215 = vmatpush1.msra.mxu0 0.0
    %4216 = vmatprep.subr.mxu0 0.0
    %4217 = vmatpush1.msra.mxu0 0.0
    %4218 = vmatprep.subr.mxu0 0.0
    %4219 = vmatpush1.msra.mxu0 0.0
    %4220 = vmatprep.subr.mxu0 0.0
    %4221 = vmatpush1.msra.mxu0 0.0
    %4222 = vmatprep.subr.mxu0 0.0
    %4223 = vmatpush1.msra.mxu0 0.0
    %4224 = vmatprep.subr.mxu0 0.0
    %4225 = vmatpush1.msra.mxu0 0.0
    %4226 = vmatprep.subr.mxu0 0.0
    %4227 = vmatpush1.msra.mxu0 0.0
    %4228 = vmatprep.subr.mxu0 0.0
    %4229 = vmatpush1.msra.mxu0 0.0
    %4230 = vmatprep.subr.mxu0 0.0
    %4231 = vmatpush1.msra.mxu0 0.0
    %4232 = vmatprep.subr.mxu0 0.0
    %4233 = vmatpush1.msra.mxu0 0.0
    %4234 = vmatprep.subr.mxu0 0.0
    %4235 = vmatpush1.msra.mxu0 0.0
    %4236 = vmatprep.subr.mxu0 0.0
    %4237 = vmatpush1.msra.mxu0 0.0
    %4238 = vmatprep.subr.mxu0 0.0
    %4239 = vmatpush1.msra.mxu0 0.0
    %4240 = vmatprep.subr.mxu0 0.0
    %4241 = vmatpush1.msra.mxu0 0.0
    %4242 = vmatprep.subr.mxu0 0.0
    %4243 = vmatpush1.msra.mxu0 0.0
    %4244 = vmatprep.subr.mxu0 0.0
    %4245 = vmatpush1.msra.mxu0 0.0
    %4246 = vmatprep.subr.mxu0 0.0
    %4247 = vmatpush1.msra.mxu0 0.0
    %4248 = vmatprep.subr.mxu0 0.0
    %4249 = vmatpush1.msra.mxu0 0.0
    %4250 = vmatprep.subr.mxu0 0.0
    %4251 = vmatpush1.msra.mxu0 0.0
    %4252 = vmatprep.mubr.f32.mxu0 0.0
    %4253 = vmatmul.mubr.f32.gmra.mrb[0].mxu0 %v4141
    %v4254 = vpop.f32.mrb[0].mxu0
    %v4255 = vadd.f32 %v4139, %v4254
    %v4256 = vpop.f32.mrb[0].mxu0
    %4257 = vmatprep.mubr.f32.mxu0 0.0
    %4258 = vmatmul.mubr.f32.gmra.mrb[0].mxu0 %v4144
    %v4259 = vpop.f32.mrb[0].mxu0
    %v4260 = vadd.f32 %v4139, %v4259
    %v4261 = vpop.f32.mrb[0].mxu0
    %4262 = vmatprep.mubr.f32.mxu0 0.0
    %4263 = vmatmul.mubr.f32.gmra.mrb[0].mxu0 %v4147
    %v4264 = vpop.f32.mrb[0].mxu0
    %v4265 = vadd.f32 %v4139, %v4264
    %v4266 = vpop.f32.mrb[0].mxu0
    %4267 = vmatprep.mubr.f32.mxu0 0.0
    %4268 = vmatmul.mubr.f32.gmra.mrb[0].mxu0 %v4150
    %v4269 = vpop.f32.mrb[0].mxu0
    %v4270 = vadd.f32 %v4139, %v4269
    %v4271 = vpop.f32.mrb[0].mxu0
    %4272 = vmatprep.mubr.f32.mxu0 0.0
    %4273 = vmatmul.mubr.f32.gmra.mrb[0].mxu0 %v4153
    %v4274 = vpop.f32.mrb[0].mxu0
    %v4275 = vadd.f32 %v4139, %v4274
    %v4276 = vpop.f32.mrb[0].mxu0
    %4277 = vmatprep.mubr.f32.mxu0 0.0
    %4278 = vmatmul.mubr.f32.gmra.mrb[0].mxu0 %v4156
    %v4279 = vpop.f32.mrb[0].mxu0
    %v4280 = vadd.f32 %v4139, %v4279
    %v4281 = vpop.f32.mrb[0].mxu0
    %4282 = vmatprep.mubr.f32.mxu0 0.0
    %4283 = vmatmul.mubr.f32.gmra.mrb[0].mxu0 %v4159
    %v4284 = vpop.f32.mrb[0].mxu0
    %v4285 = vadd.f32 %v4139, %v4284
    %v4286 = vpop.f32.mrb[0].mxu0
    %4287 = vmatprep.mubr.f32.mxu0 0.0
    %4288 = vmatmul.mubr.f32.gmra.mrb[0].mxu0 %v4162
    %v4289 = vpop.f32.mrb[0].mxu0
    %v4290 = vadd.f32 %v4139, %v4289
    %v4291 = vpop.f32.mrb[0].mxu0
    %4292 = vmatprep.mubr.f32.mxu0 0.0
    %4293 = vmatmul.mubr.f32.gmra.mrb[0].mxu0 %v4165
    %v4294 = vpop.f32.mrb[0].mxu0
    %v4295 = vadd.f32 %v4139, %v4294
    %v4296 = vpop.f32.mrb[0].mxu0
    %4297 = vmatprep.mubr.f32.mxu0 0.0
    %4298 = vmatmul.mubr.f32.gmra.mrb[0].mxu0 %v4168
    %v4299 = vpop.f32.mrb[0].mxu0
    %v4300 = vadd.f32 %v4139, %v4299
    %v4301 = vpop.f32.mrb[0].mxu0
    %4302 = vmatprep.mubr.f32.mxu0 0.0
    %4303 = vmatmul.mubr.f32.gmra.mrb[0].mxu0 %v4171
    %v4304 = vpop.f32.mrb[0].mxu0
    %v4305 = vadd.f32 %v4139, %v4304
    %v4306 = vpop.f32.mrb[0].mxu0
    %4307 = vmatprep.mubr.f32.mxu0 0.0
    %4308 = vmatmul.mubr.f32.gmra.mrb[0].mxu0 %v4174
    %v4309 = vpop.f32.mrb[0].mxu0
    %v4310 = vadd.f32 %v4139, %v4309
    %v4311 = vpop.f32.mrb[0].mxu0
    %4312 = vmatprep.mubr.f32.mxu0 0.0
    %4313 = vmatmul.mubr.f32.gmra.mrb[0].mxu0 %v4177
    %v4314 = vpop.f32.mrb[0].mxu0
    %v4315 = vadd.f32 %v4139, %v4314
    %v4316 = vpop.f32.mrb[0].mxu0
    %4317 = vmatprep.mubr.f32.mxu0 0.0
    %4318 = vmatmul.mubr.f32.gmra.mrb[0].mxu0 %v4180
    %v4319 = vpop.f32.mrb[0].mxu0
    %v4320 = vadd.f32 %v4139, %v4319
    %v4321 = vpop.f32.mrb[0].mxu0
    %4322 = vmatprep.mubr.f32.mxu0 0.0
    %4323 = vmatmul.mubr.f32.gmra.mrb[0].mxu0 %v4183
    %v4324 = vpop.f32.mrb[0].mxu0
    %v4325 = vadd.f32 %v4139, %v4324
    %v4326 = vpop.f32.mrb[0].mxu0
    %4327 = vmatprep.mubr.f32.mxu0 0.0
    %4328 = vmatmul.mubr.f32.gmra.mrb[0].mxu0 %v4186
    %v4329 = vpop.f32.mrb[0].mxu0
    %v4330 = vadd.f32 %v4139, %v4329
    %v4331 = vpop.f32.mrb[0].mxu0
    %4332 = vdwg.mxu0
    %4333 = vxpose.xlu0.b32.start [1/16] %v4255, 128
    %4334 = vxpose.xlu0.b32.cont [2/16] %v4260, 128
    %4335 = vxpose.xlu0.b32.cont [3/16] %v4265, 128
    %4336 = vxpose.xlu0.b32.cont [4/16] %v4270, 128
    %4337 = vxpose.xlu0.b32.cont [5/16] %v4275, 128
    %4338 = vxpose.xlu0.b32.cont [6/16] %v4280, 128
    %4339 = vxpose.xlu0.b32.cont [7/16] %v4285, 128
    %4340 = vxpose.xlu0.b32.cont [8/16] %v4290, 128
    %4341 = vxpose.xlu0.b32.cont [9/16] %v4295, 128
    %4342 = vxpose.xlu0.b32.cont [10/16] %v4300, 128
    %4343 = vxpose.xlu0.b32.cont [11/16] %v4305, 128
    %4344 = vxpose.xlu0.b32.cont [12/16] %v4310, 128
    %4345 = vxpose.xlu0.b32.cont [13/16] %v4315, 128
    %4346 = vxpose.xlu0.b32.cont [14/16] %v4320, 128
    %4347 = vxpose.xlu0.b32.cont [15/16] %v4325, 128
    %4348 = vxpose.xlu0.b32.end [16/16] %v4330, 128
    %v4349 = vpop.trf.xlu0
    %v4350 = vpop.trf.xlu0
    %v4351 = vpop.trf.xlu0
    %v4352 = vpop.trf.xlu0
    %v4353 = vpop.trf.xlu0
    %v4354 = vpop.trf.xlu0
    %v4355 = vpop.trf.xlu0
    %v4356 = vpop.trf.xlu0
    %v4357 = vpop.trf.xlu0
    %v4358 = vpop.trf.xlu0
    %v4359 = vpop.trf.xlu0
    %v4360 = vpop.trf.xlu0
    %v4361 = vpop.trf.xlu0
    %v4362 = vpop.trf.xlu0
    %v4363 = vpop.trf.xlu0
    %v4364 = vpop.trf.xlu0
    %4365 = vst.msk [vmem:[#allocation10] sm:$0xff] %vm770, %v4349
    %4366 = vst.msk [vmem:[#allocation10 + $0x8] sm:$0xff] %vm770, %v4350
    %4367 = vst.msk [vmem:[#allocation10 + $0x10] sm:$0xff] %vm770, %v4351
    %4368 = vst.msk [vmem:[#allocation10 + $0x18] sm:$0xff] %vm770, %v4352
    %4373 = vrot.lane.b32.xlu0 %v4349, 64
    %v4374 = vpop.permute.xlu0 %4373
    %4375 = vrot.lane.b32.xlu0 %v4350, 64
    %v4376 = vpop.permute.xlu0 %4375
    %4377 = vrot.lane.b32.xlu0 %v4351, 64
    %v4378 = vpop.permute.xlu0 %4377
    %4379 = vrot.lane.b32.xlu0 %v4352, 64
    %v4380 = vpop.permute.xlu0 %4379
    %s4385 = scalar_lea.vmem [#allocation10], 32
    %4386 = vst.msk [vmem:[%s4385] sm:$0xff] %vm770, %v4374
    %4387 = vst.msk [vmem:[%s4385 + $0x8] sm:$0xff] %vm770, %v4376
    %4388 = vst.msk [vmem:[%s4385 + $0x10] sm:$0xff] %vm770, %v4378
    %4389 = vst.msk [vmem:[%s4385 + $0x18] sm:$0xff] %vm770, %v4380
    // Predicated region
    $region34: #{tpu_custom_call.1} parent=1 // pred_check
      _
    $region35: #{tpu_custom_call.1} parent=1 // pred_check_branch
      %4391 = sbr.rel (0) target = $region37
    $region36: #{tpu_custom_call.1} parent=1 // pred_region
      %s4393 = ssub.s32 1024, 1024
      %4394 = vsyncadd [#allocation4], %s4393
      %s4395 = sshll.u32 [#allocation10], 4
      %s4396 = int_to_ptr.vmem [resolvable:$true] %s4395
      %4401 = dma.vmem_to_hbm [thread:$0]  %s4396, 1024, %s4, [#allocation4], 128, 128, 8
    $region37: #{tpu_custom_call.1} parent=1 // pred_fallthru
      _
    // Predicated region
    $region38: #{tpu_custom_call.1} parent=1 // pred_check
      _
    $region39: #{tpu_custom_call.1} parent=1 // pred_check_branch
      %4403 = sbr.rel (0) target = $region41
    $region40: #{tpu_custom_call.1} parent=1 // pred_region
      %4404 = dma.done [#allocation4], 1024
    $region41: #{tpu_custom_call.1} parent=1 // pred_fallthru
      _
    %4405 = vsyncpa [#allocation3], 1
    %4406 = vsyncpa [#allocation6], 1
    %4407 = vsyncpa [#allocation9], 1
    %4408 = vsyncpa [#allocation4], 1

</llo_original>
